<compile_context>
chip_gen: v7x
topology: tpu7x:2x2x1
jax: 0.10.0
libtpu: 0.0.40
codegen_flags: <defaults>
</compile_context>

<pallas_src>
import jax
import jax.numpy as jnp
from jax import lax
from jax.experimental import pallas as pl
from jax.experimental.pallas import tpu as pltpu

K = 5          # depthwise kernel size (MConvMixer uses 9/7; 5 keeps the test small)
P = K // 2     # 'same' padding
EPS = 1e-5     # BatchNorm eps


def residual_kernel(w_ref, bias_ref, scale_ref, shift_ref, x_ref, o_ref,
                    pad_ref):
    # w_ref:     VMEM (K*K, C)          depthwise taps, channel-last
    # bias_ref:  VMEM (1, C)            conv bias
    # scale_ref: VMEM (1, C)            folded BN scale = gamma / sqrt(var+eps)
    # shift_ref: VMEM (1, C)            folded BN shift = beta - mean * scale
    # x_ref:     VMEM (H, W, C)         one image (batch dim squeezed)
    # o_ref:     VMEM (H, W, C)         output
    # pad_ref:   VMEM (H+2P, W+2P, C)   f32 scratch holding the zero halo
    H, W, C = x_ref.shape

    x = x_ref[...].astype(jnp.float32)

    # Build the zero-padded tile in VMEM scratch (border = 0, interior = x).
    pad_ref[...] = jnp.zeros_like(pad_ref)
    pad_ref[P:P + H, P:P + W, :] = x
    xp = pad_ref[...]

    w = w_ref[...].astype(jnp.float32)                      # (K*K, C)

    # Depthwise 'same' conv as K*K shifted whole-plane MACs.  H shifts are
    # leading-dim slices, W shifts are sublane slices; C stays on lanes.
    acc = jnp.zeros((H, W, C), jnp.float32)
    for i in range(K):
        for j in range(K):
            t = i * K + j
            wv = w[t:t + 1, :].reshape(1, 1, C)
            acc = acc + wv * xp[i:i + H, j:j + W, :]
    acc = acc + bias_ref[...].reshape(1, 1, C).astype(jnp.float32)

    # GELU.
    # TODO(synk): PyTorch nn.GELU() defaults to the exact erf form; tanh
    # approximation is used here for a guaranteed Mosaic/EUP lowering.
    y = jax.nn.gelu(acc, approximate=True)

    # Folded inference BatchNorm affine.
    y = scale_ref[...].reshape(1, 1, C).astype(jnp.float32) * y \
        + shift_ref[...].reshape(1, 1, C).astype(jnp.float32)

    # Residual add (taken from the same block -> no duplicate input DMA).
    o_ref[...] = (y + x).astype(o_ref.dtype)


@jax.jit
def residual_forward(x_nchw, w_kkc, bias, scale, shift):
    """Fused Residual(depthwise conv -> GELU -> BN(eval)) + x.  x is NCHW."""
    B, C, H, W = x_nchw.shape
    # Channel-last so C sits on the 128-lane axis inside the kernel.
    x = jnp.transpose(x_nchw, (0, 2, 3, 1))                 # (B, H, W, C)

    out = pl.pallas_call(
        residual_kernel,
        out_shape=jax.ShapeDtypeStruct((B, H, W, C), x.dtype),
        grid=(B,),
        in_specs=[
            pl.BlockSpec((K * K, C), lambda b: (0, 0)),     # weights
            pl.BlockSpec((1, C), lambda b: (0, 0)),         # conv bias
            pl.BlockSpec((1, C), lambda b: (0, 0)),         # BN scale
            pl.BlockSpec((1, C), lambda b: (0, 0)),         # BN shift
            pl.BlockSpec((None, H, W, C), lambda b: (b, 0, 0, 0)),
        ],
        out_specs=pl.BlockSpec((None, H, W, C), lambda b: (b, 0, 0, 0)),
        scratch_shapes=[pltpu.VMEM((H + 2 * P, W + 2 * P, C), jnp.float32)],
        compiler_params=pltpu.CompilerParams(
            dimension_semantics=("parallel",)),
    )(w_kkc, bias.reshape(1, C), scale.reshape(1, C), shift.reshape(1, C), x)

    return jnp.transpose(out, (0, 3, 1, 2))                 # back to NCHW


def reference_forward(x, w_oihw, bias, gamma, beta, mean, var):
    """Pure-JAX reference: depthwise conv -> GELU -> BN (eval) -> + x."""
    C = x.shape[1]
    y = lax.conv_general_dilated(
        x, w_oihw, window_strides=(1, 1), padding="SAME",
        dimension_numbers=("NCHW", "OIHW", "NCHW"),
        feature_group_count=C)
    y = y + bias[None, :, None, None]
    y = jax.nn.gelu(y, approximate=True)
    inv = 1.0 / jnp.sqrt(var + EPS)
    y = (gamma * inv)[None, :, None, None] * y + \
        (beta - mean * gamma * inv)[None, :, None, None]
    return y + x


if __name__ == "__main__":
    # C chosen as one full lane (128) so the channel-last layout is exercised;
    # still tiny (x is 256 KiB).  Real MConvMixer dims are 384/768/1536.
    B, C, H, W = 2, 128, 16, 16

    key = jax.random.PRNGKey(0)
    kx, kw, kb, kg, kbe, km, kv = jax.random.split(key, 7)

    x = jax.random.normal(kx, (B, C, H, W), dtype=jnp.float32)

    # Synthetic parameters with nn.Conv2d(C, C, K, groups=C) / nn.BatchNorm2d(C) shapes.
    w_oihw = 0.1 * jax.random.normal(kw, (C, 1, K, K), dtype=jnp.float32)
    bias = 0.1 * jax.random.normal(kb, (C,), dtype=jnp.float32)
    gamma = 1.0 + 0.1 * jax.random.normal(kg, (C,), dtype=jnp.float32)
    beta = 0.1 * jax.random.normal(kbe, (C,), dtype=jnp.float32)
    run_mean = 0.1 * jax.random.normal(km, (C,), dtype=jnp.float32)
    run_var = 1.0 + 0.1 * jnp.abs(jax.random.normal(kv, (C,), dtype=jnp.float32))

    # Fold BN into scale/shift (inference semantics); channel-last weights.
    inv = 1.0 / jnp.sqrt(run_var + EPS)
    scale = gamma * inv
    shift = beta - run_mean * scale
    w_kkc = jnp.transpose(w_oihw.reshape(C, K * K))         # (K*K, C)

    out = residual_forward(x, w_kkc, bias, scale, shift)
    out = jax.block_until_ready(out)

    ref = reference_forward(x, w_oihw, bias, gamma, beta, run_mean, run_var)
    assert out.shape == (B, C, H, W)
    err = jnp.max(jnp.abs(out - ref))
    assert jnp.allclose(out, ref, rtol=1e-4, atol=1e-4), f"max abs err {err}"

    print("KERNEL_OK")
</pallas_src>

<mosaic_0001>
module attributes {stable_mosaic.version = 11 : i64} {
  func.func @residual_kernel(%arg0: i32, %arg1: memref<25x128xf32, #tpu.memory_space<vmem>>, %arg2: memref<1x128xf32, #tpu.memory_space<vmem>>, %arg3: memref<1x128xf32, #tpu.memory_space<vmem>>, %arg4: memref<1x128xf32, #tpu.memory_space<vmem>>, %arg5: memref<1x16x16x128xf32, #tpu.memory_space<vmem>>, %arg6: memref<1x16x16x128xf32, #tpu.memory_space<vmem>>, %arg7: memref<20x20x128xf32, #tpu.memory_space<vmem>>) attributes {dimension_semantics = [#tpu.dimension_semantics<parallel>], iteration_bounds = array<i64: 2>, scalar_prefetch = 0 : i64, scratch_operands = 1 : i64, tpu.core_type = #tpu.core_type<tc>, window_params = [{pipeline_mode = #tpu.pipeline_mode<synchronous>, transform_indices = @transform_0, window_bounds = array<i64: 25, 128>}, {pipeline_mode = #tpu.pipeline_mode<synchronous>, transform_indices = @transform_1, window_bounds = array<i64: 1, 128>}, {pipeline_mode = #tpu.pipeline_mode<synchronous>, transform_indices = @transform_2, window_bounds = array<i64: 1, 128>}, {pipeline_mode = #tpu.pipeline_mode<synchronous>, transform_indices = @transform_3, window_bounds = array<i64: 1, 128>}, {transform_indices = @transform_4, window_bounds = array<i64: 1, 16, 16, 128>}, {transform_indices = @transform_5, window_bounds = array<i64: 1, 16, 16, 128>}]} {
    %c0 = arith.constant 0 : index
    %c0_0 = arith.constant 0 : index
    %c0_1 = arith.constant 0 : index
    %c0_2 = arith.constant 0 : index
    %0 = vector.load %arg5[%c0, %c0_0, %c0_1, %c0_2] : memref<1x16x16x128xf32, #tpu.memory_space<vmem>>, vector<1x16x16x128xf32>
    %1 = vector.shape_cast %0 : vector<1x16x16x128xf32> to vector<16x16x128xf32>
    %cst = arith.constant 0.000000e+00 : f32
    %2 = vector.broadcast %cst : f32 to vector<20x20x128xf32>
    %c0_3 = arith.constant 0 : index
    %c0_4 = arith.constant 0 : index
    %c0_5 = arith.constant 0 : index
    %3 = vector.load %arg7[%c0_3, %c0_4, %c0_5] : memref<20x20x128xf32, #tpu.memory_space<vmem>>, vector<20x20x128xf32>
    tpu.vector_store %arg7[%c0_3, %c0_4, %c0_5], %2 {strides = array<i32>} : memref<20x20x128xf32, #tpu.memory_space<vmem>>, vector<20x20x128xf32>,
    %c2 = arith.constant 2 : index
    %c2_6 = arith.constant 2 : index
    %c0_7 = arith.constant 0 : index
    %4 = vector.load %arg7[%c2, %c2_6, %c0_7] : memref<20x20x128xf32, #tpu.memory_space<vmem>>, vector<16x16x128xf32>
    tpu.vector_store %arg7[%c2, %c2_6, %c0_7], %1 {strides = array<i32>} : memref<20x20x128xf32, #tpu.memory_space<vmem>>, vector<16x16x128xf32>,
    %c0_8 = arith.constant 0 : index
    %c0_9 = arith.constant 0 : index
    %c0_10 = arith.constant 0 : index
    %5 = vector.load %arg7[%c0_8, %c0_9, %c0_10] : memref<20x20x128xf32, #tpu.memory_space<vmem>>, vector<20x20x128xf32>
    %c0_11 = arith.constant 0 : index
    %c0_12 = arith.constant 0 : index
    %6 = vector.load %arg1[%c0_11, %c0_12] : memref<25x128xf32, #tpu.memory_space<vmem>>, vector<25x128xf32>
    %cst_13 = arith.constant 0.000000e+00 : f32
    %7 = vector.broadcast %cst_13 : f32 to vector<16x16x128xf32>
    %8 = vector.extract_strided_slice %6 {offsets = [0, 0], sizes = [1, 128], strides = [1, 1]} : vector<25x128xf32> to vector<1x128xf32>
    %9 = vector.shape_cast %8 : vector<1x128xf32> to vector<1x1x128xf32>
    %10 = vector.extract_strided_slice %5 {offsets = [0, 0, 0], sizes = [16, 16, 128], strides = [1, 1, 1]} : vector<20x20x128xf32> to vector<16x16x128xf32>
    %11 = vector.broadcast %9 : vector<1x1x128xf32> to vector<16x16x128xf32>
    %12 = arith.mulf %11, %10 : vector<16x16x128xf32>
    %13 = arith.addf %7, %12 : vector<16x16x128xf32>
    %14 = vector.extract_strided_slice %6 {offsets = [1, 0], sizes = [1, 128], strides = [1, 1]} : vector<25x128xf32> to vector<1x128xf32>
    %15 = vector.shape_cast %14 : vector<1x128xf32> to vector<1x1x128xf32>
    %16 = vector.extract_strided_slice %5 {offsets = [0, 1, 0], sizes = [16, 16, 128], strides = [1, 1, 1]} : vector<20x20x128xf32> to vector<16x16x128xf32>
    %17 = vector.broadcast %15 : vector<1x1x128xf32> to vector<16x16x128xf32>
    %18 = arith.mulf %17, %16 : vector<16x16x128xf32>
    %19 = arith.addf %13, %18 : vector<16x16x128xf32>
    %20 = vector.extract_strided_slice %6 {offsets = [2, 0], sizes = [1, 128], strides = [1, 1]} : vector<25x128xf32> to vector<1x128xf32>
    %21 = vector.shape_cast %20 : vector<1x128xf32> to vector<1x1x128xf32>
    %22 = vector.extract_strided_slice %5 {offsets = [0, 2, 0], sizes = [16, 16, 128], strides = [1, 1, 1]} : vector<20x20x128xf32> to vector<16x16x128xf32>
    %23 = vector.broadcast %21 : vector<1x1x128xf32> to vector<16x16x128xf32>
    %24 = arith.mulf %23, %22 : vector<16x16x128xf32>
    %25 = arith.addf %19, %24 : vector<16x16x128xf32>
    %26 = vector.extract_strided_slice %6 {offsets = [3, 0], sizes = [1, 128], strides = [1, 1]} : vector<25x128xf32> to vector<1x128xf32>
    %27 = vector.shape_cast %26 : vector<1x128xf32> to vector<1x1x128xf32>
    %28 = vector.extract_strided_slice %5 {offsets = [0, 3, 0], sizes = [16, 16, 128], strides = [1, 1, 1]} : vector<20x20x128xf32> to vector<16x16x128xf32>
    %29 = vector.broadcast %27 : vector<1x1x128xf32> to vector<16x16x128xf32>
    %30 = arith.mulf %29, %28 : vector<16x16x128xf32>
    %31 = arith.addf %25, %30 : vector<16x16x128xf32>
    %32 = vector.extract_strided_slice %6 {offsets = [4, 0], sizes = [1, 128], strides = [1, 1]} : vector<25x128xf32> to vector<1x128xf32>
    %33 = vector.shape_cast %32 : vector<1x128xf32> to vector<1x1x128xf32>
    %34 = vector.extract_strided_slice %5 {offsets = [0, 4, 0], sizes = [16, 16, 128], strides = [1, 1, 1]} : vector<20x20x128xf32> to vector<16x16x128xf32>
    %35 = vector.broadcast %33 : vector<1x1x128xf32> to vector<16x16x128xf32>
    %36 = arith.mulf %35, %34 : vector<16x16x128xf32>
    %37 = arith.addf %31, %36 : vector<16x16x128xf32>
    %38 = vector.extract_strided_slice %6 {offsets = [5, 0], sizes = [1, 128], strides = [1, 1]} : vector<25x128xf32> to vector<1x128xf32>
    %39 = vector.shape_cast %38 : vector<1x128xf32> to vector<1x1x128xf32>
    %40 = vector.extract_strided_slice %5 {offsets = [1, 0, 0], sizes = [16, 16, 128], strides = [1, 1, 1]} : vector<20x20x128xf32> to vector<16x16x128xf32>
    %41 = vector.broadcast %39 : vector<1x1x128xf32> to vector<16x16x128xf32>
    %42 = arith.mulf %41, %40 : vector<16x16x128xf32>
    %43 = arith.addf %37, %42 : vector<16x16x128xf32>
    %44 = vector.extract_strided_slice %6 {offsets = [6, 0], sizes = [1, 128], strides = [1, 1]} : vector<25x128xf32> to vector<1x128xf32>
    %45 = vector.shape_cast %44 : vector<1x128xf32> to vector<1x1x128xf32>
    %46 = vector.extract_strided_slice %5 {offsets = [1, 1, 0], sizes = [16, 16, 128], strides = [1, 1, 1]} : vector<20x20x128xf32> to vector<16x16x128xf32>
    %47 = vector.broadcast %45 : vector<1x1x128xf32> to vector<16x16x128xf32>
    %48 = arith.mulf %47, %46 : vector<16x16x128xf32>
    %49 = arith.addf %43, %48 : vector<16x16x128xf32>
    %50 = vector.extract_strided_slice %6 {offsets = [7, 0], sizes = [1, 128], strides = [1, 1]} : vector<25x128xf32> to vector<1x128xf32>
    %51 = vector.shape_cast %50 : vector<1x128xf32> to vector<1x1x128xf32>
    %52 = vector.extract_strided_slice %5 {offsets = [1, 2, 0], sizes = [16, 16, 128], strides = [1, 1, 1]} : vector<20x20x128xf32> to vector<16x16x128xf32>
    %53 = vector.broadcast %51 : vector<1x1x128xf32> to vector<16x16x128xf32>
    %54 = arith.mulf %53, %52 : vector<16x16x128xf32>
    %55 = arith.addf %49, %54 : vector<16x16x128xf32>
    %56 = vector.extract_strided_slice %6 {offsets = [8, 0], sizes = [1, 128], strides = [1, 1]} : vector<25x128xf32> to vector<1x128xf32>
    %57 = vector.shape_cast %56 : vector<1x128xf32> to vector<1x1x128xf32>
    %58 = vector.extract_strided_slice %5 {offsets = [1, 3, 0], sizes = [16, 16, 128], strides = [1, 1, 1]} : vector<20x20x128xf32> to vector<16x16x128xf32>
    %59 = vector.broadcast %57 : vector<1x1x128xf32> to vector<16x16x128xf32>
    %60 = arith.mulf %59, %58 : vector<16x16x128xf32>
    %61 = arith.addf %55, %60 : vector<16x16x128xf32>
    %62 = vector.extract_strided_slice %6 {offsets = [9, 0], sizes = [1, 128], strides = [1, 1]} : vector<25x128xf32> to vector<1x128xf32>
    %63 = vector.shape_cast %62 : vector<1x128xf32> to vector<1x1x128xf32>
    %64 = vector.extract_strided_slice %5 {offsets = [1, 4, 0], sizes = [16, 16, 128], strides = [1, 1, 1]} : vector<20x20x128xf32> to vector<16x16x128xf32>
    %65 = vector.broadcast %63 : vector<1x1x128xf32> to vector<16x16x128xf32>
    %66 = arith.mulf %65, %64 : vector<16x16x128xf32>
    %67 = arith.addf %61, %66 : vector<16x16x128xf32>
    %68 = vector.extract_strided_slice %6 {offsets = [10, 0], sizes = [1, 128], strides = [1, 1]} : vector<25x128xf32> to vector<1x128xf32>
    %69 = vector.shape_cast %68 : vector<1x128xf32> to vector<1x1x128xf32>
    %70 = vector.extract_strided_slice %5 {offsets = [2, 0, 0], sizes = [16, 16, 128], strides = [1, 1, 1]} : vector<20x20x128xf32> to vector<16x16x128xf32>
    %71 = vector.broadcast %69 : vector<1x1x128xf32> to vector<16x16x128xf32>
    %72 = arith.mulf %71, %70 : vector<16x16x128xf32>
    %73 = arith.addf %67, %72 : vector<16x16x128xf32>
    %74 = vector.extract_strided_slice %6 {offsets = [11, 0], sizes = [1, 128], strides = [1, 1]} : vector<25x128xf32> to vector<1x128xf32>
    %75 = vector.shape_cast %74 : vector<1x128xf32> to vector<1x1x128xf32>
    %76 = vector.extract_strided_slice %5 {offsets = [2, 1, 0], sizes = [16, 16, 128], strides = [1, 1, 1]} : vector<20x20x128xf32> to vector<16x16x128xf32>
    %77 = vector.broadcast %75 : vector<1x1x128xf32> to vector<16x16x128xf32>
    %78 = arith.mulf %77, %76 : vector<16x16x128xf32>
    %79 = arith.addf %73, %78 : vector<16x16x128xf32>
    %80 = vector.extract_strided_slice %6 {offsets = [12, 0], sizes = [1, 128], strides = [1, 1]} : vector<25x128xf32> to vector<1x128xf32>
    %81 = vector.shape_cast %80 : vector<1x128xf32> to vector<1x1x128xf32>
    %82 = vector.extract_strided_slice %5 {offsets = [2, 2, 0], sizes = [16, 16, 128], strides = [1, 1, 1]} : vector<20x20x128xf32> to vector<16x16x128xf32>
    %83 = vector.broadcast %81 : vector<1x1x128xf32> to vector<16x16x128xf32>
    %84 = arith.mulf %83, %82 : vector<16x16x128xf32>
    %85 = arith.addf %79, %84 : vector<16x16x128xf32>
    %86 = vector.extract_strided_slice %6 {offsets = [13, 0], sizes = [1, 128], strides = [1, 1]} : vector<25x128xf32> to vector<1x128xf32>
    %87 = vector.shape_cast %86 : vector<1x128xf32> to vector<1x1x128xf32>
    %88 = vector.extract_strided_slice %5 {offsets = [2, 3, 0], sizes = [16, 16, 128], strides = [1, 1, 1]} : vector<20x20x128xf32> to vector<16x16x128xf32>
    %89 = vector.broadcast %87 : vector<1x1x128xf32> to vector<16x16x128xf32>
    %90 = arith.mulf %89, %88 : vector<16x16x128xf32>
    %91 = arith.addf %85, %90 : vector<16x16x128xf32>
    %92 = vector.extract_strided_slice %6 {offsets = [14, 0], sizes = [1, 128], strides = [1, 1]} : vector<25x128xf32> to vector<1x128xf32>
    %93 = vector.shape_cast %92 : vector<1x128xf32> to vector<1x1x128xf32>
    %94 = vector.extract_strided_slice %5 {offsets = [2, 4, 0], sizes = [16, 16, 128], strides = [1, 1, 1]} : vector<20x20x128xf32> to vector<16x16x128xf32>
    %95 = vector.broadcast %93 : vector<1x1x128xf32> to vector<16x16x128xf32>
    %96 = arith.mulf %95, %94 : vector<16x16x128xf32>
    %97 = arith.addf %91, %96 : vector<16x16x128xf32>
    %98 = vector.extract_strided_slice %6 {offsets = [15, 0], sizes = [1, 128], strides = [1, 1]} : vector<25x128xf32> to vector<1x128xf32>
    %99 = vector.shape_cast %98 : vector<1x128xf32> to vector<1x1x128xf32>
    %100 = vector.extract_strided_slice %5 {offsets = [3, 0, 0], sizes = [16, 16, 128], strides = [1, 1, 1]} : vector<20x20x128xf32> to vector<16x16x128xf32>
    %101 = vector.broadcast %99 : vector<1x1x128xf32> to vector<16x16x128xf32>
    %102 = arith.mulf %101, %100 : vector<16x16x128xf32>
    %103 = arith.addf %97, %102 : vector<16x16x128xf32>
    %104 = vector.extract_strided_slice %6 {offsets = [16, 0], sizes = [1, 128], strides = [1, 1]} : vector<25x128xf32> to vector<1x128xf32>
    %105 = vector.shape_cast %104 : vector<1x128xf32> to vector<1x1x128xf32>
    %106 = vector.extract_strided_slice %5 {offsets = [3, 1, 0], sizes = [16, 16, 128], strides = [1, 1, 1]} : vector<20x20x128xf32> to vector<16x16x128xf32>
    %107 = vector.broadcast %105 : vector<1x1x128xf32> to vector<16x16x128xf32>
    %108 = arith.mulf %107, %106 : vector<16x16x128xf32>
    %109 = arith.addf %103, %108 : vector<16x16x128xf32>
    %110 = vector.extract_strided_slice %6 {offsets = [17, 0], sizes = [1, 128], strides = [1, 1]} : vector<25x128xf32> to vector<1x128xf32>
    %111 = vector.shape_cast %110 : vector<1x128xf32> to vector<1x1x128xf32>
    %112 = vector.extract_strided_slice %5 {offsets = [3, 2, 0], sizes = [16, 16, 128], strides = [1, 1, 1]} : vector<20x20x128xf32> to vector<16x16x128xf32>
    %113 = vector.broadcast %111 : vector<1x1x128xf32> to vector<16x16x128xf32>
    %114 = arith.mulf %113, %112 : vector<16x16x128xf32>
    %115 = arith.addf %109, %114 : vector<16x16x128xf32>
    %116 = vector.extract_strided_slice %6 {offsets = [18, 0], sizes = [1, 128], strides = [1, 1]} : vector<25x128xf32> to vector<1x128xf32>
    %117 = vector.shape_cast %116 : vector<1x128xf32> to vector<1x1x128xf32>
    %118 = vector.extract_strided_slice %5 {offsets = [3, 3, 0], sizes = [16, 16, 128], strides = [1, 1, 1]} : vector<20x20x128xf32> to vector<16x16x128xf32>
    %119 = vector.broadcast %117 : vector<1x1x128xf32> to vector<16x16x128xf32>
    %120 = arith.mulf %119, %118 : vector<16x16x128xf32>
    %121 = arith.addf %115, %120 : vector<16x16x128xf32>
    %122 = vector.extract_strided_slice %6 {offsets = [19, 0], sizes = [1, 128], strides = [1, 1]} : vector<25x128xf32> to vector<1x128xf32>
    %123 = vector.shape_cast %122 : vector<1x128xf32> to vector<1x1x128xf32>
    %124 = vector.extract_strided_slice %5 {offsets = [3, 4, 0], sizes = [16, 16, 128], strides = [1, 1, 1]} : vector<20x20x128xf32> to vector<16x16x128xf32>
    %125 = vector.broadcast %123 : vector<1x1x128xf32> to vector<16x16x128xf32>
    %126 = arith.mulf %125, %124 : vector<16x16x128xf32>
    %127 = arith.addf %121, %126 : vector<16x16x128xf32>
    %128 = vector.extract_strided_slice %6 {offsets = [20, 0], sizes = [1, 128], strides = [1, 1]} : vector<25x128xf32> to vector<1x128xf32>
    %129 = vector.shape_cast %128 : vector<1x128xf32> to vector<1x1x128xf32>
    %130 = vector.extract_strided_slice %5 {offsets = [4, 0, 0], sizes = [16, 16, 128], strides = [1, 1, 1]} : vector<20x20x128xf32> to vector<16x16x128xf32>
    %131 = vector.broadcast %129 : vector<1x1x128xf32> to vector<16x16x128xf32>
    %132 = arith.mulf %131, %130 : vector<16x16x128xf32>
    %133 = arith.addf %127, %132 : vector<16x16x128xf32>
    %134 = vector.extract_strided_slice %6 {offsets = [21, 0], sizes = [1, 128], strides = [1, 1]} : vector<25x128xf32> to vector<1x128xf32>
    %135 = vector.shape_cast %134 : vector<1x128xf32> to vector<1x1x128xf32>
    %136 = vector.extract_strided_slice %5 {offsets = [4, 1, 0], sizes = [16, 16, 128], strides = [1, 1, 1]} : vector<20x20x128xf32> to vector<16x16x128xf32>
    %137 = vector.broadcast %135 : vector<1x1x128xf32> to vector<16x16x128xf32>
    %138 = arith.mulf %137, %136 : vector<16x16x128xf32>
    %139 = arith.addf %133, %138 : vector<16x16x128xf32>
    %140 = vector.extract_strided_slice %6 {offsets = [22, 0], sizes = [1, 128], strides = [1, 1]} : vector<25x128xf32> to vector<1x128xf32>
    %141 = vector.shape_cast %140 : vector<1x128xf32> to vector<1x1x128xf32>
    %142 = vector.extract_strided_slice %5 {offsets = [4, 2, 0], sizes = [16, 16, 128], strides = [1, 1, 1]} : vector<20x20x128xf32> to vector<16x16x128xf32>
    %143 = vector.broadcast %141 : vector<1x1x128xf32> to vector<16x16x128xf32>
    %144 = arith.mulf %143, %142 : vector<16x16x128xf32>
    %145 = arith.addf %139, %144 : vector<16x16x128xf32>
    %146 = vector.extract_strided_slice %6 {offsets = [23, 0], sizes = [1, 128], strides = [1, 1]} : vector<25x128xf32> to vector<1x128xf32>
    %147 = vector.shape_cast %146 : vector<1x128xf32> to vector<1x1x128xf32>
    %148 = vector.extract_strided_slice %5 {offsets = [4, 3, 0], sizes = [16, 16, 128], strides = [1, 1, 1]} : vector<20x20x128xf32> to vector<16x16x128xf32>
    %149 = vector.broadcast %147 : vector<1x1x128xf32> to vector<16x16x128xf32>
    %150 = arith.mulf %149, %148 : vector<16x16x128xf32>
    %151 = arith.addf %145, %150 : vector<16x16x128xf32>
    %152 = vector.extract_strided_slice %6 {offsets = [24, 0], sizes = [1, 128], strides = [1, 1]} : vector<25x128xf32> to vector<1x128xf32>
    %153 = vector.shape_cast %152 : vector<1x128xf32> to vector<1x1x128xf32>
    %154 = vector.extract_strided_slice %5 {offsets = [4, 4, 0], sizes = [16, 16, 128], strides = [1, 1, 1]} : vector<20x20x128xf32> to vector<16x16x128xf32>
    %155 = vector.broadcast %153 : vector<1x1x128xf32> to vector<16x16x128xf32>
    %156 = arith.mulf %155, %154 : vector<16x16x128xf32>
    %157 = arith.addf %151, %156 : vector<16x16x128xf32>
    %c0_14 = arith.constant 0 : index
    %c0_15 = arith.constant 0 : index
    %158 = vector.load %arg2[%c0_14, %c0_15] : memref<1x128xf32, #tpu.memory_space<vmem>>, vector<1x128xf32>
    %159 = vector.shape_cast %158 : vector<1x128xf32> to vector<1x1x128xf32>
    %160 = vector.broadcast %159 : vector<1x1x128xf32> to vector<16x16x128xf32>
    %161 = arith.addf %157, %160 : vector<16x16x128xf32>
    %162 = arith.mulf %161, %161 : vector<16x16x128xf32>
    %163 = arith.mulf %161, %162 : vector<16x16x128xf32>
    %cst_16 = arith.constant 4.471500e-02 : f32
    %164 = vector.broadcast %cst_16 : f32 to vector<16x16x128xf32>
    %165 = arith.mulf %164, %163 : vector<16x16x128xf32>
    %166 = arith.addf %161, %165 : vector<16x16x128xf32>
    %cst_17 = arith.constant 0.797884583 : f32
    %167 = vector.broadcast %cst_17 : f32 to vector<16x16x128xf32>
    %168 = arith.mulf %167, %166 : vector<16x16x128xf32>
    %169 = math.tanh %168 : vector<16x16x128xf32>
    %cst_18 = arith.constant 1.000000e+00 : f32
    %170 = vector.broadcast %cst_18 : f32 to vector<16x16x128xf32>
    %171 = arith.addf %170, %169 : vector<16x16x128xf32>
    %cst_19 = arith.constant 5.000000e-01 : f32
    %172 = vector.broadcast %cst_19 : f32 to vector<16x16x128xf32>
    %173 = arith.mulf %172, %171 : vector<16x16x128xf32>
    %174 = arith.mulf %161, %173 : vector<16x16x128xf32>
    %c0_20 = arith.constant 0 : index
    %c0_21 = arith.constant 0 : index
    %175 = vector.load %arg3[%c0_20, %c0_21] : memref<1x128xf32, #tpu.memory_space<vmem>>, vector<1x128xf32>
    %176 = vector.shape_cast %175 : vector<1x128xf32> to vector<1x1x128xf32>
    %177 = vector.broadcast %176 : vector<1x1x128xf32> to vector<16x16x128xf32>
    %178 = arith.mulf %177, %174 : vector<16x16x128xf32>
    %c0_22 = arith.constant 0 : index
    %c0_23 = arith.constant 0 : index
    %179 = vector.load %arg4[%c0_22, %c0_23] : memref<1x128xf32, #tpu.memory_space<vmem>>, vector<1x128xf32>
    %180 = vector.shape_cast %179 : vector<1x128xf32> to vector<1x1x128xf32>
    %181 = vector.broadcast %180 : vector<1x1x128xf32> to vector<16x16x128xf32>
    %182 = arith.addf %178, %181 : vector<16x16x128xf32>
    %183 = arith.addf %182, %1 : vector<16x16x128xf32>
    %c0_24 = arith.constant 0 : index
    %c0_25 = arith.constant 0 : index
    %c0_26 = arith.constant 0 : index
    %c0_27 = arith.constant 0 : index
    %184 = vector.load %arg6[%c0_24, %c0_25, %c0_26, %c0_27] : memref<1x16x16x128xf32, #tpu.memory_space<vmem>>, vector<1x16x16x128xf32>
    %185 = vector.shape_cast %184 : vector<1x16x16x128xf32> to vector<16x16x128xf32>
    %186 = vector.shape_cast %183 : vector<16x16x128xf32> to vector<1x16x16x128xf32>
    tpu.vector_store %arg6[%c0_24, %c0_25, %c0_26, %c0_27], %186 {strides = array<i32>} : memref<1x16x16x128xf32, #tpu.memory_space<vmem>>, vector<1x16x16x128xf32>,
    return
  }
  func.func @transform_0(%arg0: i32) -> (i32, i32) {
    %c0_i32 = arith.constant 0 : i32
    %c0_i32_0 = arith.constant 0 : i32
    %c0_i32_1 = arith.constant 0 : i32
    return %c0_i32, %c0_i32_0 : i32, i32
  }
  func.func @transform_1(%arg0: i32) -> (i32, i32) {
    %c0_i32 = arith.constant 0 : i32
    %c0_i32_0 = arith.constant 0 : i32
    %c0_i32_1 = arith.constant 0 : i32
    return %c0_i32, %c0_i32_0 : i32, i32
  }
  func.func @transform_2(%arg0: i32) -> (i32, i32) {
    %c0_i32 = arith.constant 0 : i32
    %c0_i32_0 = arith.constant 0 : i32
    %c0_i32_1 = arith.constant 0 : i32
    return %c0_i32, %c0_i32_0 : i32, i32
  }
  func.func @transform_3(%arg0: i32) -> (i32, i32) {
    %c0_i32 = arith.constant 0 : i32
    %c0_i32_0 = arith.constant 0 : i32
    %c0_i32_1 = arith.constant 0 : i32
    return %c0_i32, %c0_i32_0 : i32, i32
  }
  func.func @transform_4(%arg0: i32) -> (i32, i32, i32, i32) {
    %c0_i32 = arith.constant 0 : i32
    %c0_i32_0 = arith.constant 0 : i32
    %c0_i32_1 = arith.constant 0 : i32
    %c0_i32_2 = arith.constant 0 : i32
    return %arg0, %c0_i32, %c0_i32_0, %c0_i32_1 : i32, i32, i32, i32
  }
  func.func @transform_5(%arg0: i32) -> (i32, i32, i32, i32) {
    %c0_i32 = arith.constant 0 : i32
    %c0_i32_0 = arith.constant 0 : i32
    %c0_i32_1 = arith.constant 0 : i32
    %c0_i32_2 = arith.constant 0 : i32
    return %arg0, %c0_i32, %c0_i32_0, %c0_i32_1 : i32, i32, i32, i32
  }
}

</mosaic_0001>

<llo_original>
// kernel: residual_forward.1
$region0: #{residual_forward.1}
  #allocation0 [shape = 'u32[]', space=smem, size = 0x4, offset = 0x4, fixed_abs, tag = 'smem constant byte address 0x4 - core index']
  #allocation1 [shape = 'u32[144,128]{1,0:T(1,128)}', space=vmem, size = 0x12000, scoped, tag = 'internal scratch']
  #allocation2 [shape = 'f32[20,20,128]{2,1,0:T(8,128)}', space=vmem, size = 0x3c000, scoped, tag = 'scratch operand']
  %s0 = inlined_call_operand.hbm [shape: f32[25,128], index: 0, kind: input, shape index: {}]
  %s1 = inlined_call_operand.vmem [shape: f32[1,128], index: 1, kind: input, shape index: {}]
  %s2 = inlined_call_operand.vmem [shape: f32[1,128], index: 2, kind: input, shape index: {}]
  %s3 = inlined_call_operand.vmem [shape: f32[1,128], index: 3, kind: input, shape index: {}]
  %s4 = inlined_call_operand.hbm [shape: f32[2,16,16,128], index: 4, kind: input, shape index: {}]
  %s5 = inlined_call_operand.hbm [shape: f32[2,16,16,128], index: 5, kind: output, shape index: {}]
  %s6 = sld [smem:[#allocation0]]
  $region61: #{residual_forward.1} parent=0
    _
  %s8 = ssub.s32 1, %s6
  %s9 = scalar_select 0, %s8, %s6
  $region1: #{residual_forward.1} parent=0
    #allocation3 [shape = 'u8[16384]{0}', space=vmem, size = 0x4000, scoped, tag = 'input window, operand 0, single buffered']
    #allocation4 [shape = 's32[2]{0}', space=sflag, size = 0x8, scoped, tag = 'scoped memory for residual_forward.1']
    #allocation5 [shape = 's32[2]{0}', space=sflag, size = 0x8, scoped, tag = 'scoped memory for residual_forward.1']
    #allocation6 [shape = 'u8[262144]{0}', space=vmem, size = 0x40000, scoped, tag = 'input window, operand 4']
    #allocation7 [shape = 's32[2]{0}', space=sflag, size = 0x8, scoped, tag = 'scoped memory for residual_forward.1']
    #allocation8 [shape = 'u8[262144]{0}', space=vmem, size = 0x40000, scoped, tag = 'output window, operand 0']
    %10 = vsyncpa [#allocation4], 0
    %11 = vsyncpa [#allocation7], 0
    %s12 = scalar_lea.sflag [#allocation7], 1
    %13 = vsyncpa %s12, 0
    %14 = vsyncpa [#allocation5], 0
    %s15 = scalar_lea.sflag [#allocation5], 1
    %16 = vsyncpa %s15, 0
    loop: start=0, step=1, limit=4
    $region2: #{residual_forward.1} parent=1 // loop_pre_header
      _
    $region3: #{residual_forward.1} parent=1 // loop_header
      %s18 = sphi 0, %s22
      %p19 = scmp.ge.s32.totalorder %s18, 4
      %s26 = sphi 0, %s26
      %s28 = sphi 0, %s26
      %s29 = sphi 0, %s28
      %s43 = sphi 0, %s29
      %s47 = sphi 0, %s47
      %s49 = sphi 0, %s47
      %s50 = sphi 0, %s49
      %s64 = sphi 0, %s50
      %s68 = sphi 0, %s68
      %s70 = sphi 0, %s68
      %s71 = sphi 0, %s70
      %s85 = sphi 0, %s71
      %s89 = sphi 0, %s89
      %s91 = sphi 0, %s89
      %s92 = sphi 0, %s91
      %s106 = sphi 0, %s92
      %s112 = sphi 0, %s114
      %s115 = sphi 0, %s112
      %s116 = sphi 0, %s115
      %s132 = sphi 0, %s116
      %s138 = sphi 0, %s140
      %s141 = sphi 0, %s138
      %s142 = sphi 0, %s141
      %s158 = sphi 0, %s142
    $region4: #{residual_forward.1} parent=1 // loop_header_branch
      %21 = sbr.rel (%p19) target = $region8
    $region5: #{residual_forward.1} parent=1 // loop_body
      %s23 = ssub.s32 %s18, 1
      %s24 = ssub.s32 %s18, 2
      %s25 = sadd.s32 %s18, 1
      %s27 = sadd.s32 %s26, 1
      %p30 = scmp.eq.s32.totalorder %s18, 1
      %p31 = scmp.ne.s32.totalorder %s26, %s28
      %p32 = scmp.eq.s32.totalorder %s18, 0
      %p33 = por %p31, %p32
      %p34 = scmp.ne.s32.totalorder %s26, %s28
      %p35 = scmp.eq.s32.totalorder %s23, 1
      %p36 = por %p34, %p35
      %p37 = scmp.ne.s32.totalorder %s28, %s29
      %p38 = scmp.eq.s32.totalorder %s23, 0
      %p39 = por %p37, %p38
      %p40 = scmp.ne.s32.totalorder %s28, %s29
      %p41 = scmp.eq.s32.totalorder %s24, 1
      %p42 = por %p40, %p41
      %p44 = scmp.ne.s32.totalorder %s29, %s43
      %p45 = scmp.eq.s32.totalorder %s24, 0
      %p46 = por %p44, %p45
      %s48 = sadd.s32 %s47, 1
      %p51 = scmp.eq.s32.totalorder %s18, 1
      %p52 = scmp.ne.s32.totalorder %s47, %s49
      %p53 = scmp.eq.s32.totalorder %s18, 0
      %p54 = por %p52, %p53
      %p55 = scmp.ne.s32.totalorder %s47, %s49
      %p56 = scmp.eq.s32.totalorder %s23, 1
      %p57 = por %p55, %p56
      %p58 = scmp.ne.s32.totalorder %s49, %s50
      %p59 = scmp.eq.s32.totalorder %s23, 0
      %p60 = por %p58, %p59
      %p61 = scmp.ne.s32.totalorder %s49, %s50
      %p62 = scmp.eq.s32.totalorder %s24, 1
      %p63 = por %p61, %p62
      %p65 = scmp.ne.s32.totalorder %s50, %s64
      %p66 = scmp.eq.s32.totalorder %s24, 0
      %p67 = por %p65, %p66
      %s69 = sadd.s32 %s68, 1
      %p72 = scmp.eq.s32.totalorder %s18, 1
      %p73 = scmp.ne.s32.totalorder %s68, %s70
      %p74 = scmp.eq.s32.totalorder %s18, 0
      %p75 = por %p73, %p74
      %p76 = scmp.ne.s32.totalorder %s68, %s70
      %p77 = scmp.eq.s32.totalorder %s23, 1
      %p78 = por %p76, %p77
      %p79 = scmp.ne.s32.totalorder %s70, %s71
      %p80 = scmp.eq.s32.totalorder %s23, 0
      %p81 = por %p79, %p80
      %p82 = scmp.ne.s32.totalorder %s70, %s71
      %p83 = scmp.eq.s32.totalorder %s24, 1
      %p84 = por %p82, %p83
      %p86 = scmp.ne.s32.totalorder %s71, %s85
      %p87 = scmp.eq.s32.totalorder %s24, 0
      %p88 = por %p86, %p87
      %s90 = sadd.s32 %s89, 1
      %p93 = scmp.eq.s32.totalorder %s18, 1
      %p94 = scmp.ne.s32.totalorder %s89, %s91
      %p95 = scmp.eq.s32.totalorder %s18, 0
      %p96 = por %p94, %p95
      %p97 = scmp.ne.s32.totalorder %s89, %s91
      %p98 = scmp.eq.s32.totalorder %s23, 1
      %p99 = por %p97, %p98
      %p100 = scmp.ne.s32.totalorder %s91, %s92
      %p101 = scmp.eq.s32.totalorder %s23, 0
      %p102 = por %p100, %p101
      %p103 = scmp.ne.s32.totalorder %s91, %s92
      %p104 = scmp.eq.s32.totalorder %s24, 1
      %p105 = por %p103, %p104
      %p107 = scmp.ne.s32.totalorder %s92, %s106
      %p108 = scmp.eq.s32.totalorder %s24, 0
      %p109 = por %p107, %p108
      %s110 = ssub.s32 %s18, %s25
      %p111 = scmp.eq.s32.totalorder %s110, 0
      %s113 = sadd.s32 %s112, 1
      %s114 = scalar_select %p111, %s112, %s113
      %p117 = pneg %p111
      %p118 = scmp.eq.s32.totalorder %s18, 1
      %p119 = por %p117, %p118
      %p120 = scmp.ne.s32.totalorder %s112, %s115
      %p121 = scmp.eq.s32.totalorder %s18, 0
      %p122 = por %p120, %p121
      %p123 = scmp.ne.s32.totalorder %s112, %s115
      %p124 = scmp.eq.s32.totalorder %s23, 1
      %p125 = por %p123, %p124
      %p126 = scmp.ne.s32.totalorder %s115, %s116
      %p127 = scmp.eq.s32.totalorder %s23, 0
      %p128 = por %p126, %p127
      %p129 = scmp.ne.s32.totalorder %s115, %s116
      %p130 = scmp.eq.s32.totalorder %s24, 1
      %p131 = por %p129, %p130
      %p133 = scmp.ne.s32.totalorder %s116, %s132
      %p134 = scmp.eq.s32.totalorder %s24, 0
      %p135 = por %p133, %p134
      %s136 = ssub.s32 %s18, %s25
      %p137 = scmp.eq.s32.totalorder %s136, 0
      %s139 = sadd.s32 %s138, 1
      %s140 = scalar_select %p137, %s138, %s139
      %p143 = pneg %p137
      %p144 = scmp.eq.s32.totalorder %s18, 1
      %p145 = por %p143, %p144
      %p146 = scmp.ne.s32.totalorder %s138, %s141
      %p147 = scmp.eq.s32.totalorder %s18, 0
      %p148 = por %p146, %p147
      %p149 = scmp.ne.s32.totalorder %s138, %s141
      %p150 = scmp.eq.s32.totalorder %s23, 1
      %p151 = por %p149, %p150
      %p152 = scmp.ne.s32.totalorder %s141, %s142
      %p153 = scmp.eq.s32.totalorder %s23, 0
      %p154 = por %p152, %p153
      %p155 = scmp.ne.s32.totalorder %s141, %s142
      %p156 = scmp.eq.s32.totalorder %s24, 1
      %p157 = por %p155, %p156
      %p159 = scmp.ne.s32.totalorder %s142, %s158
      %p160 = scmp.eq.s32.totalorder %s24, 0
      %p161 = por %p159, %p160
      %p162 = scmp.le.s32.totalorder 1, %s18
      %p163 = scmp.lt.s32.totalorder %s18, 3
      %p164 = pnand %p162, %p163
      %p165 = pneg %p164
      // Predicated region
      $region9: #{residual_forward.1} parent=5 // pred_check
        _
      $region10: #{residual_forward.1} parent=5 // pred_check_branch
        %167 = sbr.rel (%p164) target = $region12
      $region11: #{residual_forward.1} parent=5 // pred_region
        %s168 = ssub.s32 %s18, 1
        // Predicated region
        $region13: #{residual_forward.1} parent=11 // pred_check
          %p169 = pneg %p39
        $region14: #{residual_forward.1} parent=11 // pred_check_branch
          %171 = sbr.rel (%p169) target = $region16
        $region15: #{residual_forward.1} parent=11 // pred_region
          %s173 = ssub.s32 512, 512
          %174 = vsyncadd [#allocation4], %s173
          %s175 = sshll.u32 [#allocation3], 4
          %s176 = int_to_ptr.vmem [resolvable:$true] %s175
          %181 = dma.hbm_to_vmem [thread:$0]  %s0, 512, %s176, [#allocation4], 128, 128, 8
        $region16: #{residual_forward.1} parent=11 // pred_fallthru
          _
        // Predicated region
        $region17: #{residual_forward.1} parent=11 // pred_check
          %p182 = pneg %p60
        $region18: #{residual_forward.1} parent=11 // pred_check_branch
          %184 = sbr.rel (%p182) target = $region20
        $region19: #{residual_forward.1} parent=11 // pred_region
          _
        $region20: #{residual_forward.1} parent=11 // pred_fallthru
          _
        // Predicated region
        $region21: #{residual_forward.1} parent=11 // pred_check
          %p185 = pneg %p81
        $region22: #{residual_forward.1} parent=11 // pred_check_branch
          %187 = sbr.rel (%p185) target = $region24
        $region23: #{residual_forward.1} parent=11 // pred_region
          _
        $region24: #{residual_forward.1} parent=11 // pred_fallthru
          _
        // Predicated region
        $region25: #{residual_forward.1} parent=11 // pred_check
          %p188 = pneg %p102
        $region26: #{residual_forward.1} parent=11 // pred_check_branch
          %190 = sbr.rel (%p188) target = $region28
        $region27: #{residual_forward.1} parent=11 // pred_region
          _
        $region28: #{residual_forward.1} parent=11 // pred_fallthru
          _
      $region12: #{residual_forward.1} parent=5 // pred_fallthru
        _
      %p191 = scmp.lt.s32.totalorder %s18, 2
      // Predicated region
      $region29: #{residual_forward.1} parent=5 // pred_check
        %p192 = pneg %p191
      $region30: #{residual_forward.1} parent=5 // pred_check_branch
        %194 = sbr.rel (%p192) target = $region32
      $region31: #{residual_forward.1} parent=5 // pred_region
        // Predicated region
        $region33: #{residual_forward.1} parent=31 // pred_check
          %p195 = pneg %p122
        $region34: #{residual_forward.1} parent=31 // pred_check_branch
          %197 = sbr.rel (%p195) target = $region36
        $region35: #{residual_forward.1} parent=31 // pred_region
          %s198 = sand.u32 %s112, 1
          %s199 = scalar_lea.sflag [#allocation7], %s198
          %s200 = sand.u32 %s112, 1
          %s201 = smul.addr %s200, 256
          %s202 = scalar_lea.vmem [#allocation6], %s201
          %s204 = ssub.s32 4096, 4096
          %205 = vsyncadd %s199, %s204
          %s206 = smul.addr %s18, 32
          %s207 = smul.addr %s206, 128
          %s208 = scalar_lea.hbm %s4, %s207
          %s209 = sshll.u32 %s202, 4
          %s210 = int_to_ptr.vmem [resolvable:$true] %s209
          %215 = dma.hbm_to_vmem [thread:$0]  %s208, 4096, %s210, %s199, 128, 128, 8
        $region36: #{residual_forward.1} parent=31 // pred_fallthru
          _
      $region32: #{residual_forward.1} parent=5 // pred_fallthru
        _
      %p216 = scmp.le.s32.totalorder 1, %s18
      %p217 = scmp.lt.s32.totalorder %s18, 3
      %p218 = pnand %p216, %p217
      %p219 = pneg %p218
      // Predicated region
      $region37: #{residual_forward.1} parent=5 // pred_check
        _
      $region38: #{residual_forward.1} parent=5 // pred_check_branch
        %221 = sbr.rel (%p218) target = $region40
      $region39: #{residual_forward.1} parent=5 // pred_region
        %s222 = ssub.s32 %s18, 1
        // Predicated region
        $region41: #{residual_forward.1} parent=39 // pred_check
          %p223 = pneg %p39
        $region42: #{residual_forward.1} parent=39 // pred_check_branch
          %225 = sbr.rel (%p223) target = $region44
        $region43: #{residual_forward.1} parent=39 // pred_region
          %226 = dma.done [#allocation4], 512
        $region44: #{residual_forward.1} parent=39 // pred_fallthru
          _
        %s227 = sand.u32 %s115, 1
        %s228 = scalar_lea.sflag [#allocation7], %s227
        %s229 = sand.u32 %s115, 1
        %s230 = smul.addr %s229, 256
        %s231 = scalar_lea.vmem [#allocation6], %s230
        // Predicated region
        $region45: #{residual_forward.1} parent=39 // pred_check
          %p232 = pneg %p128
        $region46: #{residual_forward.1} parent=39 // pred_check_branch
          %234 = sbr.rel (%p232) target = $region48
        $region47: #{residual_forward.1} parent=39 // pred_region
          %235 = dma.done %s228, 4096
        $region48: #{residual_forward.1} parent=39 // pred_fallthru
          _
        %p236 = pneg %p39
        %p237 = pneg %p36
        %p238 = pneg %p60
        %p239 = pneg %p57
        %p240 = pneg %p81
        %p241 = pneg %p78
        %p242 = pneg %p102
        %p243 = pneg %p99
        %s244 = sand.u32 %s115, 1
        %s245 = scalar_lea.sflag [#allocation7], %s244
        %s246 = sand.u32 %s115, 1
        %s247 = smul.addr %s246, 256
        %s248 = scalar_lea.vmem [#allocation6], %s247
        %p249 = pneg %p128
        %p250 = pneg %p125
        %p251 = pneg %p154
        %p252 = pneg %p151
        %s253 = sand.u32 %s141, 1
        %s254 = scalar_lea.sflag [#allocation5], %s253
        %s255 = sand.u32 %s141, 1
        %s256 = smul.addr %s255, 256
        %s257 = scalar_lea.vmem [#allocation8], %s256
        %v258 = vld [vmem:[%s231] sm:$0xff]
        %v259 = vld [vmem:[%s231 + $0x8] sm:$0xff]
        %v260 = vld [vmem:[%s231 + $0x10] sm:$0xff]
        %v261 = vld [vmem:[%s231 + $0x18] sm:$0xff]
        %v262 = vld [vmem:[%s231 + $0x20] sm:$0xff]
        %v263 = vld [vmem:[%s231 + $0x28] sm:$0xff]
        %v264 = vld [vmem:[%s231 + $0x30] sm:$0xff]
        %v265 = vld [vmem:[%s231 + $0x38] sm:$0xff]
        %v266 = vld [vmem:[%s231 + $0x40] sm:$0xff]
        %v267 = vld [vmem:[%s231 + $0x48] sm:$0xff]
        %v268 = vld [vmem:[%s231 + $0x50] sm:$0xff]
        %v269 = vld [vmem:[%s231 + $0x58] sm:$0xff]
        %v270 = vld [vmem:[%s231 + $0x60] sm:$0xff]
        %v271 = vld [vmem:[%s231 + $0x68] sm:$0xff]
        %v272 = vld [vmem:[%s231 + $0x70] sm:$0xff]
        %v273 = vld [vmem:[%s231 + $0x78] sm:$0xff]
        %v274 = vld [vmem:[%s231 + $0x80] sm:$0xff]
        %v275 = vld [vmem:[%s231 + $0x88] sm:$0xff]
        %v276 = vld [vmem:[%s231 + $0x90] sm:$0xff]
        %v277 = vld [vmem:[%s231 + $0x98] sm:$0xff]
        %v278 = vld [vmem:[%s231 + $0xa0] sm:$0xff]
        %v279 = vld [vmem:[%s231 + $0xa8] sm:$0xff]
        %v280 = vld [vmem:[%s231 + $0xb0] sm:$0xff]
        %v281 = vld [vmem:[%s231 + $0xb8] sm:$0xff]
        %v282 = vld [vmem:[%s231 + $0xc0] sm:$0xff]
        %v283 = vld [vmem:[%s231 + $0xc8] sm:$0xff]
        %v284 = vld [vmem:[%s231 + $0xd0] sm:$0xff]
        %v285 = vld [vmem:[%s231 + $0xd8] sm:$0xff]
        %v286 = vld [vmem:[%s231 + $0xe0] sm:$0xff]
        %v287 = vld [vmem:[%s231 + $0xe8] sm:$0xff]
        %v288 = vld [vmem:[%s231 + $0xf0] sm:$0xff]
        %v289 = vld [vmem:[%s231 + $0xf8] sm:$0xff]
        %290 = vst [vmem:[#allocation2] sm:$0xff] 0.0
        %291 = vst [vmem:[#allocation2 + $0x8] sm:$0xff] 0.0
        %292 = vst [vmem:[#allocation2 + $0x10] sm:$0xf] 0.0
        %293 = vst [vmem:[#allocation2 + $0x18] sm:$0xff] 0.0
        %294 = vst [vmem:[#allocation2 + $0x20] sm:$0xff] 0.0
        %295 = vst [vmem:[#allocation2 + $0x28] sm:$0xf] 0.0
        %296 = vst [vmem:[#allocation2 + $0x30] sm:$0xff] 0.0
        %297 = vst [vmem:[#allocation2 + $0x38] sm:$0xff] 0.0
        %298 = vst [vmem:[#allocation2 + $0x40] sm:$0xf] 0.0
        %299 = vst [vmem:[#allocation2 + $0x48] sm:$0xff] 0.0
        %300 = vst [vmem:[#allocation2 + $0x50] sm:$0xff] 0.0
        %301 = vst [vmem:[#allocation2 + $0x58] sm:$0xf] 0.0
        %302 = vst [vmem:[#allocation2 + $0x60] sm:$0xff] 0.0
        %303 = vst [vmem:[#allocation2 + $0x68] sm:$0xff] 0.0
        %304 = vst [vmem:[#allocation2 + $0x70] sm:$0xf] 0.0
        %305 = vst [vmem:[#allocation2 + $0x78] sm:$0xff] 0.0
        %306 = vst [vmem:[#allocation2 + $0x80] sm:$0xff] 0.0
        %307 = vst [vmem:[#allocation2 + $0x88] sm:$0xf] 0.0
        %308 = vst [vmem:[#allocation2 + $0x90] sm:$0xff] 0.0
        %309 = vst [vmem:[#allocation2 + $0x98] sm:$0xff] 0.0
        %310 = vst [vmem:[#allocation2 + $0xa0] sm:$0xf] 0.0
        %311 = vst [vmem:[#allocation2 + $0xa8] sm:$0xff] 0.0
        %312 = vst [vmem:[#allocation2 + $0xb0] sm:$0xff] 0.0
        %313 = vst [vmem:[#allocation2 + $0xb8] sm:$0xf] 0.0
        %314 = vst [vmem:[#allocation2 + $0xc0] sm:$0xff] 0.0
        %315 = vst [vmem:[#allocation2 + $0xc8] sm:$0xff] 0.0
        %316 = vst [vmem:[#allocation2 + $0xd0] sm:$0xf] 0.0
        %317 = vst [vmem:[#allocation2 + $0xd8] sm:$0xff] 0.0
        %318 = vst [vmem:[#allocation2 + $0xe0] sm:$0xff] 0.0
        %319 = vst [vmem:[#allocation2 + $0xe8] sm:$0xf] 0.0
        %320 = vst [vmem:[#allocation2 + $0xf0] sm:$0xff] 0.0
        %321 = vst [vmem:[#allocation2 + $0xf8] sm:$0xff] 0.0
        %322 = vst [vmem:[#allocation2 + $0x100] sm:$0xf] 0.0
        %323 = vst [vmem:[#allocation2 + $0x108] sm:$0xff] 0.0
        %324 = vst [vmem:[#allocation2 + $0x110] sm:$0xff] 0.0
        %325 = vst [vmem:[#allocation2 + $0x118] sm:$0xf] 0.0
        %326 = vst [vmem:[#allocation2 + $0x120] sm:$0xff] 0.0
        %327 = vst [vmem:[#allocation2 + $0x128] sm:$0xff] 0.0
        %328 = vst [vmem:[#allocation2 + $0x130] sm:$0xf] 0.0
        %329 = vst [vmem:[#allocation2 + $0x138] sm:$0xff] 0.0
        %330 = vst [vmem:[#allocation2 + $0x140] sm:$0xff] 0.0
        %331 = vst [vmem:[#allocation2 + $0x148] sm:$0xf] 0.0
        %332 = vst [vmem:[#allocation2 + $0x150] sm:$0xff] 0.0
        %333 = vst [vmem:[#allocation2 + $0x158] sm:$0xff] 0.0
        %334 = vst [vmem:[#allocation2 + $0x160] sm:$0xf] 0.0
        %335 = vst [vmem:[#allocation2 + $0x168] sm:$0xff] 0.0
        %336 = vst [vmem:[#allocation2 + $0x170] sm:$0xff] 0.0
        %337 = vst [vmem:[#allocation2 + $0x178] sm:$0xf] 0.0
        %338 = vst [vmem:[#allocation2 + $0x180] sm:$0xff] 0.0
        %339 = vst [vmem:[#allocation2 + $0x188] sm:$0xff] 0.0
        %340 = vst [vmem:[#allocation2 + $0x190] sm:$0xf] 0.0
        %341 = vst [vmem:[#allocation2 + $0x198] sm:$0xff] 0.0
        %342 = vst [vmem:[#allocation2 + $0x1a0] sm:$0xff] 0.0
        %343 = vst [vmem:[#allocation2 + $0x1a8] sm:$0xf] 0.0
        %344 = vst [vmem:[#allocation2 + $0x1b0] sm:$0xff] 0.0
        %345 = vst [vmem:[#allocation2 + $0x1b8] sm:$0xff] 0.0
        %346 = vst [vmem:[#allocation2 + $0x1c0] sm:$0xf] 0.0
        %347 = vst [vmem:[#allocation2 + $0x1c8] sm:$0xff] 0.0
        %348 = vst [vmem:[#allocation2 + $0x1d0] sm:$0xff] 0.0
        %349 = vst [vmem:[#allocation2 + $0x1d8] sm:$0xf] 0.0
        %s350 = scalar_lea.vmem [#allocation2], 48
        %351 = vst [vmem:[%s350 + $0x2] sm:$0xff] %v258
        %352 = vst [vmem:[%s350 + $0xa] sm:$0xff] %v259
        %353 = vst [vmem:[%s350 + $0x1a] sm:$0xff] %v260
        %354 = vst [vmem:[%s350 + $0x22] sm:$0xff] %v261
        %355 = vst [vmem:[%s350 + $0x32] sm:$0xff] %v262
        %356 = vst [vmem:[%s350 + $0x3a] sm:$0xff] %v263
        %357 = vst [vmem:[%s350 + $0x4a] sm:$0xff] %v264
        %358 = vst [vmem:[%s350 + $0x52] sm:$0xff] %v265
        %359 = vst [vmem:[%s350 + $0x62] sm:$0xff] %v266
        %360 = vst [vmem:[%s350 + $0x6a] sm:$0xff] %v267
        %361 = vst [vmem:[%s350 + $0x7a] sm:$0xff] %v268
        %362 = vst [vmem:[%s350 + $0x82] sm:$0xff] %v269
        %363 = vst [vmem:[%s350 + $0x92] sm:$0xff] %v270
        %364 = vst [vmem:[%s350 + $0x9a] sm:$0xff] %v271
        %365 = vst [vmem:[%s350 + $0xaa] sm:$0xff] %v272
        %366 = vst [vmem:[%s350 + $0xb2] sm:$0xff] %v273
        %367 = vst [vmem:[%s350 + $0xc2] sm:$0xff] %v274
        %368 = vst [vmem:[%s350 + $0xca] sm:$0xff] %v275
        %369 = vst [vmem:[%s350 + $0xda] sm:$0xff] %v276
        %370 = vst [vmem:[%s350 + $0xe2] sm:$0xff] %v277
        %371 = vst [vmem:[%s350 + $0xf2] sm:$0xff] %v278
        %372 = vst [vmem:[%s350 + $0xfa] sm:$0xff] %v279
        %373 = vst [vmem:[%s350 + $0x10a] sm:$0xff] %v280
        %374 = vst [vmem:[%s350 + $0x112] sm:$0xff] %v281
        %375 = vst [vmem:[%s350 + $0x122] sm:$0xff] %v282
        %376 = vst [vmem:[%s350 + $0x12a] sm:$0xff] %v283
        %377 = vst [vmem:[%s350 + $0x13a] sm:$0xff] %v284
        %378 = vst [vmem:[%s350 + $0x142] sm:$0xff] %v285
        %379 = vst [vmem:[%s350 + $0x152] sm:$0xff] %v286
        %380 = vst [vmem:[%s350 + $0x15a] sm:$0xff] %v287
        %381 = vst [vmem:[%s350 + $0x16a] sm:$0xff] %v288
        %382 = vst [vmem:[%s350 + $0x172] sm:$0xff] %v289
        %v383 = vld [vmem:[#allocation2] sm:$0xff]
        %v384 = vld [vmem:[#allocation2 + $0x8] sm:$0xff]
        %v385 = vld [vmem:[#allocation2 + $0x10] sm:$0xf]
        %v386 = vld [vmem:[#allocation2 + $0x18] sm:$0xff]
        %v387 = vld [vmem:[#allocation2 + $0x20] sm:$0xff]
        %v388 = vld [vmem:[#allocation2 + $0x28] sm:$0xf]
        %v389 = vld [vmem:[#allocation2 + $0x30] sm:$0xff]
        %v390 = vld [vmem:[#allocation2 + $0x38] sm:$0xff]
        %v391 = vld [vmem:[#allocation2 + $0x40] sm:$0xf]
        %v392 = vld [vmem:[#allocation2 + $0x48] sm:$0xff]
        %v393 = vld [vmem:[#allocation2 + $0x50] sm:$0xff]
        %v394 = vld [vmem:[#allocation2 + $0x58] sm:$0xf]
        %v395 = vld [vmem:[#allocation2 + $0x60] sm:$0xff]
        %v396 = vld [vmem:[#allocation2 + $0x68] sm:$0xff]
        %v397 = vld [vmem:[#allocation2 + $0x70] sm:$0xf]
        %v398 = vld [vmem:[#allocation2 + $0x78] sm:$0xff]
        %v399 = vld [vmem:[#allocation2 + $0x80] sm:$0xff]
        %v400 = vld [vmem:[#allocation2 + $0x88] sm:$0xf]
        %v401 = vld [vmem:[#allocation2 + $0x90] sm:$0xff]
        %v402 = vld [vmem:[#allocation2 + $0x98] sm:$0xff]
        %v403 = vld [vmem:[#allocation2 + $0xa0] sm:$0xf]
        %v404 = vld [vmem:[#allocation2 + $0xa8] sm:$0xff]
        %v405 = vld [vmem:[#allocation2 + $0xb0] sm:$0xff]
        %v406 = vld [vmem:[#allocation2 + $0xb8] sm:$0xf]
        %v407 = vld [vmem:[#allocation2 + $0xc0] sm:$0xff]
        %v408 = vld [vmem:[#allocation2 + $0xc8] sm:$0xff]
        %v409 = vld [vmem:[#allocation2 + $0xd0] sm:$0xf]
        %v410 = vld [vmem:[#allocation2 + $0xd8] sm:$0xff]
        %v411 = vld [vmem:[#allocation2 + $0xe0] sm:$0xff]
        %v412 = vld [vmem:[#allocation2 + $0xe8] sm:$0xf]
        %v413 = vld [vmem:[#allocation2 + $0xf0] sm:$0xff]
        %v414 = vld [vmem:[#allocation2 + $0xf8] sm:$0xff]
        %v415 = vld [vmem:[#allocation2 + $0x100] sm:$0xf]
        %v416 = vld [vmem:[#allocation2 + $0x108] sm:$0xff]
        %v417 = vld [vmem:[#allocation2 + $0x110] sm:$0xff]
        %v418 = vld [vmem:[#allocation2 + $0x118] sm:$0xf]
        %v419 = vld [vmem:[#allocation2 + $0x120] sm:$0xff]
        %v420 = vld [vmem:[#allocation2 + $0x128] sm:$0xff]
        %v421 = vld [vmem:[#allocation2 + $0x130] sm:$0xf]
        %v422 = vld [vmem:[#allocation2 + $0x138] sm:$0xff]
        %v423 = vld [vmem:[#allocation2 + $0x140] sm:$0xff]
        %v424 = vld [vmem:[#allocation2 + $0x148] sm:$0xf]
        %v425 = vld [vmem:[#allocation2 + $0x150] sm:$0xff]
        %v426 = vld [vmem:[#allocation2 + $0x158] sm:$0xff]
        %v427 = vld [vmem:[#allocation2 + $0x160] sm:$0xf]
        %v428 = vld [vmem:[#allocation2 + $0x168] sm:$0xff]
        %v429 = vld [vmem:[#allocation2 + $0x170] sm:$0xff]
        %v430 = vld [vmem:[#allocation2 + $0x178] sm:$0xf]
        %v431 = vld [vmem:[#allocation2 + $0x180] sm:$0xff]
        %v432 = vld [vmem:[#allocation2 + $0x188] sm:$0xff]
        %v433 = vld [vmem:[#allocation2 + $0x190] sm:$0xf]
        %v434 = vld [vmem:[#allocation2 + $0x198] sm:$0xff]
        %v435 = vld [vmem:[#allocation2 + $0x1a0] sm:$0xff]
        %v436 = vld [vmem:[#allocation2 + $0x1a8] sm:$0xf]
        %v437 = vld [vmem:[#allocation2 + $0x1b0] sm:$0xff]
        %v438 = vld [vmem:[#allocation2 + $0x1b8] sm:$0xff]
        %v439 = vld [vmem:[#allocation2 + $0x1c0] sm:$0xf]
        %v440 = vld [vmem:[#allocation2 + $0x1c8] sm:$0xff]
        %v441 = vld [vmem:[#allocation2 + $0x1d0] sm:$0xff]
        %v442 = vld [vmem:[#allocation2 + $0x1d8] sm:$0xf]
        %v443 = vld [vmem:[#allocation3] sm:$0xff]
        %v444 = vld [vmem:[#allocation3 + $0x8] sm:$0xff]
        %v445 = vld [vmem:[#allocation3 + $0x10] sm:$0xff]
        %v446 = vld [vmem:[#allocation3 + $0x18] sm:$0x1]
        %v447 = vlaneseq
        %v448 = vshrl.u32 %v447, 7
        %v449 = vsub.s32 0, %v448
        %v450 = vrot.slane %v443, %v449
        %v451 = vmul.f32 %v450, %v383
        %v452 = vmul.f32 %v450, %v384
        %v453 = vmul.f32 %v450, %v386
        %v454 = vmul.f32 %v450, %v387
        %v455 = vmul.f32 %v450, %v389
        %v456 = vmul.f32 %v450, %v390
        %v457 = vmul.f32 %v450, %v392
        %v458 = vmul.f32 %v450, %v393
        %v459 = vmul.f32 %v450, %v395
        %v460 = vmul.f32 %v450, %v396
        %v461 = vmul.f32 %v450, %v398
        %v462 = vmul.f32 %v450, %v399
        %v463 = vmul.f32 %v450, %v401
        %v464 = vmul.f32 %v450, %v402
        %v465 = vmul.f32 %v450, %v404
        %v466 = vmul.f32 %v450, %v405
        %v467 = vmul.f32 %v450, %v407
        %v468 = vmul.f32 %v450, %v408
        %v469 = vmul.f32 %v450, %v410
        %v470 = vmul.f32 %v450, %v411
        %v471 = vmul.f32 %v450, %v413
        %v472 = vmul.f32 %v450, %v414
        %v473 = vmul.f32 %v450, %v416
        %v474 = vmul.f32 %v450, %v417
        %v475 = vmul.f32 %v450, %v419
        %v476 = vmul.f32 %v450, %v420
        %v477 = vmul.f32 %v450, %v422
        %v478 = vmul.f32 %v450, %v423
        %v479 = vmul.f32 %v450, %v425
        %v480 = vmul.f32 %v450, %v426
        %v481 = vmul.f32 %v450, %v428
        %v482 = vmul.f32 %v450, %v429
        %v483 = vadd.f32 %v451, 0.0
        %v484 = vadd.f32 %v452, 0.0
        %v485 = vadd.f32 %v453, 0.0
        %v486 = vadd.f32 %v454, 0.0
        %v487 = vadd.f32 %v455, 0.0
        %v488 = vadd.f32 %v456, 0.0
        %v489 = vadd.f32 %v457, 0.0
        %v490 = vadd.f32 %v458, 0.0
        %v491 = vadd.f32 %v459, 0.0
        %v492 = vadd.f32 %v460, 0.0
        %v493 = vadd.f32 %v461, 0.0
        %v494 = vadd.f32 %v462, 0.0
        %v495 = vadd.f32 %v463, 0.0
        %v496 = vadd.f32 %v464, 0.0
        %v497 = vadd.f32 %v465, 0.0
        %v498 = vadd.f32 %v466, 0.0
        %v499 = vadd.f32 %v467, 0.0
        %v500 = vadd.f32 %v468, 0.0
        %v501 = vadd.f32 %v469, 0.0
        %v502 = vadd.f32 %v470, 0.0
        %v503 = vadd.f32 %v471, 0.0
        %v504 = vadd.f32 %v472, 0.0
        %v505 = vadd.f32 %v473, 0.0
        %v506 = vadd.f32 %v474, 0.0
        %v507 = vadd.f32 %v475, 0.0
        %v508 = vadd.f32 %v476, 0.0
        %v509 = vadd.f32 %v477, 0.0
        %v510 = vadd.f32 %v478, 0.0
        %v511 = vadd.f32 %v479, 0.0
        %v512 = vadd.f32 %v480, 0.0
        %v513 = vadd.f32 %v481, 0.0
        %v514 = vadd.f32 %v482, 0.0
        %v515 = vlaneseq
        %v516 = vshrl.u32 %v515, 7
        %v517 = vsub.s32 1, %v516
        %v518 = vrot.slane %v443, %v517
        %v519 = vmul.f32 %v518, %v383
        %v520 = vmul.f32 %v518, %v384
        %v521 = vmul.f32 %v518, %v385
        %v522 = vmul.f32 %v518, %v386
        %v523 = vmul.f32 %v518, %v387
        %v524 = vmul.f32 %v518, %v388
        %v525 = vmul.f32 %v518, %v389
        %v526 = vmul.f32 %v518, %v390
        %v527 = vmul.f32 %v518, %v391
        %v528 = vmul.f32 %v518, %v392
        %v529 = vmul.f32 %v518, %v393
        %v530 = vmul.f32 %v518, %v394
        %v531 = vmul.f32 %v518, %v395
        %v532 = vmul.f32 %v518, %v396
        %v533 = vmul.f32 %v518, %v397
        %v534 = vmul.f32 %v518, %v398
        %v535 = vmul.f32 %v518, %v399
        %v536 = vmul.f32 %v518, %v400
        %v537 = vmul.f32 %v518, %v401
        %v538 = vmul.f32 %v518, %v402
        %v539 = vmul.f32 %v518, %v403
        %v540 = vmul.f32 %v518, %v404
        %v541 = vmul.f32 %v518, %v405
        %v542 = vmul.f32 %v518, %v406
        %v543 = vmul.f32 %v518, %v407
        %v544 = vmul.f32 %v518, %v408
        %v545 = vmul.f32 %v518, %v409
        %v546 = vmul.f32 %v518, %v410
        %v547 = vmul.f32 %v518, %v411
        %v548 = vmul.f32 %v518, %v412
        %v549 = vmul.f32 %v518, %v413
        %v550 = vmul.f32 %v518, %v414
        %v551 = vmul.f32 %v518, %v415
        %v552 = vmul.f32 %v518, %v416
        %v553 = vmul.f32 %v518, %v417
        %v554 = vmul.f32 %v518, %v418
        %v555 = vmul.f32 %v518, %v419
        %v556 = vmul.f32 %v518, %v420
        %v557 = vmul.f32 %v518, %v421
        %v558 = vmul.f32 %v518, %v422
        %v559 = vmul.f32 %v518, %v423
        %v560 = vmul.f32 %v518, %v424
        %v561 = vmul.f32 %v518, %v425
        %v562 = vmul.f32 %v518, %v426
        %v563 = vmul.f32 %v518, %v427
        %v564 = vmul.f32 %v518, %v428
        %v565 = vmul.f32 %v518, %v429
        %v566 = vmul.f32 %v518, %v430
        %vm615 = vcmask 1046528
        %v616 = vrot.slane %v519, 1
        %v617 = vrot.slane %v520, 1
        %v618 = vsel %vm615, %v616, %v617
        %v619 = vrot.slane %v521, 1
        %v620 = vsel %vm615, %v617, %v619
        %v621 = vrot.slane %v522, 1
        %v622 = vrot.slane %v523, 1
        %v623 = vsel %vm615, %v621, %v622
        %v624 = vrot.slane %v524, 1
        %v625 = vsel %vm615, %v622, %v624
        %v626 = vrot.slane %v525, 1
        %v627 = vrot.slane %v526, 1
        %v628 = vsel %vm615, %v626, %v627
        %v629 = vrot.slane %v527, 1
        %v630 = vsel %vm615, %v627, %v629
        %v631 = vrot.slane %v528, 1
        %v632 = vrot.slane %v529, 1
        %v633 = vsel %vm615, %v631, %v632
        %v634 = vrot.slane %v530, 1
        %v635 = vsel %vm615, %v632, %v634
        %v636 = vrot.slane %v531, 1
        %v637 = vrot.slane %v532, 1
        %v638 = vsel %vm615, %v636, %v637
        %v639 = vrot.slane %v533, 1
        %v640 = vsel %vm615, %v637, %v639
        %v641 = vrot.slane %v534, 1
        %v642 = vrot.slane %v535, 1
        %v643 = vsel %vm615, %v641, %v642
        %v644 = vrot.slane %v536, 1
        %v645 = vsel %vm615, %v642, %v644
        %v646 = vrot.slane %v537, 1
        %v647 = vrot.slane %v538, 1
        %v648 = vsel %vm615, %v646, %v647
        %v649 = vrot.slane %v539, 1
        %v650 = vsel %vm615, %v647, %v649
        %v651 = vrot.slane %v540, 1
        %v652 = vrot.slane %v541, 1
        %v653 = vsel %vm615, %v651, %v652
        %v654 = vrot.slane %v542, 1
        %v655 = vsel %vm615, %v652, %v654
        %v656 = vrot.slane %v543, 1
        %v657 = vrot.slane %v544, 1
        %v658 = vsel %vm615, %v656, %v657
        %v659 = vrot.slane %v545, 1
        %v660 = vsel %vm615, %v657, %v659
        %v661 = vrot.slane %v546, 1
        %v662 = vrot.slane %v547, 1
        %v663 = vsel %vm615, %v661, %v662
        %v664 = vrot.slane %v548, 1
        %v665 = vsel %vm615, %v662, %v664
        %v666 = vrot.slane %v549, 1
        %v667 = vrot.slane %v550, 1
        %v668 = vsel %vm615, %v666, %v667
        %v669 = vrot.slane %v551, 1
        %v670 = vsel %vm615, %v667, %v669
        %v671 = vrot.slane %v552, 1
        %v672 = vrot.slane %v553, 1
        %v673 = vsel %vm615, %v671, %v672
        %v674 = vrot.slane %v554, 1
        %v675 = vsel %vm615, %v672, %v674
        %v676 = vrot.slane %v555, 1
        %v677 = vrot.slane %v556, 1
        %v678 = vsel %vm615, %v676, %v677
        %v679 = vrot.slane %v557, 1
        %v680 = vsel %vm615, %v677, %v679
        %v681 = vrot.slane %v558, 1
        %v682 = vrot.slane %v559, 1
        %v683 = vsel %vm615, %v681, %v682
        %v684 = vrot.slane %v560, 1
        %v685 = vsel %vm615, %v682, %v684
        %v686 = vrot.slane %v561, 1
        %v687 = vrot.slane %v562, 1
        %v688 = vsel %vm615, %v686, %v687
        %v689 = vrot.slane %v563, 1
        %v690 = vsel %vm615, %v687, %v689
        %v691 = vrot.slane %v564, 1
        %v692 = vrot.slane %v565, 1
        %v693 = vsel %vm615, %v691, %v692
        %v694 = vrot.slane %v566, 1
        %v695 = vsel %vm615, %v692, %v694
        %v728 = vadd.f32 %v483, %v618
        %v729 = vadd.f32 %v484, %v620
        %v730 = vadd.f32 %v485, %v623
        %v731 = vadd.f32 %v486, %v625
        %v732 = vadd.f32 %v487, %v628
        %v733 = vadd.f32 %v488, %v630
        %v734 = vadd.f32 %v489, %v633
        %v735 = vadd.f32 %v490, %v635
        %v736 = vadd.f32 %v491, %v638
        %v737 = vadd.f32 %v492, %v640
        %v738 = vadd.f32 %v493, %v643
        %v739 = vadd.f32 %v494, %v645
        %v740 = vadd.f32 %v495, %v648
        %v741 = vadd.f32 %v496, %v650
        %v742 = vadd.f32 %v497, %v653
        %v743 = vadd.f32 %v498, %v655
        %v744 = vadd.f32 %v499, %v658
        %v745 = vadd.f32 %v500, %v660
        %v746 = vadd.f32 %v501, %v663
        %v747 = vadd.f32 %v502, %v665
        %v748 = vadd.f32 %v503, %v668
        %v749 = vadd.f32 %v504, %v670
        %v750 = vadd.f32 %v505, %v673
        %v751 = vadd.f32 %v506, %v675
        %v752 = vadd.f32 %v507, %v678
        %v753 = vadd.f32 %v508, %v680
        %v754 = vadd.f32 %v509, %v683
        %v755 = vadd.f32 %v510, %v685
        %v756 = vadd.f32 %v511, %v688
        %v757 = vadd.f32 %v512, %v690
        %v758 = vadd.f32 %v513, %v693
        %v759 = vadd.f32 %v514, %v695
        %v760 = vlaneseq
        %v761 = vshrl.u32 %v760, 7
        %v762 = vsub.s32 2, %v761
        %v763 = vrot.slane %v443, %v762
        %v764 = vmul.f32 %v763, %v383
        %v765 = vmul.f32 %v763, %v384
        %v766 = vmul.f32 %v763, %v385
        %v767 = vmul.f32 %v763, %v386
        %v768 = vmul.f32 %v763, %v387
        %v769 = vmul.f32 %v763, %v388
        %v770 = vmul.f32 %v763, %v389
        %v771 = vmul.f32 %v763, %v390
        %v772 = vmul.f32 %v763, %v391
        %v773 = vmul.f32 %v763, %v392
        %v774 = vmul.f32 %v763, %v393
        %v775 = vmul.f32 %v763, %v394
        %v776 = vmul.f32 %v763, %v395
        %v777 = vmul.f32 %v763, %v396
        %v778 = vmul.f32 %v763, %v397
        %v779 = vmul.f32 %v763, %v398
        %v780 = vmul.f32 %v763, %v399
        %v781 = vmul.f32 %v763, %v400
        %v782 = vmul.f32 %v763, %v401
        %v783 = vmul.f32 %v763, %v402
        %v784 = vmul.f32 %v763, %v403
        %v785 = vmul.f32 %v763, %v404
        %v786 = vmul.f32 %v763, %v405
        %v787 = vmul.f32 %v763, %v406
        %v788 = vmul.f32 %v763, %v407
        %v789 = vmul.f32 %v763, %v408
        %v790 = vmul.f32 %v763, %v409
        %v791 = vmul.f32 %v763, %v410
        %v792 = vmul.f32 %v763, %v411
        %v793 = vmul.f32 %v763, %v412
        %v794 = vmul.f32 %v763, %v413
        %v795 = vmul.f32 %v763, %v414
        %v796 = vmul.f32 %v763, %v415
        %v797 = vmul.f32 %v763, %v416
        %v798 = vmul.f32 %v763, %v417
        %v799 = vmul.f32 %v763, %v418
        %v800 = vmul.f32 %v763, %v419
        %v801 = vmul.f32 %v763, %v420
        %v802 = vmul.f32 %v763, %v421
        %v803 = vmul.f32 %v763, %v422
        %v804 = vmul.f32 %v763, %v423
        %v805 = vmul.f32 %v763, %v424
        %v806 = vmul.f32 %v763, %v425
        %v807 = vmul.f32 %v763, %v426
        %v808 = vmul.f32 %v763, %v427
        %v809 = vmul.f32 %v763, %v428
        %v810 = vmul.f32 %v763, %v429
        %v811 = vmul.f32 %v763, %v430
        %vm860 = vcmask 1045504
        %v861 = vrot.slane %v764, 2
        %v862 = vrot.slane %v765, 2
        %v863 = vsel %vm860, %v861, %v862
        %v864 = vrot.slane %v766, 2
        %v865 = vsel %vm860, %v862, %v864
        %v866 = vrot.slane %v767, 2
        %v867 = vrot.slane %v768, 2
        %v868 = vsel %vm860, %v866, %v867
        %v869 = vrot.slane %v769, 2
        %v870 = vsel %vm860, %v867, %v869
        %v871 = vrot.slane %v770, 2
        %v872 = vrot.slane %v771, 2
        %v873 = vsel %vm860, %v871, %v872
        %v874 = vrot.slane %v772, 2
        %v875 = vsel %vm860, %v872, %v874
        %v876 = vrot.slane %v773, 2
        %v877 = vrot.slane %v774, 2
        %v878 = vsel %vm860, %v876, %v877
        %v879 = vrot.slane %v775, 2
        %v880 = vsel %vm860, %v877, %v879
        %v881 = vrot.slane %v776, 2
        %v882 = vrot.slane %v777, 2
        %v883 = vsel %vm860, %v881, %v882
        %v884 = vrot.slane %v778, 2
        %v885 = vsel %vm860, %v882, %v884
        %v886 = vrot.slane %v779, 2
        %v887 = vrot.slane %v780, 2
        %v888 = vsel %vm860, %v886, %v887
        %v889 = vrot.slane %v781, 2
        %v890 = vsel %vm860, %v887, %v889
        %v891 = vrot.slane %v782, 2
        %v892 = vrot.slane %v783, 2
        %v893 = vsel %vm860, %v891, %v892
        %v894 = vrot.slane %v784, 2
        %v895 = vsel %vm860, %v892, %v894
        %v896 = vrot.slane %v785, 2
        %v897 = vrot.slane %v786, 2
        %v898 = vsel %vm860, %v896, %v897
        %v899 = vrot.slane %v787, 2
        %v900 = vsel %vm860, %v897, %v899
        %v901 = vrot.slane %v788, 2
        %v902 = vrot.slane %v789, 2
        %v903 = vsel %vm860, %v901, %v902
        %v904 = vrot.slane %v790, 2
        %v905 = vsel %vm860, %v902, %v904
        %v906 = vrot.slane %v791, 2
        %v907 = vrot.slane %v792, 2
        %v908 = vsel %vm860, %v906, %v907
        %v909 = vrot.slane %v793, 2
        %v910 = vsel %vm860, %v907, %v909
        %v911 = vrot.slane %v794, 2
        %v912 = vrot.slane %v795, 2
        %v913 = vsel %vm860, %v911, %v912
        %v914 = vrot.slane %v796, 2
        %v915 = vsel %vm860, %v912, %v914
        %v916 = vrot.slane %v797, 2
        %v917 = vrot.slane %v798, 2
        %v918 = vsel %vm860, %v916, %v917
        %v919 = vrot.slane %v799, 2
        %v920 = vsel %vm860, %v917, %v919
        %v921 = vrot.slane %v800, 2
        %v922 = vrot.slane %v801, 2
        %v923 = vsel %vm860, %v921, %v922
        %v924 = vrot.slane %v802, 2
        %v925 = vsel %vm860, %v922, %v924
        %v926 = vrot.slane %v803, 2
        %v927 = vrot.slane %v804, 2
        %v928 = vsel %vm860, %v926, %v927
        %v929 = vrot.slane %v805, 2
        %v930 = vsel %vm860, %v927, %v929
        %v931 = vrot.slane %v806, 2
        %v932 = vrot.slane %v807, 2
        %v933 = vsel %vm860, %v931, %v932
        %v934 = vrot.slane %v808, 2
        %v935 = vsel %vm860, %v932, %v934
        %v936 = vrot.slane %v809, 2
        %v937 = vrot.slane %v810, 2
        %v938 = vsel %vm860, %v936, %v937
        %v939 = vrot.slane %v811, 2
        %v940 = vsel %vm860, %v937, %v939
        %v973 = vadd.f32 %v728, %v863
        %v974 = vadd.f32 %v729, %v865
        %v975 = vadd.f32 %v730, %v868
        %v976 = vadd.f32 %v731, %v870
        %v977 = vadd.f32 %v732, %v873
        %v978 = vadd.f32 %v733, %v875
        %v979 = vadd.f32 %v734, %v878
        %v980 = vadd.f32 %v735, %v880
        %v981 = vadd.f32 %v736, %v883
        %v982 = vadd.f32 %v737, %v885
        %v983 = vadd.f32 %v738, %v888
        %v984 = vadd.f32 %v739, %v890
        %v985 = vadd.f32 %v740, %v893
        %v986 = vadd.f32 %v741, %v895
        %v987 = vadd.f32 %v742, %v898
        %v988 = vadd.f32 %v743, %v900
        %v989 = vadd.f32 %v744, %v903
        %v990 = vadd.f32 %v745, %v905
        %v991 = vadd.f32 %v746, %v908
        %v992 = vadd.f32 %v747, %v910
        %v993 = vadd.f32 %v748, %v913
        %v994 = vadd.f32 %v749, %v915
        %v995 = vadd.f32 %v750, %v918
        %v996 = vadd.f32 %v751, %v920
        %v997 = vadd.f32 %v752, %v923
        %v998 = vadd.f32 %v753, %v925
        %v999 = vadd.f32 %v754, %v928
        %v1000 = vadd.f32 %v755, %v930
        %v1001 = vadd.f32 %v756, %v933
        %v1002 = vadd.f32 %v757, %v935
        %v1003 = vadd.f32 %v758, %v938
        %v1004 = vadd.f32 %v759, %v940
        %v1005 = vlaneseq
        %v1006 = vshrl.u32 %v1005, 7
        %v1007 = vsub.s32 3, %v1006
        %v1008 = vrot.slane %v443, %v1007
        %v1009 = vmul.f32 %v1008, %v383
        %v1010 = vmul.f32 %v1008, %v384
        %v1011 = vmul.f32 %v1008, %v385
        %v1012 = vmul.f32 %v1008, %v386
        %v1013 = vmul.f32 %v1008, %v387
        %v1014 = vmul.f32 %v1008, %v388
        %v1015 = vmul.f32 %v1008, %v389
        %v1016 = vmul.f32 %v1008, %v390
        %v1017 = vmul.f32 %v1008, %v391
        %v1018 = vmul.f32 %v1008, %v392
        %v1019 = vmul.f32 %v1008, %v393
        %v1020 = vmul.f32 %v1008, %v394
        %v1021 = vmul.f32 %v1008, %v395
        %v1022 = vmul.f32 %v1008, %v396
        %v1023 = vmul.f32 %v1008, %v397
        %v1024 = vmul.f32 %v1008, %v398
        %v1025 = vmul.f32 %v1008, %v399
        %v1026 = vmul.f32 %v1008, %v400
        %v1027 = vmul.f32 %v1008, %v401
        %v1028 = vmul.f32 %v1008, %v402
        %v1029 = vmul.f32 %v1008, %v403
        %v1030 = vmul.f32 %v1008, %v404
        %v1031 = vmul.f32 %v1008, %v405
        %v1032 = vmul.f32 %v1008, %v406
        %v1033 = vmul.f32 %v1008, %v407
        %v1034 = vmul.f32 %v1008, %v408
        %v1035 = vmul.f32 %v1008, %v409
        %v1036 = vmul.f32 %v1008, %v410
        %v1037 = vmul.f32 %v1008, %v411
        %v1038 = vmul.f32 %v1008, %v412
        %v1039 = vmul.f32 %v1008, %v413
        %v1040 = vmul.f32 %v1008, %v414
        %v1041 = vmul.f32 %v1008, %v415
        %v1042 = vmul.f32 %v1008, %v416
        %v1043 = vmul.f32 %v1008, %v417
        %v1044 = vmul.f32 %v1008, %v418
        %v1045 = vmul.f32 %v1008, %v419
        %v1046 = vmul.f32 %v1008, %v420
        %v1047 = vmul.f32 %v1008, %v421
        %v1048 = vmul.f32 %v1008, %v422
        %v1049 = vmul.f32 %v1008, %v423
        %v1050 = vmul.f32 %v1008, %v424
        %v1051 = vmul.f32 %v1008, %v425
        %v1052 = vmul.f32 %v1008, %v426
        %v1053 = vmul.f32 %v1008, %v427
        %v1054 = vmul.f32 %v1008, %v428
        %v1055 = vmul.f32 %v1008, %v429
        %v1056 = vmul.f32 %v1008, %v430
        %vm1105 = vcmask 1044480
        %v1106 = vrot.slane %v1009, 3
        %v1107 = vrot.slane %v1010, 3
        %v1108 = vsel %vm1105, %v1106, %v1107
        %v1109 = vrot.slane %v1011, 3
        %v1110 = vsel %vm1105, %v1107, %v1109
        %v1111 = vrot.slane %v1012, 3
        %v1112 = vrot.slane %v1013, 3
        %v1113 = vsel %vm1105, %v1111, %v1112
        %v1114 = vrot.slane %v1014, 3
        %v1115 = vsel %vm1105, %v1112, %v1114
        %v1116 = vrot.slane %v1015, 3
        %v1117 = vrot.slane %v1016, 3
        %v1118 = vsel %vm1105, %v1116, %v1117
        %v1119 = vrot.slane %v1017, 3
        %v1120 = vsel %vm1105, %v1117, %v1119
        %v1121 = vrot.slane %v1018, 3
        %v1122 = vrot.slane %v1019, 3
        %v1123 = vsel %vm1105, %v1121, %v1122
        %v1124 = vrot.slane %v1020, 3
        %v1125 = vsel %vm1105, %v1122, %v1124
        %v1126 = vrot.slane %v1021, 3
        %v1127 = vrot.slane %v1022, 3
        %v1128 = vsel %vm1105, %v1126, %v1127
        %v1129 = vrot.slane %v1023, 3
        %v1130 = vsel %vm1105, %v1127, %v1129
        %v1131 = vrot.slane %v1024, 3
        %v1132 = vrot.slane %v1025, 3
        %v1133 = vsel %vm1105, %v1131, %v1132
        %v1134 = vrot.slane %v1026, 3
        %v1135 = vsel %vm1105, %v1132, %v1134
        %v1136 = vrot.slane %v1027, 3
        %v1137 = vrot.slane %v1028, 3
        %v1138 = vsel %vm1105, %v1136, %v1137
        %v1139 = vrot.slane %v1029, 3
        %v1140 = vsel %vm1105, %v1137, %v1139
        %v1141 = vrot.slane %v1030, 3
        %v1142 = vrot.slane %v1031, 3
        %v1143 = vsel %vm1105, %v1141, %v1142
        %v1144 = vrot.slane %v1032, 3
        %v1145 = vsel %vm1105, %v1142, %v1144
        %v1146 = vrot.slane %v1033, 3
        %v1147 = vrot.slane %v1034, 3
        %v1148 = vsel %vm1105, %v1146, %v1147
        %v1149 = vrot.slane %v1035, 3
        %v1150 = vsel %vm1105, %v1147, %v1149
        %v1151 = vrot.slane %v1036, 3
        %v1152 = vrot.slane %v1037, 3
        %v1153 = vsel %vm1105, %v1151, %v1152
        %v1154 = vrot.slane %v1038, 3
        %v1155 = vsel %vm1105, %v1152, %v1154
        %v1156 = vrot.slane %v1039, 3
        %v1157 = vrot.slane %v1040, 3
        %v1158 = vsel %vm1105, %v1156, %v1157
        %v1159 = vrot.slane %v1041, 3
        %v1160 = vsel %vm1105, %v1157, %v1159
        %v1161 = vrot.slane %v1042, 3
        %v1162 = vrot.slane %v1043, 3
        %v1163 = vsel %vm1105, %v1161, %v1162
        %v1164 = vrot.slane %v1044, 3
        %v1165 = vsel %vm1105, %v1162, %v1164
        %v1166 = vrot.slane %v1045, 3
        %v1167 = vrot.slane %v1046, 3
        %v1168 = vsel %vm1105, %v1166, %v1167
        %v1169 = vrot.slane %v1047, 3
        %v1170 = vsel %vm1105, %v1167, %v1169
        %v1171 = vrot.slane %v1048, 3
        %v1172 = vrot.slane %v1049, 3
        %v1173 = vsel %vm1105, %v1171, %v1172
        %v1174 = vrot.slane %v1050, 3
        %v1175 = vsel %vm1105, %v1172, %v1174
        %v1176 = vrot.slane %v1051, 3
        %v1177 = vrot.slane %v1052, 3
        %v1178 = vsel %vm1105, %v1176, %v1177
        %v1179 = vrot.slane %v1053, 3
        %v1180 = vsel %vm1105, %v1177, %v1179
        %v1181 = vrot.slane %v1054, 3
        %v1182 = vrot.slane %v1055, 3
        %v1183 = vsel %vm1105, %v1181, %v1182
        %v1184 = vrot.slane %v1056, 3
        %v1185 = vsel %vm1105, %v1182, %v1184
        %v1218 = vadd.f32 %v973, %v1108
        %v1219 = vadd.f32 %v974, %v1110
        %v1220 = vadd.f32 %v975, %v1113
        %v1221 = vadd.f32 %v976, %v1115
        %v1222 = vadd.f32 %v977, %v1118
        %v1223 = vadd.f32 %v978, %v1120
        %v1224 = vadd.f32 %v979, %v1123
        %v1225 = vadd.f32 %v980, %v1125
        %v1226 = vadd.f32 %v981, %v1128
        %v1227 = vadd.f32 %v982, %v1130
        %v1228 = vadd.f32 %v983, %v1133
        %v1229 = vadd.f32 %v984, %v1135
        %v1230 = vadd.f32 %v985, %v1138
        %v1231 = vadd.f32 %v986, %v1140
        %v1232 = vadd.f32 %v987, %v1143
        %v1233 = vadd.f32 %v988, %v1145
        %v1234 = vadd.f32 %v989, %v1148
        %v1235 = vadd.f32 %v990, %v1150
        %v1236 = vadd.f32 %v991, %v1153
        %v1237 = vadd.f32 %v992, %v1155
        %v1238 = vadd.f32 %v993, %v1158
        %v1239 = vadd.f32 %v994, %v1160
        %v1240 = vadd.f32 %v995, %v1163
        %v1241 = vadd.f32 %v996, %v1165
        %v1242 = vadd.f32 %v997, %v1168
        %v1243 = vadd.f32 %v998, %v1170
        %v1244 = vadd.f32 %v999, %v1173
        %v1245 = vadd.f32 %v1000, %v1175
        %v1246 = vadd.f32 %v1001, %v1178
        %v1247 = vadd.f32 %v1002, %v1180
        %v1248 = vadd.f32 %v1003, %v1183
        %v1249 = vadd.f32 %v1004, %v1185
        %v1250 = vlaneseq
        %v1251 = vshrl.u32 %v1250, 7
        %v1252 = vsub.s32 4, %v1251
        %v1253 = vrot.slane %v443, %v1252
        %v1254 = vmul.f32 %v1253, %v383
        %v1255 = vmul.f32 %v1253, %v384
        %v1256 = vmul.f32 %v1253, %v385
        %v1257 = vmul.f32 %v1253, %v386
        %v1258 = vmul.f32 %v1253, %v387
        %v1259 = vmul.f32 %v1253, %v388
        %v1260 = vmul.f32 %v1253, %v389
        %v1261 = vmul.f32 %v1253, %v390
        %v1262 = vmul.f32 %v1253, %v391
        %v1263 = vmul.f32 %v1253, %v392
        %v1264 = vmul.f32 %v1253, %v393
        %v1265 = vmul.f32 %v1253, %v394
        %v1266 = vmul.f32 %v1253, %v395
        %v1267 = vmul.f32 %v1253, %v396
        %v1268 = vmul.f32 %v1253, %v397
        %v1269 = vmul.f32 %v1253, %v398
        %v1270 = vmul.f32 %v1253, %v399
        %v1271 = vmul.f32 %v1253, %v400
        %v1272 = vmul.f32 %v1253, %v401
        %v1273 = vmul.f32 %v1253, %v402
        %v1274 = vmul.f32 %v1253, %v403
        %v1275 = vmul.f32 %v1253, %v404
        %v1276 = vmul.f32 %v1253, %v405
        %v1277 = vmul.f32 %v1253, %v406
        %v1278 = vmul.f32 %v1253, %v407
        %v1279 = vmul.f32 %v1253, %v408
        %v1280 = vmul.f32 %v1253, %v409
        %v1281 = vmul.f32 %v1253, %v410
        %v1282 = vmul.f32 %v1253, %v411
        %v1283 = vmul.f32 %v1253, %v412
        %v1284 = vmul.f32 %v1253, %v413
        %v1285 = vmul.f32 %v1253, %v414
        %v1286 = vmul.f32 %v1253, %v415
        %v1287 = vmul.f32 %v1253, %v416
        %v1288 = vmul.f32 %v1253, %v417
        %v1289 = vmul.f32 %v1253, %v418
        %v1290 = vmul.f32 %v1253, %v419
        %v1291 = vmul.f32 %v1253, %v420
        %v1292 = vmul.f32 %v1253, %v421
        %v1293 = vmul.f32 %v1253, %v422
        %v1294 = vmul.f32 %v1253, %v423
        %v1295 = vmul.f32 %v1253, %v424
        %v1296 = vmul.f32 %v1253, %v425
        %v1297 = vmul.f32 %v1253, %v426
        %v1298 = vmul.f32 %v1253, %v427
        %v1299 = vmul.f32 %v1253, %v428
        %v1300 = vmul.f32 %v1253, %v429
        %v1301 = vmul.f32 %v1253, %v430
        %vm1350 = vcmask 1043456
        %v1351 = vrot.slane %v1254, 4
        %v1352 = vrot.slane %v1255, 4
        %v1353 = vsel %vm1350, %v1351, %v1352
        %v1354 = vrot.slane %v1256, 4
        %v1355 = vsel %vm1350, %v1352, %v1354
        %v1356 = vrot.slane %v1257, 4
        %v1357 = vrot.slane %v1258, 4
        %v1358 = vsel %vm1350, %v1356, %v1357
        %v1359 = vrot.slane %v1259, 4
        %v1360 = vsel %vm1350, %v1357, %v1359
        %v1361 = vrot.slane %v1260, 4
        %v1362 = vrot.slane %v1261, 4
        %v1363 = vsel %vm1350, %v1361, %v1362
        %v1364 = vrot.slane %v1262, 4
        %v1365 = vsel %vm1350, %v1362, %v1364
        %v1366 = vrot.slane %v1263, 4
        %v1367 = vrot.slane %v1264, 4
        %v1368 = vsel %vm1350, %v1366, %v1367
        %v1369 = vrot.slane %v1265, 4
        %v1370 = vsel %vm1350, %v1367, %v1369
        %v1371 = vrot.slane %v1266, 4
        %v1372 = vrot.slane %v1267, 4
        %v1373 = vsel %vm1350, %v1371, %v1372
        %v1374 = vrot.slane %v1268, 4
        %v1375 = vsel %vm1350, %v1372, %v1374
        %v1376 = vrot.slane %v1269, 4
        %v1377 = vrot.slane %v1270, 4
        %v1378 = vsel %vm1350, %v1376, %v1377
        %v1379 = vrot.slane %v1271, 4
        %v1380 = vsel %vm1350, %v1377, %v1379
        %v1381 = vrot.slane %v1272, 4
        %v1382 = vrot.slane %v1273, 4
        %v1383 = vsel %vm1350, %v1381, %v1382
        %v1384 = vrot.slane %v1274, 4
        %v1385 = vsel %vm1350, %v1382, %v1384
        %v1386 = vrot.slane %v1275, 4
        %v1387 = vrot.slane %v1276, 4
        %v1388 = vsel %vm1350, %v1386, %v1387
        %v1389 = vrot.slane %v1277, 4
        %v1390 = vsel %vm1350, %v1387, %v1389
        %v1391 = vrot.slane %v1278, 4
        %v1392 = vrot.slane %v1279, 4
        %v1393 = vsel %vm1350, %v1391, %v1392
        %v1394 = vrot.slane %v1280, 4
        %v1395 = vsel %vm1350, %v1392, %v1394
        %v1396 = vrot.slane %v1281, 4
        %v1397 = vrot.slane %v1282, 4
        %v1398 = vsel %vm1350, %v1396, %v1397
        %v1399 = vrot.slane %v1283, 4
        %v1400 = vsel %vm1350, %v1397, %v1399
        %v1401 = vrot.slane %v1284, 4
        %v1402 = vrot.slane %v1285, 4
        %v1403 = vsel %vm1350, %v1401, %v1402
        %v1404 = vrot.slane %v1286, 4
        %v1405 = vsel %vm1350, %v1402, %v1404
        %v1406 = vrot.slane %v1287, 4
        %v1407 = vrot.slane %v1288, 4
        %v1408 = vsel %vm1350, %v1406, %v1407
        %v1409 = vrot.slane %v1289, 4
        %v1410 = vsel %vm1350, %v1407, %v1409
        %v1411 = vrot.slane %v1290, 4
        %v1412 = vrot.slane %v1291, 4
        %v1413 = vsel %vm1350, %v1411, %v1412
        %v1414 = vrot.slane %v1292, 4
        %v1415 = vsel %vm1350, %v1412, %v1414
        %v1416 = vrot.slane %v1293, 4
        %v1417 = vrot.slane %v1294, 4
        %v1418 = vsel %vm1350, %v1416, %v1417
        %v1419 = vrot.slane %v1295, 4
        %v1420 = vsel %vm1350, %v1417, %v1419
        %v1421 = vrot.slane %v1296, 4
        %v1422 = vrot.slane %v1297, 4
        %v1423 = vsel %vm1350, %v1421, %v1422
        %v1424 = vrot.slane %v1298, 4
        %v1425 = vsel %vm1350, %v1422, %v1424
        %v1426 = vrot.slane %v1299, 4
        %v1427 = vrot.slane %v1300, 4
        %v1428 = vsel %vm1350, %v1426, %v1427
        %v1429 = vrot.slane %v1301, 4
        %v1430 = vsel %vm1350, %v1427, %v1429
        %v1463 = vadd.f32 %v1218, %v1353
        %v1464 = vadd.f32 %v1219, %v1355
        %v1465 = vadd.f32 %v1220, %v1358
        %v1466 = vadd.f32 %v1221, %v1360
        %v1467 = vadd.f32 %v1222, %v1363
        %v1468 = vadd.f32 %v1223, %v1365
        %v1469 = vadd.f32 %v1224, %v1368
        %v1470 = vadd.f32 %v1225, %v1370
        %v1471 = vadd.f32 %v1226, %v1373
        %v1472 = vadd.f32 %v1227, %v1375
        %v1473 = vadd.f32 %v1228, %v1378
        %v1474 = vadd.f32 %v1229, %v1380
        %v1475 = vadd.f32 %v1230, %v1383
        %v1476 = vadd.f32 %v1231, %v1385
        %v1477 = vadd.f32 %v1232, %v1388
        %v1478 = vadd.f32 %v1233, %v1390
        %v1479 = vadd.f32 %v1234, %v1393
        %v1480 = vadd.f32 %v1235, %v1395
        %v1481 = vadd.f32 %v1236, %v1398
        %v1482 = vadd.f32 %v1237, %v1400
        %v1483 = vadd.f32 %v1238, %v1403
        %v1484 = vadd.f32 %v1239, %v1405
        %v1485 = vadd.f32 %v1240, %v1408
        %v1486 = vadd.f32 %v1241, %v1410
        %v1487 = vadd.f32 %v1242, %v1413
        %v1488 = vadd.f32 %v1243, %v1415
        %v1489 = vadd.f32 %v1244, %v1418
        %v1490 = vadd.f32 %v1245, %v1420
        %v1491 = vadd.f32 %v1246, %v1423
        %v1492 = vadd.f32 %v1247, %v1425
        %v1493 = vadd.f32 %v1248, %v1428
        %v1494 = vadd.f32 %v1249, %v1430
        %v1495 = vlaneseq
        %v1496 = vshrl.u32 %v1495, 7
        %v1497 = vsub.s32 5, %v1496
        %v1498 = vrot.slane %v443, %v1497
        %v1499 = vmul.f32 %v1498, %v386
        %v1500 = vmul.f32 %v1498, %v387
        %v1501 = vmul.f32 %v1498, %v389
        %v1502 = vmul.f32 %v1498, %v390
        %v1503 = vmul.f32 %v1498, %v392
        %v1504 = vmul.f32 %v1498, %v393
        %v1505 = vmul.f32 %v1498, %v395
        %v1506 = vmul.f32 %v1498, %v396
        %v1507 = vmul.f32 %v1498, %v398
        %v1508 = vmul.f32 %v1498, %v399
        %v1509 = vmul.f32 %v1498, %v401
        %v1510 = vmul.f32 %v1498, %v402
        %v1511 = vmul.f32 %v1498, %v404
        %v1512 = vmul.f32 %v1498, %v405
        %v1513 = vmul.f32 %v1498, %v407
        %v1514 = vmul.f32 %v1498, %v408
        %v1515 = vmul.f32 %v1498, %v410
        %v1516 = vmul.f32 %v1498, %v411
        %v1517 = vmul.f32 %v1498, %v413
        %v1518 = vmul.f32 %v1498, %v414
        %v1519 = vmul.f32 %v1498, %v416
        %v1520 = vmul.f32 %v1498, %v417
        %v1521 = vmul.f32 %v1498, %v419
        %v1522 = vmul.f32 %v1498, %v420
        %v1523 = vmul.f32 %v1498, %v422
        %v1524 = vmul.f32 %v1498, %v423
        %v1525 = vmul.f32 %v1498, %v425
        %v1526 = vmul.f32 %v1498, %v426
        %v1527 = vmul.f32 %v1498, %v428
        %v1528 = vmul.f32 %v1498, %v429
        %v1529 = vmul.f32 %v1498, %v431
        %v1530 = vmul.f32 %v1498, %v432
        %v1531 = vadd.f32 %v1463, %v1499
        %v1532 = vadd.f32 %v1464, %v1500
        %v1533 = vadd.f32 %v1465, %v1501
        %v1534 = vadd.f32 %v1466, %v1502
        %v1535 = vadd.f32 %v1467, %v1503
        %v1536 = vadd.f32 %v1468, %v1504
        %v1537 = vadd.f32 %v1469, %v1505
        %v1538 = vadd.f32 %v1470, %v1506
        %v1539 = vadd.f32 %v1471, %v1507
        %v1540 = vadd.f32 %v1472, %v1508
        %v1541 = vadd.f32 %v1473, %v1509
        %v1542 = vadd.f32 %v1474, %v1510
        %v1543 = vadd.f32 %v1475, %v1511
        %v1544 = vadd.f32 %v1476, %v1512
        %v1545 = vadd.f32 %v1477, %v1513
        %v1546 = vadd.f32 %v1478, %v1514
        %v1547 = vadd.f32 %v1479, %v1515
        %v1548 = vadd.f32 %v1480, %v1516
        %v1549 = vadd.f32 %v1481, %v1517
        %v1550 = vadd.f32 %v1482, %v1518
        %v1551 = vadd.f32 %v1483, %v1519
        %v1552 = vadd.f32 %v1484, %v1520
        %v1553 = vadd.f32 %v1485, %v1521
        %v1554 = vadd.f32 %v1486, %v1522
        %v1555 = vadd.f32 %v1487, %v1523
        %v1556 = vadd.f32 %v1488, %v1524
        %v1557 = vadd.f32 %v1489, %v1525
        %v1558 = vadd.f32 %v1490, %v1526
        %v1559 = vadd.f32 %v1491, %v1527
        %v1560 = vadd.f32 %v1492, %v1528
        %v1561 = vadd.f32 %v1493, %v1529
        %v1562 = vadd.f32 %v1494, %v1530
        %v1563 = vlaneseq
        %v1564 = vshrl.u32 %v1563, 7
        %v1565 = vsub.s32 6, %v1564
        %v1566 = vrot.slane %v443, %v1565
        %v1567 = vmul.f32 %v1566, %v386
        %v1568 = vmul.f32 %v1566, %v387
        %v1569 = vmul.f32 %v1566, %v388
        %v1570 = vmul.f32 %v1566, %v389
        %v1571 = vmul.f32 %v1566, %v390
        %v1572 = vmul.f32 %v1566, %v391
        %v1573 = vmul.f32 %v1566, %v392
        %v1574 = vmul.f32 %v1566, %v393
        %v1575 = vmul.f32 %v1566, %v394
        %v1576 = vmul.f32 %v1566, %v395
        %v1577 = vmul.f32 %v1566, %v396
        %v1578 = vmul.f32 %v1566, %v397
        %v1579 = vmul.f32 %v1566, %v398
        %v1580 = vmul.f32 %v1566, %v399
        %v1581 = vmul.f32 %v1566, %v400
        %v1582 = vmul.f32 %v1566, %v401
        %v1583 = vmul.f32 %v1566, %v402
        %v1584 = vmul.f32 %v1566, %v403
        %v1585 = vmul.f32 %v1566, %v404
        %v1586 = vmul.f32 %v1566, %v405
        %v1587 = vmul.f32 %v1566, %v406
        %v1588 = vmul.f32 %v1566, %v407
        %v1589 = vmul.f32 %v1566, %v408
        %v1590 = vmul.f32 %v1566, %v409
        %v1591 = vmul.f32 %v1566, %v410
        %v1592 = vmul.f32 %v1566, %v411
        %v1593 = vmul.f32 %v1566, %v412
        %v1594 = vmul.f32 %v1566, %v413
        %v1595 = vmul.f32 %v1566, %v414
        %v1596 = vmul.f32 %v1566, %v415
        %v1597 = vmul.f32 %v1566, %v416
        %v1598 = vmul.f32 %v1566, %v417
        %v1599 = vmul.f32 %v1566, %v418
        %v1600 = vmul.f32 %v1566, %v419
        %v1601 = vmul.f32 %v1566, %v420
        %v1602 = vmul.f32 %v1566, %v421
        %v1603 = vmul.f32 %v1566, %v422
        %v1604 = vmul.f32 %v1566, %v423
        %v1605 = vmul.f32 %v1566, %v424
        %v1606 = vmul.f32 %v1566, %v425
        %v1607 = vmul.f32 %v1566, %v426
        %v1608 = vmul.f32 %v1566, %v427
        %v1609 = vmul.f32 %v1566, %v428
        %v1610 = vmul.f32 %v1566, %v429
        %v1611 = vmul.f32 %v1566, %v430
        %v1612 = vmul.f32 %v1566, %v431
        %v1613 = vmul.f32 %v1566, %v432
        %v1614 = vmul.f32 %v1566, %v433
        %v1663 = vrot.slane %v1567, 1
        %v1664 = vrot.slane %v1568, 1
        %v1665 = vsel %vm615, %v1663, %v1664
        %v1666 = vrot.slane %v1569, 1
        %v1667 = vsel %vm615, %v1664, %v1666
        %v1668 = vrot.slane %v1570, 1
        %v1669 = vrot.slane %v1571, 1
        %v1670 = vsel %vm615, %v1668, %v1669
        %v1671 = vrot.slane %v1572, 1
        %v1672 = vsel %vm615, %v1669, %v1671
        %v1673 = vrot.slane %v1573, 1
        %v1674 = vrot.slane %v1574, 1
        %v1675 = vsel %vm615, %v1673, %v1674
        %v1676 = vrot.slane %v1575, 1
        %v1677 = vsel %vm615, %v1674, %v1676
        %v1678 = vrot.slane %v1576, 1
        %v1679 = vrot.slane %v1577, 1
        %v1680 = vsel %vm615, %v1678, %v1679
        %v1681 = vrot.slane %v1578, 1
        %v1682 = vsel %vm615, %v1679, %v1681
        %v1683 = vrot.slane %v1579, 1
        %v1684 = vrot.slane %v1580, 1
        %v1685 = vsel %vm615, %v1683, %v1684
        %v1686 = vrot.slane %v1581, 1
        %v1687 = vsel %vm615, %v1684, %v1686
        %v1688 = vrot.slane %v1582, 1
        %v1689 = vrot.slane %v1583, 1
        %v1690 = vsel %vm615, %v1688, %v1689
        %v1691 = vrot.slane %v1584, 1
        %v1692 = vsel %vm615, %v1689, %v1691
        %v1693 = vrot.slane %v1585, 1
        %v1694 = vrot.slane %v1586, 1
        %v1695 = vsel %vm615, %v1693, %v1694
        %v1696 = vrot.slane %v1587, 1
        %v1697 = vsel %vm615, %v1694, %v1696
        %v1698 = vrot.slane %v1588, 1
        %v1699 = vrot.slane %v1589, 1
        %v1700 = vsel %vm615, %v1698, %v1699
        %v1701 = vrot.slane %v1590, 1
        %v1702 = vsel %vm615, %v1699, %v1701
        %v1703 = vrot.slane %v1591, 1
        %v1704 = vrot.slane %v1592, 1
        %v1705 = vsel %vm615, %v1703, %v1704
        %v1706 = vrot.slane %v1593, 1
        %v1707 = vsel %vm615, %v1704, %v1706
        %v1708 = vrot.slane %v1594, 1
        %v1709 = vrot.slane %v1595, 1
        %v1710 = vsel %vm615, %v1708, %v1709
        %v1711 = vrot.slane %v1596, 1
        %v1712 = vsel %vm615, %v1709, %v1711
        %v1713 = vrot.slane %v1597, 1
        %v1714 = vrot.slane %v1598, 1
        %v1715 = vsel %vm615, %v1713, %v1714
        %v1716 = vrot.slane %v1599, 1
        %v1717 = vsel %vm615, %v1714, %v1716
        %v1718 = vrot.slane %v1600, 1
        %v1719 = vrot.slane %v1601, 1
        %v1720 = vsel %vm615, %v1718, %v1719
        %v1721 = vrot.slane %v1602, 1
        %v1722 = vsel %vm615, %v1719, %v1721
        %v1723 = vrot.slane %v1603, 1
        %v1724 = vrot.slane %v1604, 1
        %v1725 = vsel %vm615, %v1723, %v1724
        %v1726 = vrot.slane %v1605, 1
        %v1727 = vsel %vm615, %v1724, %v1726
        %v1728 = vrot.slane %v1606, 1
        %v1729 = vrot.slane %v1607, 1
        %v1730 = vsel %vm615, %v1728, %v1729
        %v1731 = vrot.slane %v1608, 1
        %v1732 = vsel %vm615, %v1729, %v1731
        %v1733 = vrot.slane %v1609, 1
        %v1734 = vrot.slane %v1610, 1
        %v1735 = vsel %vm615, %v1733, %v1734
        %v1736 = vrot.slane %v1611, 1
        %v1737 = vsel %vm615, %v1734, %v1736
        %v1738 = vrot.slane %v1612, 1
        %v1739 = vrot.slane %v1613, 1
        %v1740 = vsel %vm615, %v1738, %v1739
        %v1741 = vrot.slane %v1614, 1
        %v1742 = vsel %vm615, %v1739, %v1741
        %v1775 = vadd.f32 %v1531, %v1665
        %v1776 = vadd.f32 %v1532, %v1667
        %v1777 = vadd.f32 %v1533, %v1670
        %v1778 = vadd.f32 %v1534, %v1672
        %v1779 = vadd.f32 %v1535, %v1675
        %v1780 = vadd.f32 %v1536, %v1677
        %v1781 = vadd.f32 %v1537, %v1680
        %v1782 = vadd.f32 %v1538, %v1682
        %v1783 = vadd.f32 %v1539, %v1685
        %v1784 = vadd.f32 %v1540, %v1687
        %v1785 = vadd.f32 %v1541, %v1690
        %v1786 = vadd.f32 %v1542, %v1692
        %v1787 = vadd.f32 %v1543, %v1695
        %v1788 = vadd.f32 %v1544, %v1697
        %v1789 = vadd.f32 %v1545, %v1700
        %v1790 = vadd.f32 %v1546, %v1702
        %v1791 = vadd.f32 %v1547, %v1705
        %v1792 = vadd.f32 %v1548, %v1707
        %v1793 = vadd.f32 %v1549, %v1710
        %v1794 = vadd.f32 %v1550, %v1712
        %v1795 = vadd.f32 %v1551, %v1715
        %v1796 = vadd.f32 %v1552, %v1717
        %v1797 = vadd.f32 %v1553, %v1720
        %v1798 = vadd.f32 %v1554, %v1722
        %v1799 = vadd.f32 %v1555, %v1725
        %v1800 = vadd.f32 %v1556, %v1727
        %v1801 = vadd.f32 %v1557, %v1730
        %v1802 = vadd.f32 %v1558, %v1732
        %v1803 = vadd.f32 %v1559, %v1735
        %v1804 = vadd.f32 %v1560, %v1737
        %v1805 = vadd.f32 %v1561, %v1740
        %v1806 = vadd.f32 %v1562, %v1742
        %v1807 = vlaneseq
        %v1808 = vshrl.u32 %v1807, 7
        %v1809 = vsub.s32 7, %v1808
        %v1810 = vrot.slane %v443, %v1809
        %v1811 = vmul.f32 %v1810, %v386
        %v1812 = vmul.f32 %v1810, %v387
        %v1813 = vmul.f32 %v1810, %v388
        %v1814 = vmul.f32 %v1810, %v389
        %v1815 = vmul.f32 %v1810, %v390
        %v1816 = vmul.f32 %v1810, %v391
        %v1817 = vmul.f32 %v1810, %v392
        %v1818 = vmul.f32 %v1810, %v393
        %v1819 = vmul.f32 %v1810, %v394
        %v1820 = vmul.f32 %v1810, %v395
        %v1821 = vmul.f32 %v1810, %v396
        %v1822 = vmul.f32 %v1810, %v397
        %v1823 = vmul.f32 %v1810, %v398
        %v1824 = vmul.f32 %v1810, %v399
        %v1825 = vmul.f32 %v1810, %v400
        %v1826 = vmul.f32 %v1810, %v401
        %v1827 = vmul.f32 %v1810, %v402
        %v1828 = vmul.f32 %v1810, %v403
        %v1829 = vmul.f32 %v1810, %v404
        %v1830 = vmul.f32 %v1810, %v405
        %v1831 = vmul.f32 %v1810, %v406
        %v1832 = vmul.f32 %v1810, %v407
        %v1833 = vmul.f32 %v1810, %v408
        %v1834 = vmul.f32 %v1810, %v409
        %v1835 = vmul.f32 %v1810, %v410
        %v1836 = vmul.f32 %v1810, %v411
        %v1837 = vmul.f32 %v1810, %v412
        %v1838 = vmul.f32 %v1810, %v413
        %v1839 = vmul.f32 %v1810, %v414
        %v1840 = vmul.f32 %v1810, %v415
        %v1841 = vmul.f32 %v1810, %v416
        %v1842 = vmul.f32 %v1810, %v417
        %v1843 = vmul.f32 %v1810, %v418
        %v1844 = vmul.f32 %v1810, %v419
        %v1845 = vmul.f32 %v1810, %v420
        %v1846 = vmul.f32 %v1810, %v421
        %v1847 = vmul.f32 %v1810, %v422
        %v1848 = vmul.f32 %v1810, %v423
        %v1849 = vmul.f32 %v1810, %v424
        %v1850 = vmul.f32 %v1810, %v425
        %v1851 = vmul.f32 %v1810, %v426
        %v1852 = vmul.f32 %v1810, %v427
        %v1853 = vmul.f32 %v1810, %v428
        %v1854 = vmul.f32 %v1810, %v429
        %v1855 = vmul.f32 %v1810, %v430
        %v1856 = vmul.f32 %v1810, %v431
        %v1857 = vmul.f32 %v1810, %v432
        %v1858 = vmul.f32 %v1810, %v433
        %v1907 = vrot.slane %v1811, 2
        %v1908 = vrot.slane %v1812, 2
        %v1909 = vsel %vm860, %v1907, %v1908
        %v1910 = vrot.slane %v1813, 2
        %v1911 = vsel %vm860, %v1908, %v1910
        %v1912 = vrot.slane %v1814, 2
        %v1913 = vrot.slane %v1815, 2
        %v1914 = vsel %vm860, %v1912, %v1913
        %v1915 = vrot.slane %v1816, 2
        %v1916 = vsel %vm860, %v1913, %v1915
        %v1917 = vrot.slane %v1817, 2
        %v1918 = vrot.slane %v1818, 2
        %v1919 = vsel %vm860, %v1917, %v1918
        %v1920 = vrot.slane %v1819, 2
        %v1921 = vsel %vm860, %v1918, %v1920
        %v1922 = vrot.slane %v1820, 2
        %v1923 = vrot.slane %v1821, 2
        %v1924 = vsel %vm860, %v1922, %v1923
        %v1925 = vrot.slane %v1822, 2
        %v1926 = vsel %vm860, %v1923, %v1925
        %v1927 = vrot.slane %v1823, 2
        %v1928 = vrot.slane %v1824, 2
        %v1929 = vsel %vm860, %v1927, %v1928
        %v1930 = vrot.slane %v1825, 2
        %v1931 = vsel %vm860, %v1928, %v1930
        %v1932 = vrot.slane %v1826, 2
        %v1933 = vrot.slane %v1827, 2
        %v1934 = vsel %vm860, %v1932, %v1933
        %v1935 = vrot.slane %v1828, 2
        %v1936 = vsel %vm860, %v1933, %v1935
        %v1937 = vrot.slane %v1829, 2
        %v1938 = vrot.slane %v1830, 2
        %v1939 = vsel %vm860, %v1937, %v1938
        %v1940 = vrot.slane %v1831, 2
        %v1941 = vsel %vm860, %v1938, %v1940
        %v1942 = vrot.slane %v1832, 2
        %v1943 = vrot.slane %v1833, 2
        %v1944 = vsel %vm860, %v1942, %v1943
        %v1945 = vrot.slane %v1834, 2
        %v1946 = vsel %vm860, %v1943, %v1945
        %v1947 = vrot.slane %v1835, 2
        %v1948 = vrot.slane %v1836, 2
        %v1949 = vsel %vm860, %v1947, %v1948
        %v1950 = vrot.slane %v1837, 2
        %v1951 = vsel %vm860, %v1948, %v1950
        %v1952 = vrot.slane %v1838, 2
        %v1953 = vrot.slane %v1839, 2
        %v1954 = vsel %vm860, %v1952, %v1953
        %v1955 = vrot.slane %v1840, 2
        %v1956 = vsel %vm860, %v1953, %v1955
        %v1957 = vrot.slane %v1841, 2
        %v1958 = vrot.slane %v1842, 2
        %v1959 = vsel %vm860, %v1957, %v1958
        %v1960 = vrot.slane %v1843, 2
        %v1961 = vsel %vm860, %v1958, %v1960
        %v1962 = vrot.slane %v1844, 2
        %v1963 = vrot.slane %v1845, 2
        %v1964 = vsel %vm860, %v1962, %v1963
        %v1965 = vrot.slane %v1846, 2
        %v1966 = vsel %vm860, %v1963, %v1965
        %v1967 = vrot.slane %v1847, 2
        %v1968 = vrot.slane %v1848, 2
        %v1969 = vsel %vm860, %v1967, %v1968
        %v1970 = vrot.slane %v1849, 2
        %v1971 = vsel %vm860, %v1968, %v1970
        %v1972 = vrot.slane %v1850, 2
        %v1973 = vrot.slane %v1851, 2
        %v1974 = vsel %vm860, %v1972, %v1973
        %v1975 = vrot.slane %v1852, 2
        %v1976 = vsel %vm860, %v1973, %v1975
        %v1977 = vrot.slane %v1853, 2
        %v1978 = vrot.slane %v1854, 2
        %v1979 = vsel %vm860, %v1977, %v1978
        %v1980 = vrot.slane %v1855, 2
        %v1981 = vsel %vm860, %v1978, %v1980
        %v1982 = vrot.slane %v1856, 2
        %v1983 = vrot.slane %v1857, 2
        %v1984 = vsel %vm860, %v1982, %v1983
        %v1985 = vrot.slane %v1858, 2
        %v1986 = vsel %vm860, %v1983, %v1985
        %v2019 = vadd.f32 %v1775, %v1909
        %v2020 = vadd.f32 %v1776, %v1911
        %v2021 = vadd.f32 %v1777, %v1914
        %v2022 = vadd.f32 %v1778, %v1916
        %v2023 = vadd.f32 %v1779, %v1919
        %v2024 = vadd.f32 %v1780, %v1921
        %v2025 = vadd.f32 %v1781, %v1924
        %v2026 = vadd.f32 %v1782, %v1926
        %v2027 = vadd.f32 %v1783, %v1929
        %v2028 = vadd.f32 %v1784, %v1931
        %v2029 = vadd.f32 %v1785, %v1934
        %v2030 = vadd.f32 %v1786, %v1936
        %v2031 = vadd.f32 %v1787, %v1939
        %v2032 = vadd.f32 %v1788, %v1941
        %v2033 = vadd.f32 %v1789, %v1944
        %v2034 = vadd.f32 %v1790, %v1946
        %v2035 = vadd.f32 %v1791, %v1949
        %v2036 = vadd.f32 %v1792, %v1951
        %v2037 = vadd.f32 %v1793, %v1954
        %v2038 = vadd.f32 %v1794, %v1956
        %v2039 = vadd.f32 %v1795, %v1959
        %v2040 = vadd.f32 %v1796, %v1961
        %v2041 = vadd.f32 %v1797, %v1964
        %v2042 = vadd.f32 %v1798, %v1966
        %v2043 = vadd.f32 %v1799, %v1969
        %v2044 = vadd.f32 %v1800, %v1971
        %v2045 = vadd.f32 %v1801, %v1974
        %v2046 = vadd.f32 %v1802, %v1976
        %v2047 = vadd.f32 %v1803, %v1979
        %v2048 = vadd.f32 %v1804, %v1981
        %v2049 = vadd.f32 %v1805, %v1984
        %v2050 = vadd.f32 %v1806, %v1986
        %v2051 = vlaneseq
        %v2052 = vshrl.u32 %v2051, 7
        %v2053 = vsub.s32 0, %v2052
        %v2054 = vrot.slane %v444, %v2053
        %v2055 = vmul.f32 %v2054, %v386
        %v2056 = vmul.f32 %v2054, %v387
        %v2057 = vmul.f32 %v2054, %v388
        %v2058 = vmul.f32 %v2054, %v389
        %v2059 = vmul.f32 %v2054, %v390
        %v2060 = vmul.f32 %v2054, %v391
        %v2061 = vmul.f32 %v2054, %v392
        %v2062 = vmul.f32 %v2054, %v393
        %v2063 = vmul.f32 %v2054, %v394
        %v2064 = vmul.f32 %v2054, %v395
        %v2065 = vmul.f32 %v2054, %v396
        %v2066 = vmul.f32 %v2054, %v397
        %v2067 = vmul.f32 %v2054, %v398
        %v2068 = vmul.f32 %v2054, %v399
        %v2069 = vmul.f32 %v2054, %v400
        %v2070 = vmul.f32 %v2054, %v401
        %v2071 = vmul.f32 %v2054, %v402
        %v2072 = vmul.f32 %v2054, %v403
        %v2073 = vmul.f32 %v2054, %v404
        %v2074 = vmul.f32 %v2054, %v405
        %v2075 = vmul.f32 %v2054, %v406
        %v2076 = vmul.f32 %v2054, %v407
        %v2077 = vmul.f32 %v2054, %v408
        %v2078 = vmul.f32 %v2054, %v409
        %v2079 = vmul.f32 %v2054, %v410
        %v2080 = vmul.f32 %v2054, %v411
        %v2081 = vmul.f32 %v2054, %v412
        %v2082 = vmul.f32 %v2054, %v413
        %v2083 = vmul.f32 %v2054, %v414
        %v2084 = vmul.f32 %v2054, %v415
        %v2085 = vmul.f32 %v2054, %v416
        %v2086 = vmul.f32 %v2054, %v417
        %v2087 = vmul.f32 %v2054, %v418
        %v2088 = vmul.f32 %v2054, %v419
        %v2089 = vmul.f32 %v2054, %v420
        %v2090 = vmul.f32 %v2054, %v421
        %v2091 = vmul.f32 %v2054, %v422
        %v2092 = vmul.f32 %v2054, %v423
        %v2093 = vmul.f32 %v2054, %v424
        %v2094 = vmul.f32 %v2054, %v425
        %v2095 = vmul.f32 %v2054, %v426
        %v2096 = vmul.f32 %v2054, %v427
        %v2097 = vmul.f32 %v2054, %v428
        %v2098 = vmul.f32 %v2054, %v429
        %v2099 = vmul.f32 %v2054, %v430
        %v2100 = vmul.f32 %v2054, %v431
        %v2101 = vmul.f32 %v2054, %v432
        %v2102 = vmul.f32 %v2054, %v433
        %v2151 = vrot.slane %v2055, 3
        %v2152 = vrot.slane %v2056, 3
        %v2153 = vsel %vm1105, %v2151, %v2152
        %v2154 = vrot.slane %v2057, 3
        %v2155 = vsel %vm1105, %v2152, %v2154
        %v2156 = vrot.slane %v2058, 3
        %v2157 = vrot.slane %v2059, 3
        %v2158 = vsel %vm1105, %v2156, %v2157
        %v2159 = vrot.slane %v2060, 3
        %v2160 = vsel %vm1105, %v2157, %v2159
        %v2161 = vrot.slane %v2061, 3
        %v2162 = vrot.slane %v2062, 3
        %v2163 = vsel %vm1105, %v2161, %v2162
        %v2164 = vrot.slane %v2063, 3
        %v2165 = vsel %vm1105, %v2162, %v2164
        %v2166 = vrot.slane %v2064, 3
        %v2167 = vrot.slane %v2065, 3
        %v2168 = vsel %vm1105, %v2166, %v2167
        %v2169 = vrot.slane %v2066, 3
        %v2170 = vsel %vm1105, %v2167, %v2169
        %v2171 = vrot.slane %v2067, 3
        %v2172 = vrot.slane %v2068, 3
        %v2173 = vsel %vm1105, %v2171, %v2172
        %v2174 = vrot.slane %v2069, 3
        %v2175 = vsel %vm1105, %v2172, %v2174
        %v2176 = vrot.slane %v2070, 3
        %v2177 = vrot.slane %v2071, 3
        %v2178 = vsel %vm1105, %v2176, %v2177
        %v2179 = vrot.slane %v2072, 3
        %v2180 = vsel %vm1105, %v2177, %v2179
        %v2181 = vrot.slane %v2073, 3
        %v2182 = vrot.slane %v2074, 3
        %v2183 = vsel %vm1105, %v2181, %v2182
        %v2184 = vrot.slane %v2075, 3
        %v2185 = vsel %vm1105, %v2182, %v2184
        %v2186 = vrot.slane %v2076, 3
        %v2187 = vrot.slane %v2077, 3
        %v2188 = vsel %vm1105, %v2186, %v2187
        %v2189 = vrot.slane %v2078, 3
        %v2190 = vsel %vm1105, %v2187, %v2189
        %v2191 = vrot.slane %v2079, 3
        %v2192 = vrot.slane %v2080, 3
        %v2193 = vsel %vm1105, %v2191, %v2192
        %v2194 = vrot.slane %v2081, 3
        %v2195 = vsel %vm1105, %v2192, %v2194
        %v2196 = vrot.slane %v2082, 3
        %v2197 = vrot.slane %v2083, 3
        %v2198 = vsel %vm1105, %v2196, %v2197
        %v2199 = vrot.slane %v2084, 3
        %v2200 = vsel %vm1105, %v2197, %v2199
        %v2201 = vrot.slane %v2085, 3
        %v2202 = vrot.slane %v2086, 3
        %v2203 = vsel %vm1105, %v2201, %v2202
        %v2204 = vrot.slane %v2087, 3
        %v2205 = vsel %vm1105, %v2202, %v2204
        %v2206 = vrot.slane %v2088, 3
        %v2207 = vrot.slane %v2089, 3
        %v2208 = vsel %vm1105, %v2206, %v2207
        %v2209 = vrot.slane %v2090, 3
        %v2210 = vsel %vm1105, %v2207, %v2209
        %v2211 = vrot.slane %v2091, 3
        %v2212 = vrot.slane %v2092, 3
        %v2213 = vsel %vm1105, %v2211, %v2212
        %v2214 = vrot.slane %v2093, 3
        %v2215 = vsel %vm1105, %v2212, %v2214
        %v2216 = vrot.slane %v2094, 3
        %v2217 = vrot.slane %v2095, 3
        %v2218 = vsel %vm1105, %v2216, %v2217
        %v2219 = vrot.slane %v2096, 3
        %v2220 = vsel %vm1105, %v2217, %v2219
        %v2221 = vrot.slane %v2097, 3
        %v2222 = vrot.slane %v2098, 3
        %v2223 = vsel %vm1105, %v2221, %v2222
        %v2224 = vrot.slane %v2099, 3
        %v2225 = vsel %vm1105, %v2222, %v2224
        %v2226 = vrot.slane %v2100, 3
        %v2227 = vrot.slane %v2101, 3
        %v2228 = vsel %vm1105, %v2226, %v2227
        %v2229 = vrot.slane %v2102, 3
        %v2230 = vsel %vm1105, %v2227, %v2229
        %v2263 = vadd.f32 %v2019, %v2153
        %v2264 = vadd.f32 %v2020, %v2155
        %v2265 = vadd.f32 %v2021, %v2158
        %v2266 = vadd.f32 %v2022, %v2160
        %v2267 = vadd.f32 %v2023, %v2163
        %v2268 = vadd.f32 %v2024, %v2165
        %v2269 = vadd.f32 %v2025, %v2168
        %v2270 = vadd.f32 %v2026, %v2170
        %v2271 = vadd.f32 %v2027, %v2173
        %v2272 = vadd.f32 %v2028, %v2175
        %v2273 = vadd.f32 %v2029, %v2178
        %v2274 = vadd.f32 %v2030, %v2180
        %v2275 = vadd.f32 %v2031, %v2183
        %v2276 = vadd.f32 %v2032, %v2185
        %v2277 = vadd.f32 %v2033, %v2188
        %v2278 = vadd.f32 %v2034, %v2190
        %v2279 = vadd.f32 %v2035, %v2193
        %v2280 = vadd.f32 %v2036, %v2195
        %v2281 = vadd.f32 %v2037, %v2198
        %v2282 = vadd.f32 %v2038, %v2200
        %v2283 = vadd.f32 %v2039, %v2203
        %v2284 = vadd.f32 %v2040, %v2205
        %v2285 = vadd.f32 %v2041, %v2208
        %v2286 = vadd.f32 %v2042, %v2210
        %v2287 = vadd.f32 %v2043, %v2213
        %v2288 = vadd.f32 %v2044, %v2215
        %v2289 = vadd.f32 %v2045, %v2218
        %v2290 = vadd.f32 %v2046, %v2220
        %v2291 = vadd.f32 %v2047, %v2223
        %v2292 = vadd.f32 %v2048, %v2225
        %v2293 = vadd.f32 %v2049, %v2228
        %v2294 = vadd.f32 %v2050, %v2230
        %v2295 = vlaneseq
        %v2296 = vshrl.u32 %v2295, 7
        %v2297 = vsub.s32 1, %v2296
        %v2298 = vrot.slane %v444, %v2297
        %v2299 = vmul.f32 %v2298, %v386
        %v2300 = vmul.f32 %v2298, %v387
        %v2301 = vmul.f32 %v2298, %v388
        %v2302 = vmul.f32 %v2298, %v389
        %v2303 = vmul.f32 %v2298, %v390
        %v2304 = vmul.f32 %v2298, %v391
        %v2305 = vmul.f32 %v2298, %v392
        %v2306 = vmul.f32 %v2298, %v393
        %v2307 = vmul.f32 %v2298, %v394
        %v2308 = vmul.f32 %v2298, %v395
        %v2309 = vmul.f32 %v2298, %v396
        %v2310 = vmul.f32 %v2298, %v397
        %v2311 = vmul.f32 %v2298, %v398
        %v2312 = vmul.f32 %v2298, %v399
        %v2313 = vmul.f32 %v2298, %v400
        %v2314 = vmul.f32 %v2298, %v401
        %v2315 = vmul.f32 %v2298, %v402
        %v2316 = vmul.f32 %v2298, %v403
        %v2317 = vmul.f32 %v2298, %v404
        %v2318 = vmul.f32 %v2298, %v405
        %v2319 = vmul.f32 %v2298, %v406
        %v2320 = vmul.f32 %v2298, %v407
        %v2321 = vmul.f32 %v2298, %v408
        %v2322 = vmul.f32 %v2298, %v409
        %v2323 = vmul.f32 %v2298, %v410
        %v2324 = vmul.f32 %v2298, %v411
        %v2325 = vmul.f32 %v2298, %v412
        %v2326 = vmul.f32 %v2298, %v413
        %v2327 = vmul.f32 %v2298, %v414
        %v2328 = vmul.f32 %v2298, %v415
        %v2329 = vmul.f32 %v2298, %v416
        %v2330 = vmul.f32 %v2298, %v417
        %v2331 = vmul.f32 %v2298, %v418
        %v2332 = vmul.f32 %v2298, %v419
        %v2333 = vmul.f32 %v2298, %v420
        %v2334 = vmul.f32 %v2298, %v421
        %v2335 = vmul.f32 %v2298, %v422
        %v2336 = vmul.f32 %v2298, %v423
        %v2337 = vmul.f32 %v2298, %v424
        %v2338 = vmul.f32 %v2298, %v425
        %v2339 = vmul.f32 %v2298, %v426
        %v2340 = vmul.f32 %v2298, %v427
        %v2341 = vmul.f32 %v2298, %v428
        %v2342 = vmul.f32 %v2298, %v429
        %v2343 = vmul.f32 %v2298, %v430
        %v2344 = vmul.f32 %v2298, %v431
        %v2345 = vmul.f32 %v2298, %v432
        %v2346 = vmul.f32 %v2298, %v433
        %v2395 = vrot.slane %v2299, 4
        %v2396 = vrot.slane %v2300, 4
        %v2397 = vsel %vm1350, %v2395, %v2396
        %v2398 = vrot.slane %v2301, 4
        %v2399 = vsel %vm1350, %v2396, %v2398
        %v2400 = vrot.slane %v2302, 4
        %v2401 = vrot.slane %v2303, 4
        %v2402 = vsel %vm1350, %v2400, %v2401
        %v2403 = vrot.slane %v2304, 4
        %v2404 = vsel %vm1350, %v2401, %v2403
        %v2405 = vrot.slane %v2305, 4
        %v2406 = vrot.slane %v2306, 4
        %v2407 = vsel %vm1350, %v2405, %v2406
        %v2408 = vrot.slane %v2307, 4
        %v2409 = vsel %vm1350, %v2406, %v2408
        %v2410 = vrot.slane %v2308, 4
        %v2411 = vrot.slane %v2309, 4
        %v2412 = vsel %vm1350, %v2410, %v2411
        %v2413 = vrot.slane %v2310, 4
        %v2414 = vsel %vm1350, %v2411, %v2413
        %v2415 = vrot.slane %v2311, 4
        %v2416 = vrot.slane %v2312, 4
        %v2417 = vsel %vm1350, %v2415, %v2416
        %v2418 = vrot.slane %v2313, 4
        %v2419 = vsel %vm1350, %v2416, %v2418
        %v2420 = vrot.slane %v2314, 4
        %v2421 = vrot.slane %v2315, 4
        %v2422 = vsel %vm1350, %v2420, %v2421
        %v2423 = vrot.slane %v2316, 4
        %v2424 = vsel %vm1350, %v2421, %v2423
        %v2425 = vrot.slane %v2317, 4
        %v2426 = vrot.slane %v2318, 4
        %v2427 = vsel %vm1350, %v2425, %v2426
        %v2428 = vrot.slane %v2319, 4
        %v2429 = vsel %vm1350, %v2426, %v2428
        %v2430 = vrot.slane %v2320, 4
        %v2431 = vrot.slane %v2321, 4
        %v2432 = vsel %vm1350, %v2430, %v2431
        %v2433 = vrot.slane %v2322, 4
        %v2434 = vsel %vm1350, %v2431, %v2433
        %v2435 = vrot.slane %v2323, 4
        %v2436 = vrot.slane %v2324, 4
        %v2437 = vsel %vm1350, %v2435, %v2436
        %v2438 = vrot.slane %v2325, 4
        %v2439 = vsel %vm1350, %v2436, %v2438
        %v2440 = vrot.slane %v2326, 4
        %v2441 = vrot.slane %v2327, 4
        %v2442 = vsel %vm1350, %v2440, %v2441
        %v2443 = vrot.slane %v2328, 4
        %v2444 = vsel %vm1350, %v2441, %v2443
        %v2445 = vrot.slane %v2329, 4
        %v2446 = vrot.slane %v2330, 4
        %v2447 = vsel %vm1350, %v2445, %v2446
        %v2448 = vrot.slane %v2331, 4
        %v2449 = vsel %vm1350, %v2446, %v2448
        %v2450 = vrot.slane %v2332, 4
        %v2451 = vrot.slane %v2333, 4
        %v2452 = vsel %vm1350, %v2450, %v2451
        %v2453 = vrot.slane %v2334, 4
        %v2454 = vsel %vm1350, %v2451, %v2453
        %v2455 = vrot.slane %v2335, 4
        %v2456 = vrot.slane %v2336, 4
        %v2457 = vsel %vm1350, %v2455, %v2456
        %v2458 = vrot.slane %v2337, 4
        %v2459 = vsel %vm1350, %v2456, %v2458
        %v2460 = vrot.slane %v2338, 4
        %v2461 = vrot.slane %v2339, 4
        %v2462 = vsel %vm1350, %v2460, %v2461
        %v2463 = vrot.slane %v2340, 4
        %v2464 = vsel %vm1350, %v2461, %v2463
        %v2465 = vrot.slane %v2341, 4
        %v2466 = vrot.slane %v2342, 4
        %v2467 = vsel %vm1350, %v2465, %v2466
        %v2468 = vrot.slane %v2343, 4
        %v2469 = vsel %vm1350, %v2466, %v2468
        %v2470 = vrot.slane %v2344, 4
        %v2471 = vrot.slane %v2345, 4
        %v2472 = vsel %vm1350, %v2470, %v2471
        %v2473 = vrot.slane %v2346, 4
        %v2474 = vsel %vm1350, %v2471, %v2473
        %v2507 = vadd.f32 %v2263, %v2397
        %v2508 = vadd.f32 %v2264, %v2399
        %v2509 = vadd.f32 %v2265, %v2402
        %v2510 = vadd.f32 %v2266, %v2404
        %v2511 = vadd.f32 %v2267, %v2407
        %v2512 = vadd.f32 %v2268, %v2409
        %v2513 = vadd.f32 %v2269, %v2412
        %v2514 = vadd.f32 %v2270, %v2414
        %v2515 = vadd.f32 %v2271, %v2417
        %v2516 = vadd.f32 %v2272, %v2419
        %v2517 = vadd.f32 %v2273, %v2422
        %v2518 = vadd.f32 %v2274, %v2424
        %v2519 = vadd.f32 %v2275, %v2427
        %v2520 = vadd.f32 %v2276, %v2429
        %v2521 = vadd.f32 %v2277, %v2432
        %v2522 = vadd.f32 %v2278, %v2434
        %v2523 = vadd.f32 %v2279, %v2437
        %v2524 = vadd.f32 %v2280, %v2439
        %v2525 = vadd.f32 %v2281, %v2442
        %v2526 = vadd.f32 %v2282, %v2444
        %v2527 = vadd.f32 %v2283, %v2447
        %v2528 = vadd.f32 %v2284, %v2449
        %v2529 = vadd.f32 %v2285, %v2452
        %v2530 = vadd.f32 %v2286, %v2454
        %v2531 = vadd.f32 %v2287, %v2457
        %v2532 = vadd.f32 %v2288, %v2459
        %v2533 = vadd.f32 %v2289, %v2462
        %v2534 = vadd.f32 %v2290, %v2464
        %v2535 = vadd.f32 %v2291, %v2467
        %v2536 = vadd.f32 %v2292, %v2469
        %v2537 = vadd.f32 %v2293, %v2472
        %v2538 = vadd.f32 %v2294, %v2474
        %v2539 = vlaneseq
        %v2540 = vshrl.u32 %v2539, 7
        %v2541 = vsub.s32 2, %v2540
        %v2542 = vrot.slane %v444, %v2541
        %v2543 = vmul.f32 %v2542, %v389
        %v2544 = vmul.f32 %v2542, %v390
        %v2545 = vmul.f32 %v2542, %v392
        %v2546 = vmul.f32 %v2542, %v393
        %v2547 = vmul.f32 %v2542, %v395
        %v2548 = vmul.f32 %v2542, %v396
        %v2549 = vmul.f32 %v2542, %v398
        %v2550 = vmul.f32 %v2542, %v399
        %v2551 = vmul.f32 %v2542, %v401
        %v2552 = vmul.f32 %v2542, %v402
        %v2553 = vmul.f32 %v2542, %v404
        %v2554 = vmul.f32 %v2542, %v405
        %v2555 = vmul.f32 %v2542, %v407
        %v2556 = vmul.f32 %v2542, %v408
        %v2557 = vmul.f32 %v2542, %v410
        %v2558 = vmul.f32 %v2542, %v411
        %v2559 = vmul.f32 %v2542, %v413
        %v2560 = vmul.f32 %v2542, %v414
        %v2561 = vmul.f32 %v2542, %v416
        %v2562 = vmul.f32 %v2542, %v417
        %v2563 = vmul.f32 %v2542, %v419
        %v2564 = vmul.f32 %v2542, %v420
        %v2565 = vmul.f32 %v2542, %v422
        %v2566 = vmul.f32 %v2542, %v423
        %v2567 = vmul.f32 %v2542, %v425
        %v2568 = vmul.f32 %v2542, %v426
        %v2569 = vmul.f32 %v2542, %v428
        %v2570 = vmul.f32 %v2542, %v429
        %v2571 = vmul.f32 %v2542, %v431
        %v2572 = vmul.f32 %v2542, %v432
        %v2573 = vmul.f32 %v2542, %v434
        %v2574 = vmul.f32 %v2542, %v435
        %v2575 = vadd.f32 %v2507, %v2543
        %v2576 = vadd.f32 %v2508, %v2544
        %v2577 = vadd.f32 %v2509, %v2545
        %v2578 = vadd.f32 %v2510, %v2546
        %v2579 = vadd.f32 %v2511, %v2547
        %v2580 = vadd.f32 %v2512, %v2548
        %v2581 = vadd.f32 %v2513, %v2549
        %v2582 = vadd.f32 %v2514, %v2550
        %v2583 = vadd.f32 %v2515, %v2551
        %v2584 = vadd.f32 %v2516, %v2552
        %v2585 = vadd.f32 %v2517, %v2553
        %v2586 = vadd.f32 %v2518, %v2554
        %v2587 = vadd.f32 %v2519, %v2555
        %v2588 = vadd.f32 %v2520, %v2556
        %v2589 = vadd.f32 %v2521, %v2557
        %v2590 = vadd.f32 %v2522, %v2558
        %v2591 = vadd.f32 %v2523, %v2559
        %v2592 = vadd.f32 %v2524, %v2560
        %v2593 = vadd.f32 %v2525, %v2561
        %v2594 = vadd.f32 %v2526, %v2562
        %v2595 = vadd.f32 %v2527, %v2563
        %v2596 = vadd.f32 %v2528, %v2564
        %v2597 = vadd.f32 %v2529, %v2565
        %v2598 = vadd.f32 %v2530, %v2566
        %v2599 = vadd.f32 %v2531, %v2567
        %v2600 = vadd.f32 %v2532, %v2568
        %v2601 = vadd.f32 %v2533, %v2569
        %v2602 = vadd.f32 %v2534, %v2570
        %v2603 = vadd.f32 %v2535, %v2571
        %v2604 = vadd.f32 %v2536, %v2572
        %v2605 = vadd.f32 %v2537, %v2573
        %v2606 = vadd.f32 %v2538, %v2574
        %v2607 = vlaneseq
        %v2608 = vshrl.u32 %v2607, 7
        %v2609 = vsub.s32 3, %v2608
        %v2610 = vrot.slane %v444, %v2609
        %v2611 = vmul.f32 %v2610, %v389
        %v2612 = vmul.f32 %v2610, %v390
        %v2613 = vmul.f32 %v2610, %v391
        %v2614 = vmul.f32 %v2610, %v392
        %v2615 = vmul.f32 %v2610, %v393
        %v2616 = vmul.f32 %v2610, %v394
        %v2617 = vmul.f32 %v2610, %v395
        %v2618 = vmul.f32 %v2610, %v396
        %v2619 = vmul.f32 %v2610, %v397
        %v2620 = vmul.f32 %v2610, %v398
        %v2621 = vmul.f32 %v2610, %v399
        %v2622 = vmul.f32 %v2610, %v400
        %v2623 = vmul.f32 %v2610, %v401
        %v2624 = vmul.f32 %v2610, %v402
        %v2625 = vmul.f32 %v2610, %v403
        %v2626 = vmul.f32 %v2610, %v404
        %v2627 = vmul.f32 %v2610, %v405
        %v2628 = vmul.f32 %v2610, %v406
        %v2629 = vmul.f32 %v2610, %v407
        %v2630 = vmul.f32 %v2610, %v408
        %v2631 = vmul.f32 %v2610, %v409
        %v2632 = vmul.f32 %v2610, %v410
        %v2633 = vmul.f32 %v2610, %v411
        %v2634 = vmul.f32 %v2610, %v412
        %v2635 = vmul.f32 %v2610, %v413
        %v2636 = vmul.f32 %v2610, %v414
        %v2637 = vmul.f32 %v2610, %v415
        %v2638 = vmul.f32 %v2610, %v416
        %v2639 = vmul.f32 %v2610, %v417
        %v2640 = vmul.f32 %v2610, %v418
        %v2641 = vmul.f32 %v2610, %v419
        %v2642 = vmul.f32 %v2610, %v420
        %v2643 = vmul.f32 %v2610, %v421
        %v2644 = vmul.f32 %v2610, %v422
        %v2645 = vmul.f32 %v2610, %v423
        %v2646 = vmul.f32 %v2610, %v424
        %v2647 = vmul.f32 %v2610, %v425
        %v2648 = vmul.f32 %v2610, %v426
        %v2649 = vmul.f32 %v2610, %v427
        %v2650 = vmul.f32 %v2610, %v428
        %v2651 = vmul.f32 %v2610, %v429
        %v2652 = vmul.f32 %v2610, %v430
        %v2653 = vmul.f32 %v2610, %v431
        %v2654 = vmul.f32 %v2610, %v432
        %v2655 = vmul.f32 %v2610, %v433
        %v2656 = vmul.f32 %v2610, %v434
        %v2657 = vmul.f32 %v2610, %v435
        %v2658 = vmul.f32 %v2610, %v436
        %v2707 = vrot.slane %v2611, 1
        %v2708 = vrot.slane %v2612, 1
        %v2709 = vsel %vm615, %v2707, %v2708
        %v2710 = vrot.slane %v2613, 1
        %v2711 = vsel %vm615, %v2708, %v2710
        %v2712 = vrot.slane %v2614, 1
        %v2713 = vrot.slane %v2615, 1
        %v2714 = vsel %vm615, %v2712, %v2713
        %v2715 = vrot.slane %v2616, 1
        %v2716 = vsel %vm615, %v2713, %v2715
        %v2717 = vrot.slane %v2617, 1
        %v2718 = vrot.slane %v2618, 1
        %v2719 = vsel %vm615, %v2717, %v2718
        %v2720 = vrot.slane %v2619, 1
        %v2721 = vsel %vm615, %v2718, %v2720
        %v2722 = vrot.slane %v2620, 1
        %v2723 = vrot.slane %v2621, 1
        %v2724 = vsel %vm615, %v2722, %v2723
        %v2725 = vrot.slane %v2622, 1
        %v2726 = vsel %vm615, %v2723, %v2725
        %v2727 = vrot.slane %v2623, 1
        %v2728 = vrot.slane %v2624, 1
        %v2729 = vsel %vm615, %v2727, %v2728
        %v2730 = vrot.slane %v2625, 1
        %v2731 = vsel %vm615, %v2728, %v2730
        %v2732 = vrot.slane %v2626, 1
        %v2733 = vrot.slane %v2627, 1
        %v2734 = vsel %vm615, %v2732, %v2733
        %v2735 = vrot.slane %v2628, 1
        %v2736 = vsel %vm615, %v2733, %v2735
        %v2737 = vrot.slane %v2629, 1
        %v2738 = vrot.slane %v2630, 1
        %v2739 = vsel %vm615, %v2737, %v2738
        %v2740 = vrot.slane %v2631, 1
        %v2741 = vsel %vm615, %v2738, %v2740
        %v2742 = vrot.slane %v2632, 1
        %v2743 = vrot.slane %v2633, 1
        %v2744 = vsel %vm615, %v2742, %v2743
        %v2745 = vrot.slane %v2634, 1
        %v2746 = vsel %vm615, %v2743, %v2745
        %v2747 = vrot.slane %v2635, 1
        %v2748 = vrot.slane %v2636, 1
        %v2749 = vsel %vm615, %v2747, %v2748
        %v2750 = vrot.slane %v2637, 1
        %v2751 = vsel %vm615, %v2748, %v2750
        %v2752 = vrot.slane %v2638, 1
        %v2753 = vrot.slane %v2639, 1
        %v2754 = vsel %vm615, %v2752, %v2753
        %v2755 = vrot.slane %v2640, 1
        %v2756 = vsel %vm615, %v2753, %v2755
        %v2757 = vrot.slane %v2641, 1
        %v2758 = vrot.slane %v2642, 1
        %v2759 = vsel %vm615, %v2757, %v2758
        %v2760 = vrot.slane %v2643, 1
        %v2761 = vsel %vm615, %v2758, %v2760
        %v2762 = vrot.slane %v2644, 1
        %v2763 = vrot.slane %v2645, 1
        %v2764 = vsel %vm615, %v2762, %v2763
        %v2765 = vrot.slane %v2646, 1
        %v2766 = vsel %vm615, %v2763, %v2765
        %v2767 = vrot.slane %v2647, 1
        %v2768 = vrot.slane %v2648, 1
        %v2769 = vsel %vm615, %v2767, %v2768
        %v2770 = vrot.slane %v2649, 1
        %v2771 = vsel %vm615, %v2768, %v2770
        %v2772 = vrot.slane %v2650, 1
        %v2773 = vrot.slane %v2651, 1
        %v2774 = vsel %vm615, %v2772, %v2773
        %v2775 = vrot.slane %v2652, 1
        %v2776 = vsel %vm615, %v2773, %v2775
        %v2777 = vrot.slane %v2653, 1
        %v2778 = vrot.slane %v2654, 1
        %v2779 = vsel %vm615, %v2777, %v2778
        %v2780 = vrot.slane %v2655, 1
        %v2781 = vsel %vm615, %v2778, %v2780
        %v2782 = vrot.slane %v2656, 1
        %v2783 = vrot.slane %v2657, 1
        %v2784 = vsel %vm615, %v2782, %v2783
        %v2785 = vrot.slane %v2658, 1
        %v2786 = vsel %vm615, %v2783, %v2785
        %v2819 = vadd.f32 %v2575, %v2709
        %v2820 = vadd.f32 %v2576, %v2711
        %v2821 = vadd.f32 %v2577, %v2714
        %v2822 = vadd.f32 %v2578, %v2716
        %v2823 = vadd.f32 %v2579, %v2719
        %v2824 = vadd.f32 %v2580, %v2721
        %v2825 = vadd.f32 %v2581, %v2724
        %v2826 = vadd.f32 %v2582, %v2726
        %v2827 = vadd.f32 %v2583, %v2729
        %v2828 = vadd.f32 %v2584, %v2731
        %v2829 = vadd.f32 %v2585, %v2734
        %v2830 = vadd.f32 %v2586, %v2736
        %v2831 = vadd.f32 %v2587, %v2739
        %v2832 = vadd.f32 %v2588, %v2741
        %v2833 = vadd.f32 %v2589, %v2744
        %v2834 = vadd.f32 %v2590, %v2746
        %v2835 = vadd.f32 %v2591, %v2749
        %v2836 = vadd.f32 %v2592, %v2751
        %v2837 = vadd.f32 %v2593, %v2754
        %v2838 = vadd.f32 %v2594, %v2756
        %v2839 = vadd.f32 %v2595, %v2759
        %v2840 = vadd.f32 %v2596, %v2761
        %v2841 = vadd.f32 %v2597, %v2764
        %v2842 = vadd.f32 %v2598, %v2766
        %v2843 = vadd.f32 %v2599, %v2769
        %v2844 = vadd.f32 %v2600, %v2771
        %v2845 = vadd.f32 %v2601, %v2774
        %v2846 = vadd.f32 %v2602, %v2776
        %v2847 = vadd.f32 %v2603, %v2779
        %v2848 = vadd.f32 %v2604, %v2781
        %v2849 = vadd.f32 %v2605, %v2784
        %v2850 = vadd.f32 %v2606, %v2786
        %v2851 = vlaneseq
        %v2852 = vshrl.u32 %v2851, 7
        %v2853 = vsub.s32 4, %v2852
        %v2854 = vrot.slane %v444, %v2853
        %v2855 = vmul.f32 %v2854, %v389
        %v2856 = vmul.f32 %v2854, %v390
        %v2857 = vmul.f32 %v2854, %v391
        %v2858 = vmul.f32 %v2854, %v392
        %v2859 = vmul.f32 %v2854, %v393
        %v2860 = vmul.f32 %v2854, %v394
        %v2861 = vmul.f32 %v2854, %v395
        %v2862 = vmul.f32 %v2854, %v396
        %v2863 = vmul.f32 %v2854, %v397
        %v2864 = vmul.f32 %v2854, %v398
        %v2865 = vmul.f32 %v2854, %v399
        %v2866 = vmul.f32 %v2854, %v400
        %v2867 = vmul.f32 %v2854, %v401
        %v2868 = vmul.f32 %v2854, %v402
        %v2869 = vmul.f32 %v2854, %v403
        %v2870 = vmul.f32 %v2854, %v404
        %v2871 = vmul.f32 %v2854, %v405
        %v2872 = vmul.f32 %v2854, %v406
        %v2873 = vmul.f32 %v2854, %v407
        %v2874 = vmul.f32 %v2854, %v408
        %v2875 = vmul.f32 %v2854, %v409
        %v2876 = vmul.f32 %v2854, %v410
        %v2877 = vmul.f32 %v2854, %v411
        %v2878 = vmul.f32 %v2854, %v412
        %v2879 = vmul.f32 %v2854, %v413
        %v2880 = vmul.f32 %v2854, %v414
        %v2881 = vmul.f32 %v2854, %v415
        %v2882 = vmul.f32 %v2854, %v416
        %v2883 = vmul.f32 %v2854, %v417
        %v2884 = vmul.f32 %v2854, %v418
        %v2885 = vmul.f32 %v2854, %v419
        %v2886 = vmul.f32 %v2854, %v420
        %v2887 = vmul.f32 %v2854, %v421
        %v2888 = vmul.f32 %v2854, %v422
        %v2889 = vmul.f32 %v2854, %v423
        %v2890 = vmul.f32 %v2854, %v424
        %v2891 = vmul.f32 %v2854, %v425
        %v2892 = vmul.f32 %v2854, %v426
        %v2893 = vmul.f32 %v2854, %v427
        %v2894 = vmul.f32 %v2854, %v428
        %v2895 = vmul.f32 %v2854, %v429
        %v2896 = vmul.f32 %v2854, %v430
        %v2897 = vmul.f32 %v2854, %v431
        %v2898 = vmul.f32 %v2854, %v432
        %v2899 = vmul.f32 %v2854, %v433
        %v2900 = vmul.f32 %v2854, %v434
        %v2901 = vmul.f32 %v2854, %v435
        %v2902 = vmul.f32 %v2854, %v436
        %v2951 = vrot.slane %v2855, 2
        %v2952 = vrot.slane %v2856, 2
        %v2953 = vsel %vm860, %v2951, %v2952
        %v2954 = vrot.slane %v2857, 2
        %v2955 = vsel %vm860, %v2952, %v2954
        %v2956 = vrot.slane %v2858, 2
        %v2957 = vrot.slane %v2859, 2
        %v2958 = vsel %vm860, %v2956, %v2957
        %v2959 = vrot.slane %v2860, 2
        %v2960 = vsel %vm860, %v2957, %v2959
        %v2961 = vrot.slane %v2861, 2
        %v2962 = vrot.slane %v2862, 2
        %v2963 = vsel %vm860, %v2961, %v2962
        %v2964 = vrot.slane %v2863, 2
        %v2965 = vsel %vm860, %v2962, %v2964
        %v2966 = vrot.slane %v2864, 2
        %v2967 = vrot.slane %v2865, 2
        %v2968 = vsel %vm860, %v2966, %v2967
        %v2969 = vrot.slane %v2866, 2
        %v2970 = vsel %vm860, %v2967, %v2969
        %v2971 = vrot.slane %v2867, 2
        %v2972 = vrot.slane %v2868, 2
        %v2973 = vsel %vm860, %v2971, %v2972
        %v2974 = vrot.slane %v2869, 2
        %v2975 = vsel %vm860, %v2972, %v2974
        %v2976 = vrot.slane %v2870, 2
        %v2977 = vrot.slane %v2871, 2
        %v2978 = vsel %vm860, %v2976, %v2977
        %v2979 = vrot.slane %v2872, 2
        %v2980 = vsel %vm860, %v2977, %v2979
        %v2981 = vrot.slane %v2873, 2
        %v2982 = vrot.slane %v2874, 2
        %v2983 = vsel %vm860, %v2981, %v2982
        %v2984 = vrot.slane %v2875, 2
        %v2985 = vsel %vm860, %v2982, %v2984
        %v2986 = vrot.slane %v2876, 2
        %v2987 = vrot.slane %v2877, 2
        %v2988 = vsel %vm860, %v2986, %v2987
        %v2989 = vrot.slane %v2878, 2
        %v2990 = vsel %vm860, %v2987, %v2989
        %v2991 = vrot.slane %v2879, 2
        %v2992 = vrot.slane %v2880, 2
        %v2993 = vsel %vm860, %v2991, %v2992
        %v2994 = vrot.slane %v2881, 2
        %v2995 = vsel %vm860, %v2992, %v2994
        %v2996 = vrot.slane %v2882, 2
        %v2997 = vrot.slane %v2883, 2
        %v2998 = vsel %vm860, %v2996, %v2997
        %v2999 = vrot.slane %v2884, 2
        %v3000 = vsel %vm860, %v2997, %v2999
        %v3001 = vrot.slane %v2885, 2
        %v3002 = vrot.slane %v2886, 2
        %v3003 = vsel %vm860, %v3001, %v3002
        %v3004 = vrot.slane %v2887, 2
        %v3005 = vsel %vm860, %v3002, %v3004
        %v3006 = vrot.slane %v2888, 2
        %v3007 = vrot.slane %v2889, 2
        %v3008 = vsel %vm860, %v3006, %v3007
        %v3009 = vrot.slane %v2890, 2
        %v3010 = vsel %vm860, %v3007, %v3009
        %v3011 = vrot.slane %v2891, 2
        %v3012 = vrot.slane %v2892, 2
        %v3013 = vsel %vm860, %v3011, %v3012
        %v3014 = vrot.slane %v2893, 2
        %v3015 = vsel %vm860, %v3012, %v3014
        %v3016 = vrot.slane %v2894, 2
        %v3017 = vrot.slane %v2895, 2
        %v3018 = vsel %vm860, %v3016, %v3017
        %v3019 = vrot.slane %v2896, 2
        %v3020 = vsel %vm860, %v3017, %v3019
        %v3021 = vrot.slane %v2897, 2
        %v3022 = vrot.slane %v2898, 2
        %v3023 = vsel %vm860, %v3021, %v3022
        %v3024 = vrot.slane %v2899, 2
        %v3025 = vsel %vm860, %v3022, %v3024
        %v3026 = vrot.slane %v2900, 2
        %v3027 = vrot.slane %v2901, 2
        %v3028 = vsel %vm860, %v3026, %v3027
        %v3029 = vrot.slane %v2902, 2
        %v3030 = vsel %vm860, %v3027, %v3029
        %v3063 = vadd.f32 %v2819, %v2953
        %v3064 = vadd.f32 %v2820, %v2955
        %v3065 = vadd.f32 %v2821, %v2958
        %v3066 = vadd.f32 %v2822, %v2960
        %v3067 = vadd.f32 %v2823, %v2963
        %v3068 = vadd.f32 %v2824, %v2965
        %v3069 = vadd.f32 %v2825, %v2968
        %v3070 = vadd.f32 %v2826, %v2970
        %v3071 = vadd.f32 %v2827, %v2973
        %v3072 = vadd.f32 %v2828, %v2975
        %v3073 = vadd.f32 %v2829, %v2978
        %v3074 = vadd.f32 %v2830, %v2980
        %v3075 = vadd.f32 %v2831, %v2983
        %v3076 = vadd.f32 %v2832, %v2985
        %v3077 = vadd.f32 %v2833, %v2988
        %v3078 = vadd.f32 %v2834, %v2990
        %v3079 = vadd.f32 %v2835, %v2993
        %v3080 = vadd.f32 %v2836, %v2995
        %v3081 = vadd.f32 %v2837, %v2998
        %v3082 = vadd.f32 %v2838, %v3000
        %v3083 = vadd.f32 %v2839, %v3003
        %v3084 = vadd.f32 %v2840, %v3005
        %v3085 = vadd.f32 %v2841, %v3008
        %v3086 = vadd.f32 %v2842, %v3010
        %v3087 = vadd.f32 %v2843, %v3013
        %v3088 = vadd.f32 %v2844, %v3015
        %v3089 = vadd.f32 %v2845, %v3018
        %v3090 = vadd.f32 %v2846, %v3020
        %v3091 = vadd.f32 %v2847, %v3023
        %v3092 = vadd.f32 %v2848, %v3025
        %v3093 = vadd.f32 %v2849, %v3028
        %v3094 = vadd.f32 %v2850, %v3030
        %v3095 = vlaneseq
        %v3096 = vshrl.u32 %v3095, 7
        %v3097 = vsub.s32 5, %v3096
        %v3098 = vrot.slane %v444, %v3097
        %v3099 = vmul.f32 %v3098, %v389
        %v3100 = vmul.f32 %v3098, %v390
        %v3101 = vmul.f32 %v3098, %v391
        %v3102 = vmul.f32 %v3098, %v392
        %v3103 = vmul.f32 %v3098, %v393
        %v3104 = vmul.f32 %v3098, %v394
        %v3105 = vmul.f32 %v3098, %v395
        %v3106 = vmul.f32 %v3098, %v396
        %v3107 = vmul.f32 %v3098, %v397
        %v3108 = vmul.f32 %v3098, %v398
        %v3109 = vmul.f32 %v3098, %v399
        %v3110 = vmul.f32 %v3098, %v400
        %v3111 = vmul.f32 %v3098, %v401
        %v3112 = vmul.f32 %v3098, %v402
        %v3113 = vmul.f32 %v3098, %v403
        %v3114 = vmul.f32 %v3098, %v404
        %v3115 = vmul.f32 %v3098, %v405
        %v3116 = vmul.f32 %v3098, %v406
        %v3117 = vmul.f32 %v3098, %v407
        %v3118 = vmul.f32 %v3098, %v408
        %v3119 = vmul.f32 %v3098, %v409
        %v3120 = vmul.f32 %v3098, %v410
        %v3121 = vmul.f32 %v3098, %v411
        %v3122 = vmul.f32 %v3098, %v412
        %v3123 = vmul.f32 %v3098, %v413
        %v3124 = vmul.f32 %v3098, %v414
        %v3125 = vmul.f32 %v3098, %v415
        %v3126 = vmul.f32 %v3098, %v416
        %v3127 = vmul.f32 %v3098, %v417
        %v3128 = vmul.f32 %v3098, %v418
        %v3129 = vmul.f32 %v3098, %v419
        %v3130 = vmul.f32 %v3098, %v420
        %v3131 = vmul.f32 %v3098, %v421
        %v3132 = vmul.f32 %v3098, %v422
        %v3133 = vmul.f32 %v3098, %v423
        %v3134 = vmul.f32 %v3098, %v424
        %v3135 = vmul.f32 %v3098, %v425
        %v3136 = vmul.f32 %v3098, %v426
        %v3137 = vmul.f32 %v3098, %v427
        %v3138 = vmul.f32 %v3098, %v428
        %v3139 = vmul.f32 %v3098, %v429
        %v3140 = vmul.f32 %v3098, %v430
        %v3141 = vmul.f32 %v3098, %v431
        %v3142 = vmul.f32 %v3098, %v432
        %v3143 = vmul.f32 %v3098, %v433
        %v3144 = vmul.f32 %v3098, %v434
        %v3145 = vmul.f32 %v3098, %v435
        %v3146 = vmul.f32 %v3098, %v436
        %v3195 = vrot.slane %v3099, 3
        %v3196 = vrot.slane %v3100, 3
        %v3197 = vsel %vm1105, %v3195, %v3196
        %v3198 = vrot.slane %v3101, 3
        %v3199 = vsel %vm1105, %v3196, %v3198
        %v3200 = vrot.slane %v3102, 3
        %v3201 = vrot.slane %v3103, 3
        %v3202 = vsel %vm1105, %v3200, %v3201
        %v3203 = vrot.slane %v3104, 3
        %v3204 = vsel %vm1105, %v3201, %v3203
        %v3205 = vrot.slane %v3105, 3
        %v3206 = vrot.slane %v3106, 3
        %v3207 = vsel %vm1105, %v3205, %v3206
        %v3208 = vrot.slane %v3107, 3
        %v3209 = vsel %vm1105, %v3206, %v3208
        %v3210 = vrot.slane %v3108, 3
        %v3211 = vrot.slane %v3109, 3
        %v3212 = vsel %vm1105, %v3210, %v3211
        %v3213 = vrot.slane %v3110, 3
        %v3214 = vsel %vm1105, %v3211, %v3213
        %v3215 = vrot.slane %v3111, 3
        %v3216 = vrot.slane %v3112, 3
        %v3217 = vsel %vm1105, %v3215, %v3216
        %v3218 = vrot.slane %v3113, 3
        %v3219 = vsel %vm1105, %v3216, %v3218
        %v3220 = vrot.slane %v3114, 3
        %v3221 = vrot.slane %v3115, 3
        %v3222 = vsel %vm1105, %v3220, %v3221
        %v3223 = vrot.slane %v3116, 3
        %v3224 = vsel %vm1105, %v3221, %v3223
        %v3225 = vrot.slane %v3117, 3
        %v3226 = vrot.slane %v3118, 3
        %v3227 = vsel %vm1105, %v3225, %v3226
        %v3228 = vrot.slane %v3119, 3
        %v3229 = vsel %vm1105, %v3226, %v3228
        %v3230 = vrot.slane %v3120, 3
        %v3231 = vrot.slane %v3121, 3
        %v3232 = vsel %vm1105, %v3230, %v3231
        %v3233 = vrot.slane %v3122, 3
        %v3234 = vsel %vm1105, %v3231, %v3233
        %v3235 = vrot.slane %v3123, 3
        %v3236 = vrot.slane %v3124, 3
        %v3237 = vsel %vm1105, %v3235, %v3236
        %v3238 = vrot.slane %v3125, 3
        %v3239 = vsel %vm1105, %v3236, %v3238
        %v3240 = vrot.slane %v3126, 3
        %v3241 = vrot.slane %v3127, 3
        %v3242 = vsel %vm1105, %v3240, %v3241
        %v3243 = vrot.slane %v3128, 3
        %v3244 = vsel %vm1105, %v3241, %v3243
        %v3245 = vrot.slane %v3129, 3
        %v3246 = vrot.slane %v3130, 3
        %v3247 = vsel %vm1105, %v3245, %v3246
        %v3248 = vrot.slane %v3131, 3
        %v3249 = vsel %vm1105, %v3246, %v3248
        %v3250 = vrot.slane %v3132, 3
        %v3251 = vrot.slane %v3133, 3
        %v3252 = vsel %vm1105, %v3250, %v3251
        %v3253 = vrot.slane %v3134, 3
        %v3254 = vsel %vm1105, %v3251, %v3253
        %v3255 = vrot.slane %v3135, 3
        %v3256 = vrot.slane %v3136, 3
        %v3257 = vsel %vm1105, %v3255, %v3256
        %v3258 = vrot.slane %v3137, 3
        %v3259 = vsel %vm1105, %v3256, %v3258
        %v3260 = vrot.slane %v3138, 3
        %v3261 = vrot.slane %v3139, 3
        %v3262 = vsel %vm1105, %v3260, %v3261
        %v3263 = vrot.slane %v3140, 3
        %v3264 = vsel %vm1105, %v3261, %v3263
        %v3265 = vrot.slane %v3141, 3
        %v3266 = vrot.slane %v3142, 3
        %v3267 = vsel %vm1105, %v3265, %v3266
        %v3268 = vrot.slane %v3143, 3
        %v3269 = vsel %vm1105, %v3266, %v3268
        %v3270 = vrot.slane %v3144, 3
        %v3271 = vrot.slane %v3145, 3
        %v3272 = vsel %vm1105, %v3270, %v3271
        %v3273 = vrot.slane %v3146, 3
        %v3274 = vsel %vm1105, %v3271, %v3273
        %v3307 = vadd.f32 %v3063, %v3197
        %v3308 = vadd.f32 %v3064, %v3199
        %v3309 = vadd.f32 %v3065, %v3202
        %v3310 = vadd.f32 %v3066, %v3204
        %v3311 = vadd.f32 %v3067, %v3207
        %v3312 = vadd.f32 %v3068, %v3209
        %v3313 = vadd.f32 %v3069, %v3212
        %v3314 = vadd.f32 %v3070, %v3214
        %v3315 = vadd.f32 %v3071, %v3217
        %v3316 = vadd.f32 %v3072, %v3219
        %v3317 = vadd.f32 %v3073, %v3222
        %v3318 = vadd.f32 %v3074, %v3224
        %v3319 = vadd.f32 %v3075, %v3227
        %v3320 = vadd.f32 %v3076, %v3229
        %v3321 = vadd.f32 %v3077, %v3232
        %v3322 = vadd.f32 %v3078, %v3234
        %v3323 = vadd.f32 %v3079, %v3237
        %v3324 = vadd.f32 %v3080, %v3239
        %v3325 = vadd.f32 %v3081, %v3242
        %v3326 = vadd.f32 %v3082, %v3244
        %v3327 = vadd.f32 %v3083, %v3247
        %v3328 = vadd.f32 %v3084, %v3249
        %v3329 = vadd.f32 %v3085, %v3252
        %v3330 = vadd.f32 %v3086, %v3254
        %v3331 = vadd.f32 %v3087, %v3257
        %v3332 = vadd.f32 %v3088, %v3259
        %v3333 = vadd.f32 %v3089, %v3262
        %v3334 = vadd.f32 %v3090, %v3264
        %v3335 = vadd.f32 %v3091, %v3267
        %v3336 = vadd.f32 %v3092, %v3269
        %v3337 = vadd.f32 %v3093, %v3272
        %v3338 = vadd.f32 %v3094, %v3274
        %v3339 = vlaneseq
        %v3340 = vshrl.u32 %v3339, 7
        %v3341 = vsub.s32 6, %v3340
        %v3342 = vrot.slane %v444, %v3341
        %v3343 = vmul.f32 %v3342, %v389
        %v3344 = vmul.f32 %v3342, %v390
        %v3345 = vmul.f32 %v3342, %v391
        %v3346 = vmul.f32 %v3342, %v392
        %v3347 = vmul.f32 %v3342, %v393
        %v3348 = vmul.f32 %v3342, %v394
        %v3349 = vmul.f32 %v3342, %v395
        %v3350 = vmul.f32 %v3342, %v396
        %v3351 = vmul.f32 %v3342, %v397
        %v3352 = vmul.f32 %v3342, %v398
        %v3353 = vmul.f32 %v3342, %v399
        %v3354 = vmul.f32 %v3342, %v400
        %v3355 = vmul.f32 %v3342, %v401
        %v3356 = vmul.f32 %v3342, %v402
        %v3357 = vmul.f32 %v3342, %v403
        %v3358 = vmul.f32 %v3342, %v404
        %v3359 = vmul.f32 %v3342, %v405
        %v3360 = vmul.f32 %v3342, %v406
        %v3361 = vmul.f32 %v3342, %v407
        %v3362 = vmul.f32 %v3342, %v408
        %v3363 = vmul.f32 %v3342, %v409
        %v3364 = vmul.f32 %v3342, %v410
        %v3365 = vmul.f32 %v3342, %v411
        %v3366 = vmul.f32 %v3342, %v412
        %v3367 = vmul.f32 %v3342, %v413
        %v3368 = vmul.f32 %v3342, %v414
        %v3369 = vmul.f32 %v3342, %v415
        %v3370 = vmul.f32 %v3342, %v416
        %v3371 = vmul.f32 %v3342, %v417
        %v3372 = vmul.f32 %v3342, %v418
        %v3373 = vmul.f32 %v3342, %v419
        %v3374 = vmul.f32 %v3342, %v420
        %v3375 = vmul.f32 %v3342, %v421
        %v3376 = vmul.f32 %v3342, %v422
        %v3377 = vmul.f32 %v3342, %v423
        %v3378 = vmul.f32 %v3342, %v424
        %v3379 = vmul.f32 %v3342, %v425
        %v3380 = vmul.f32 %v3342, %v426
        %v3381 = vmul.f32 %v3342, %v427
        %v3382 = vmul.f32 %v3342, %v428
        %v3383 = vmul.f32 %v3342, %v429
        %v3384 = vmul.f32 %v3342, %v430
        %v3385 = vmul.f32 %v3342, %v431
        %v3386 = vmul.f32 %v3342, %v432
        %v3387 = vmul.f32 %v3342, %v433
        %v3388 = vmul.f32 %v3342, %v434
        %v3389 = vmul.f32 %v3342, %v435
        %v3390 = vmul.f32 %v3342, %v436
        %v3439 = vrot.slane %v3343, 4
        %v3440 = vrot.slane %v3344, 4
        %v3441 = vsel %vm1350, %v3439, %v3440
        %v3442 = vrot.slane %v3345, 4
        %v3443 = vsel %vm1350, %v3440, %v3442
        %v3444 = vrot.slane %v3346, 4
        %v3445 = vrot.slane %v3347, 4
        %v3446 = vsel %vm1350, %v3444, %v3445
        %v3447 = vrot.slane %v3348, 4
        %v3448 = vsel %vm1350, %v3445, %v3447
        %v3449 = vrot.slane %v3349, 4
        %v3450 = vrot.slane %v3350, 4
        %v3451 = vsel %vm1350, %v3449, %v3450
        %v3452 = vrot.slane %v3351, 4
        %v3453 = vsel %vm1350, %v3450, %v3452
        %v3454 = vrot.slane %v3352, 4
        %v3455 = vrot.slane %v3353, 4
        %v3456 = vsel %vm1350, %v3454, %v3455
        %v3457 = vrot.slane %v3354, 4
        %v3458 = vsel %vm1350, %v3455, %v3457
        %v3459 = vrot.slane %v3355, 4
        %v3460 = vrot.slane %v3356, 4
        %v3461 = vsel %vm1350, %v3459, %v3460
        %v3462 = vrot.slane %v3357, 4
        %v3463 = vsel %vm1350, %v3460, %v3462
        %v3464 = vrot.slane %v3358, 4
        %v3465 = vrot.slane %v3359, 4
        %v3466 = vsel %vm1350, %v3464, %v3465
        %v3467 = vrot.slane %v3360, 4
        %v3468 = vsel %vm1350, %v3465, %v3467
        %v3469 = vrot.slane %v3361, 4
        %v3470 = vrot.slane %v3362, 4
        %v3471 = vsel %vm1350, %v3469, %v3470
        %v3472 = vrot.slane %v3363, 4
        %v3473 = vsel %vm1350, %v3470, %v3472
        %v3474 = vrot.slane %v3364, 4
        %v3475 = vrot.slane %v3365, 4
        %v3476 = vsel %vm1350, %v3474, %v3475
        %v3477 = vrot.slane %v3366, 4
        %v3478 = vsel %vm1350, %v3475, %v3477
        %v3479 = vrot.slane %v3367, 4
        %v3480 = vrot.slane %v3368, 4
        %v3481 = vsel %vm1350, %v3479, %v3480
        %v3482 = vrot.slane %v3369, 4
        %v3483 = vsel %vm1350, %v3480, %v3482
        %v3484 = vrot.slane %v3370, 4
        %v3485 = vrot.slane %v3371, 4
        %v3486 = vsel %vm1350, %v3484, %v3485
        %v3487 = vrot.slane %v3372, 4
        %v3488 = vsel %vm1350, %v3485, %v3487
        %v3489 = vrot.slane %v3373, 4
        %v3490 = vrot.slane %v3374, 4
        %v3491 = vsel %vm1350, %v3489, %v3490
        %v3492 = vrot.slane %v3375, 4
        %v3493 = vsel %vm1350, %v3490, %v3492
        %v3494 = vrot.slane %v3376, 4
        %v3495 = vrot.slane %v3377, 4
        %v3496 = vsel %vm1350, %v3494, %v3495
        %v3497 = vrot.slane %v3378, 4
        %v3498 = vsel %vm1350, %v3495, %v3497
        %v3499 = vrot.slane %v3379, 4
        %v3500 = vrot.slane %v3380, 4
        %v3501 = vsel %vm1350, %v3499, %v3500
        %v3502 = vrot.slane %v3381, 4
        %v3503 = vsel %vm1350, %v3500, %v3502
        %v3504 = vrot.slane %v3382, 4
        %v3505 = vrot.slane %v3383, 4
        %v3506 = vsel %vm1350, %v3504, %v3505
        %v3507 = vrot.slane %v3384, 4
        %v3508 = vsel %vm1350, %v3505, %v3507
        %v3509 = vrot.slane %v3385, 4
        %v3510 = vrot.slane %v3386, 4
        %v3511 = vsel %vm1350, %v3509, %v3510
        %v3512 = vrot.slane %v3387, 4
        %v3513 = vsel %vm1350, %v3510, %v3512
        %v3514 = vrot.slane %v3388, 4
        %v3515 = vrot.slane %v3389, 4
        %v3516 = vsel %vm1350, %v3514, %v3515
        %v3517 = vrot.slane %v3390, 4
        %v3518 = vsel %vm1350, %v3515, %v3517
        %v3551 = vadd.f32 %v3307, %v3441
        %v3552 = vadd.f32 %v3308, %v3443
        %v3553 = vadd.f32 %v3309, %v3446
        %v3554 = vadd.f32 %v3310, %v3448
        %v3555 = vadd.f32 %v3311, %v3451
        %v3556 = vadd.f32 %v3312, %v3453
        %v3557 = vadd.f32 %v3313, %v3456
        %v3558 = vadd.f32 %v3314, %v3458
        %v3559 = vadd.f32 %v3315, %v3461
        %v3560 = vadd.f32 %v3316, %v3463
        %v3561 = vadd.f32 %v3317, %v3466
        %v3562 = vadd.f32 %v3318, %v3468
        %v3563 = vadd.f32 %v3319, %v3471
        %v3564 = vadd.f32 %v3320, %v3473
        %v3565 = vadd.f32 %v3321, %v3476
        %v3566 = vadd.f32 %v3322, %v3478
        %v3567 = vadd.f32 %v3323, %v3481
        %v3568 = vadd.f32 %v3324, %v3483
        %v3569 = vadd.f32 %v3325, %v3486
        %v3570 = vadd.f32 %v3326, %v3488
        %v3571 = vadd.f32 %v3327, %v3491
        %v3572 = vadd.f32 %v3328, %v3493
        %v3573 = vadd.f32 %v3329, %v3496
        %v3574 = vadd.f32 %v3330, %v3498
        %v3575 = vadd.f32 %v3331, %v3501
        %v3576 = vadd.f32 %v3332, %v3503
        %v3577 = vadd.f32 %v3333, %v3506
        %v3578 = vadd.f32 %v3334, %v3508
        %v3579 = vadd.f32 %v3335, %v3511
        %v3580 = vadd.f32 %v3336, %v3513
        %v3581 = vadd.f32 %v3337, %v3516
        %v3582 = vadd.f32 %v3338, %v3518
        %v3583 = vlaneseq
        %v3584 = vshrl.u32 %v3583, 7
        %v3585 = vsub.s32 7, %v3584
        %v3586 = vrot.slane %v444, %v3585
        %v3587 = vmul.f32 %v3586, %v392
        %v3588 = vmul.f32 %v3586, %v393
        %v3589 = vmul.f32 %v3586, %v395
        %v3590 = vmul.f32 %v3586, %v396
        %v3591 = vmul.f32 %v3586, %v398
        %v3592 = vmul.f32 %v3586, %v399
        %v3593 = vmul.f32 %v3586, %v401
        %v3594 = vmul.f32 %v3586, %v402
        %v3595 = vmul.f32 %v3586, %v404
        %v3596 = vmul.f32 %v3586, %v405
        %v3597 = vmul.f32 %v3586, %v407
        %v3598 = vmul.f32 %v3586, %v408
        %v3599 = vmul.f32 %v3586, %v410
        %v3600 = vmul.f32 %v3586, %v411
        %v3601 = vmul.f32 %v3586, %v413
        %v3602 = vmul.f32 %v3586, %v414
        %v3603 = vmul.f32 %v3586, %v416
        %v3604 = vmul.f32 %v3586, %v417
        %v3605 = vmul.f32 %v3586, %v419
        %v3606 = vmul.f32 %v3586, %v420
        %v3607 = vmul.f32 %v3586, %v422
        %v3608 = vmul.f32 %v3586, %v423
        %v3609 = vmul.f32 %v3586, %v425
        %v3610 = vmul.f32 %v3586, %v426
        %v3611 = vmul.f32 %v3586, %v428
        %v3612 = vmul.f32 %v3586, %v429
        %v3613 = vmul.f32 %v3586, %v431
        %v3614 = vmul.f32 %v3586, %v432
        %v3615 = vmul.f32 %v3586, %v434
        %v3616 = vmul.f32 %v3586, %v435
        %v3617 = vmul.f32 %v3586, %v437
        %v3618 = vmul.f32 %v3586, %v438
        %v3619 = vadd.f32 %v3551, %v3587
        %v3620 = vadd.f32 %v3552, %v3588
        %v3621 = vadd.f32 %v3553, %v3589
        %v3622 = vadd.f32 %v3554, %v3590
        %v3623 = vadd.f32 %v3555, %v3591
        %v3624 = vadd.f32 %v3556, %v3592
        %v3625 = vadd.f32 %v3557, %v3593
        %v3626 = vadd.f32 %v3558, %v3594
        %v3627 = vadd.f32 %v3559, %v3595
        %v3628 = vadd.f32 %v3560, %v3596
        %v3629 = vadd.f32 %v3561, %v3597
        %v3630 = vadd.f32 %v3562, %v3598
        %v3631 = vadd.f32 %v3563, %v3599
        %v3632 = vadd.f32 %v3564, %v3600
        %v3633 = vadd.f32 %v3565, %v3601
        %v3634 = vadd.f32 %v3566, %v3602
        %v3635 = vadd.f32 %v3567, %v3603
        %v3636 = vadd.f32 %v3568, %v3604
        %v3637 = vadd.f32 %v3569, %v3605
        %v3638 = vadd.f32 %v3570, %v3606
        %v3639 = vadd.f32 %v3571, %v3607
        %v3640 = vadd.f32 %v3572, %v3608
        %v3641 = vadd.f32 %v3573, %v3609
        %v3642 = vadd.f32 %v3574, %v3610
        %v3643 = vadd.f32 %v3575, %v3611
        %v3644 = vadd.f32 %v3576, %v3612
        %v3645 = vadd.f32 %v3577, %v3613
        %v3646 = vadd.f32 %v3578, %v3614
        %v3647 = vadd.f32 %v3579, %v3615
        %v3648 = vadd.f32 %v3580, %v3616
        %v3649 = vadd.f32 %v3581, %v3617
        %v3650 = vadd.f32 %v3582, %v3618
        %v3651 = vlaneseq
        %v3652 = vshrl.u32 %v3651, 7
        %v3653 = vsub.s32 0, %v3652
        %v3654 = vrot.slane %v445, %v3653
        %v3655 = vmul.f32 %v3654, %v392
        %v3656 = vmul.f32 %v3654, %v393
        %v3657 = vmul.f32 %v3654, %v394
        %v3658 = vmul.f32 %v3654, %v395
        %v3659 = vmul.f32 %v3654, %v396
        %v3660 = vmul.f32 %v3654, %v397
        %v3661 = vmul.f32 %v3654, %v398
        %v3662 = vmul.f32 %v3654, %v399
        %v3663 = vmul.f32 %v3654, %v400
        %v3664 = vmul.f32 %v3654, %v401
        %v3665 = vmul.f32 %v3654, %v402
        %v3666 = vmul.f32 %v3654, %v403
        %v3667 = vmul.f32 %v3654, %v404
        %v3668 = vmul.f32 %v3654, %v405
        %v3669 = vmul.f32 %v3654, %v406
        %v3670 = vmul.f32 %v3654, %v407
        %v3671 = vmul.f32 %v3654, %v408
        %v3672 = vmul.f32 %v3654, %v409
        %v3673 = vmul.f32 %v3654, %v410
        %v3674 = vmul.f32 %v3654, %v411
        %v3675 = vmul.f32 %v3654, %v412
        %v3676 = vmul.f32 %v3654, %v413
        %v3677 = vmul.f32 %v3654, %v414
        %v3678 = vmul.f32 %v3654, %v415
        %v3679 = vmul.f32 %v3654, %v416
        %v3680 = vmul.f32 %v3654, %v417
        %v3681 = vmul.f32 %v3654, %v418
        %v3682 = vmul.f32 %v3654, %v419
        %v3683 = vmul.f32 %v3654, %v420
        %v3684 = vmul.f32 %v3654, %v421
        %v3685 = vmul.f32 %v3654, %v422
        %v3686 = vmul.f32 %v3654, %v423
        %v3687 = vmul.f32 %v3654, %v424
        %v3688 = vmul.f32 %v3654, %v425
        %v3689 = vmul.f32 %v3654, %v426
        %v3690 = vmul.f32 %v3654, %v427
        %v3691 = vmul.f32 %v3654, %v428
        %v3692 = vmul.f32 %v3654, %v429
        %v3693 = vmul.f32 %v3654, %v430
        %v3694 = vmul.f32 %v3654, %v431
        %v3695 = vmul.f32 %v3654, %v432
        %v3696 = vmul.f32 %v3654, %v433
        %v3697 = vmul.f32 %v3654, %v434
        %v3698 = vmul.f32 %v3654, %v435
        %v3699 = vmul.f32 %v3654, %v436
        %v3700 = vmul.f32 %v3654, %v437
        %v3701 = vmul.f32 %v3654, %v438
        %v3702 = vmul.f32 %v3654, %v439
        %v3751 = vrot.slane %v3655, 1
        %v3752 = vrot.slane %v3656, 1
        %v3753 = vsel %vm615, %v3751, %v3752
        %v3754 = vrot.slane %v3657, 1
        %v3755 = vsel %vm615, %v3752, %v3754
        %v3756 = vrot.slane %v3658, 1
        %v3757 = vrot.slane %v3659, 1
        %v3758 = vsel %vm615, %v3756, %v3757
        %v3759 = vrot.slane %v3660, 1
        %v3760 = vsel %vm615, %v3757, %v3759
        %v3761 = vrot.slane %v3661, 1
        %v3762 = vrot.slane %v3662, 1
        %v3763 = vsel %vm615, %v3761, %v3762
        %v3764 = vrot.slane %v3663, 1
        %v3765 = vsel %vm615, %v3762, %v3764
        %v3766 = vrot.slane %v3664, 1
        %v3767 = vrot.slane %v3665, 1
        %v3768 = vsel %vm615, %v3766, %v3767
        %v3769 = vrot.slane %v3666, 1
        %v3770 = vsel %vm615, %v3767, %v3769
        %v3771 = vrot.slane %v3667, 1
        %v3772 = vrot.slane %v3668, 1
        %v3773 = vsel %vm615, %v3771, %v3772
        %v3774 = vrot.slane %v3669, 1
        %v3775 = vsel %vm615, %v3772, %v3774
        %v3776 = vrot.slane %v3670, 1
        %v3777 = vrot.slane %v3671, 1
        %v3778 = vsel %vm615, %v3776, %v3777
        %v3779 = vrot.slane %v3672, 1
        %v3780 = vsel %vm615, %v3777, %v3779
        %v3781 = vrot.slane %v3673, 1
        %v3782 = vrot.slane %v3674, 1
        %v3783 = vsel %vm615, %v3781, %v3782
        %v3784 = vrot.slane %v3675, 1
        %v3785 = vsel %vm615, %v3782, %v3784
        %v3786 = vrot.slane %v3676, 1
        %v3787 = vrot.slane %v3677, 1
        %v3788 = vsel %vm615, %v3786, %v3787
        %v3789 = vrot.slane %v3678, 1
        %v3790 = vsel %vm615, %v3787, %v3789
        %v3791 = vrot.slane %v3679, 1
        %v3792 = vrot.slane %v3680, 1
        %v3793 = vsel %vm615, %v3791, %v3792
        %v3794 = vrot.slane %v3681, 1
        %v3795 = vsel %vm615, %v3792, %v3794
        %v3796 = vrot.slane %v3682, 1
        %v3797 = vrot.slane %v3683, 1
        %v3798 = vsel %vm615, %v3796, %v3797
        %v3799 = vrot.slane %v3684, 1
        %v3800 = vsel %vm615, %v3797, %v3799
        %v3801 = vrot.slane %v3685, 1
        %v3802 = vrot.slane %v3686, 1
        %v3803 = vsel %vm615, %v3801, %v3802
        %v3804 = vrot.slane %v3687, 1
        %v3805 = vsel %vm615, %v3802, %v3804
        %v3806 = vrot.slane %v3688, 1
        %v3807 = vrot.slane %v3689, 1
        %v3808 = vsel %vm615, %v3806, %v3807
        %v3809 = vrot.slane %v3690, 1
        %v3810 = vsel %vm615, %v3807, %v3809
        %v3811 = vrot.slane %v3691, 1
        %v3812 = vrot.slane %v3692, 1
        %v3813 = vsel %vm615, %v3811, %v3812
        %v3814 = vrot.slane %v3693, 1
        %v3815 = vsel %vm615, %v3812, %v3814
        %v3816 = vrot.slane %v3694, 1
        %v3817 = vrot.slane %v3695, 1
        %v3818 = vsel %vm615, %v3816, %v3817
        %v3819 = vrot.slane %v3696, 1
        %v3820 = vsel %vm615, %v3817, %v3819
        %v3821 = vrot.slane %v3697, 1
        %v3822 = vrot.slane %v3698, 1
        %v3823 = vsel %vm615, %v3821, %v3822
        %v3824 = vrot.slane %v3699, 1
        %v3825 = vsel %vm615, %v3822, %v3824
        %v3826 = vrot.slane %v3700, 1
        %v3827 = vrot.slane %v3701, 1
        %v3828 = vsel %vm615, %v3826, %v3827
        %v3829 = vrot.slane %v3702, 1
        %v3830 = vsel %vm615, %v3827, %v3829
        %v3863 = vadd.f32 %v3619, %v3753
        %v3864 = vadd.f32 %v3620, %v3755
        %v3865 = vadd.f32 %v3621, %v3758
        %v3866 = vadd.f32 %v3622, %v3760
        %v3867 = vadd.f32 %v3623, %v3763
        %v3868 = vadd.f32 %v3624, %v3765
        %v3869 = vadd.f32 %v3625, %v3768
        %v3870 = vadd.f32 %v3626, %v3770
        %v3871 = vadd.f32 %v3627, %v3773
        %v3872 = vadd.f32 %v3628, %v3775
        %v3873 = vadd.f32 %v3629, %v3778
        %v3874 = vadd.f32 %v3630, %v3780
        %v3875 = vadd.f32 %v3631, %v3783
        %v3876 = vadd.f32 %v3632, %v3785
        %v3877 = vadd.f32 %v3633, %v3788
        %v3878 = vadd.f32 %v3634, %v3790
        %v3879 = vadd.f32 %v3635, %v3793
        %v3880 = vadd.f32 %v3636, %v3795
        %v3881 = vadd.f32 %v3637, %v3798
        %v3882 = vadd.f32 %v3638, %v3800
        %v3883 = vadd.f32 %v3639, %v3803
        %v3884 = vadd.f32 %v3640, %v3805
        %v3885 = vadd.f32 %v3641, %v3808
        %v3886 = vadd.f32 %v3642, %v3810
        %v3887 = vadd.f32 %v3643, %v3813
        %v3888 = vadd.f32 %v3644, %v3815
        %v3889 = vadd.f32 %v3645, %v3818
        %v3890 = vadd.f32 %v3646, %v3820
        %v3891 = vadd.f32 %v3647, %v3823
        %v3892 = vadd.f32 %v3648, %v3825
        %v3893 = vadd.f32 %v3649, %v3828
        %v3894 = vadd.f32 %v3650, %v3830
        %v3895 = vlaneseq
        %v3896 = vshrl.u32 %v3895, 7
        %v3897 = vsub.s32 1, %v3896
        %v3898 = vrot.slane %v445, %v3897
        %v3899 = vmul.f32 %v3898, %v392
        %v3900 = vmul.f32 %v3898, %v393
        %v3901 = vmul.f32 %v3898, %v394
        %v3902 = vmul.f32 %v3898, %v395
        %v3903 = vmul.f32 %v3898, %v396
        %v3904 = vmul.f32 %v3898, %v397
        %v3905 = vmul.f32 %v3898, %v398
        %v3906 = vmul.f32 %v3898, %v399
        %v3907 = vmul.f32 %v3898, %v400
        %v3908 = vmul.f32 %v3898, %v401
        %v3909 = vmul.f32 %v3898, %v402
        %v3910 = vmul.f32 %v3898, %v403
        %v3911 = vmul.f32 %v3898, %v404
        %v3912 = vmul.f32 %v3898, %v405
        %v3913 = vmul.f32 %v3898, %v406
        %v3914 = vmul.f32 %v3898, %v407
        %v3915 = vmul.f32 %v3898, %v408
        %v3916 = vmul.f32 %v3898, %v409
        %v3917 = vmul.f32 %v3898, %v410
        %v3918 = vmul.f32 %v3898, %v411
        %v3919 = vmul.f32 %v3898, %v412
        %v3920 = vmul.f32 %v3898, %v413
        %v3921 = vmul.f32 %v3898, %v414
        %v3922 = vmul.f32 %v3898, %v415
        %v3923 = vmul.f32 %v3898, %v416
        %v3924 = vmul.f32 %v3898, %v417
        %v3925 = vmul.f32 %v3898, %v418
        %v3926 = vmul.f32 %v3898, %v419
        %v3927 = vmul.f32 %v3898, %v420
        %v3928 = vmul.f32 %v3898, %v421
        %v3929 = vmul.f32 %v3898, %v422
        %v3930 = vmul.f32 %v3898, %v423
        %v3931 = vmul.f32 %v3898, %v424
        %v3932 = vmul.f32 %v3898, %v425
        %v3933 = vmul.f32 %v3898, %v426
        %v3934 = vmul.f32 %v3898, %v427
        %v3935 = vmul.f32 %v3898, %v428
        %v3936 = vmul.f32 %v3898, %v429
        %v3937 = vmul.f32 %v3898, %v430
        %v3938 = vmul.f32 %v3898, %v431
        %v3939 = vmul.f32 %v3898, %v432
        %v3940 = vmul.f32 %v3898, %v433
        %v3941 = vmul.f32 %v3898, %v434
        %v3942 = vmul.f32 %v3898, %v435
        %v3943 = vmul.f32 %v3898, %v436
        %v3944 = vmul.f32 %v3898, %v437
        %v3945 = vmul.f32 %v3898, %v438
        %v3946 = vmul.f32 %v3898, %v439
        %v3995 = vrot.slane %v3899, 2
        %v3996 = vrot.slane %v3900, 2
        %v3997 = vsel %vm860, %v3995, %v3996
        %v3998 = vrot.slane %v3901, 2
        %v3999 = vsel %vm860, %v3996, %v3998
        %v4000 = vrot.slane %v3902, 2
        %v4001 = vrot.slane %v3903, 2
        %v4002 = vsel %vm860, %v4000, %v4001
        %v4003 = vrot.slane %v3904, 2
        %v4004 = vsel %vm860, %v4001, %v4003
        %v4005 = vrot.slane %v3905, 2
        %v4006 = vrot.slane %v3906, 2
        %v4007 = vsel %vm860, %v4005, %v4006
        %v4008 = vrot.slane %v3907, 2
        %v4009 = vsel %vm860, %v4006, %v4008
        %v4010 = vrot.slane %v3908, 2
        %v4011 = vrot.slane %v3909, 2
        %v4012 = vsel %vm860, %v4010, %v4011
        %v4013 = vrot.slane %v3910, 2
        %v4014 = vsel %vm860, %v4011, %v4013
        %v4015 = vrot.slane %v3911, 2
        %v4016 = vrot.slane %v3912, 2
        %v4017 = vsel %vm860, %v4015, %v4016
        %v4018 = vrot.slane %v3913, 2
        %v4019 = vsel %vm860, %v4016, %v4018
        %v4020 = vrot.slane %v3914, 2
        %v4021 = vrot.slane %v3915, 2
        %v4022 = vsel %vm860, %v4020, %v4021
        %v4023 = vrot.slane %v3916, 2
        %v4024 = vsel %vm860, %v4021, %v4023
        %v4025 = vrot.slane %v3917, 2
        %v4026 = vrot.slane %v3918, 2
        %v4027 = vsel %vm860, %v4025, %v4026
        %v4028 = vrot.slane %v3919, 2
        %v4029 = vsel %vm860, %v4026, %v4028
        %v4030 = vrot.slane %v3920, 2
        %v4031 = vrot.slane %v3921, 2
        %v4032 = vsel %vm860, %v4030, %v4031
        %v4033 = vrot.slane %v3922, 2
        %v4034 = vsel %vm860, %v4031, %v4033
        %v4035 = vrot.slane %v3923, 2
        %v4036 = vrot.slane %v3924, 2
        %v4037 = vsel %vm860, %v4035, %v4036
        %v4038 = vrot.slane %v3925, 2
        %v4039 = vsel %vm860, %v4036, %v4038
        %v4040 = vrot.slane %v3926, 2
        %v4041 = vrot.slane %v3927, 2
        %v4042 = vsel %vm860, %v4040, %v4041
        %v4043 = vrot.slane %v3928, 2
        %v4044 = vsel %vm860, %v4041, %v4043
        %v4045 = vrot.slane %v3929, 2
        %v4046 = vrot.slane %v3930, 2
        %v4047 = vsel %vm860, %v4045, %v4046
        %v4048 = vrot.slane %v3931, 2
        %v4049 = vsel %vm860, %v4046, %v4048
        %v4050 = vrot.slane %v3932, 2
        %v4051 = vrot.slane %v3933, 2
        %v4052 = vsel %vm860, %v4050, %v4051
        %v4053 = vrot.slane %v3934, 2
        %v4054 = vsel %vm860, %v4051, %v4053
        %v4055 = vrot.slane %v3935, 2
        %v4056 = vrot.slane %v3936, 2
        %v4057 = vsel %vm860, %v4055, %v4056
        %v4058 = vrot.slane %v3937, 2
        %v4059 = vsel %vm860, %v4056, %v4058
        %v4060 = vrot.slane %v3938, 2
        %v4061 = vrot.slane %v3939, 2
        %v4062 = vsel %vm860, %v4060, %v4061
        %v4063 = vrot.slane %v3940, 2
        %v4064 = vsel %vm860, %v4061, %v4063
        %v4065 = vrot.slane %v3941, 2
        %v4066 = vrot.slane %v3942, 2
        %v4067 = vsel %vm860, %v4065, %v4066
        %v4068 = vrot.slane %v3943, 2
        %v4069 = vsel %vm860, %v4066, %v4068
        %v4070 = vrot.slane %v3944, 2
        %v4071 = vrot.slane %v3945, 2
        %v4072 = vsel %vm860, %v4070, %v4071
        %v4073 = vrot.slane %v3946, 2
        %v4074 = vsel %vm860, %v4071, %v4073
        %v4107 = vadd.f32 %v3863, %v3997
        %v4108 = vadd.f32 %v3864, %v3999
        %v4109 = vadd.f32 %v3865, %v4002
        %v4110 = vadd.f32 %v3866, %v4004
        %v4111 = vadd.f32 %v3867, %v4007
        %v4112 = vadd.f32 %v3868, %v4009
        %v4113 = vadd.f32 %v3869, %v4012
        %v4114 = vadd.f32 %v3870, %v4014
        %v4115 = vadd.f32 %v3871, %v4017
        %v4116 = vadd.f32 %v3872, %v4019
        %v4117 = vadd.f32 %v3873, %v4022
        %v4118 = vadd.f32 %v3874, %v4024
        %v4119 = vadd.f32 %v3875, %v4027
        %v4120 = vadd.f32 %v3876, %v4029
        %v4121 = vadd.f32 %v3877, %v4032
        %v4122 = vadd.f32 %v3878, %v4034
        %v4123 = vadd.f32 %v3879, %v4037
        %v4124 = vadd.f32 %v3880, %v4039
        %v4125 = vadd.f32 %v3881, %v4042
        %v4126 = vadd.f32 %v3882, %v4044
        %v4127 = vadd.f32 %v3883, %v4047
        %v4128 = vadd.f32 %v3884, %v4049
        %v4129 = vadd.f32 %v3885, %v4052
        %v4130 = vadd.f32 %v3886, %v4054
        %v4131 = vadd.f32 %v3887, %v4057
        %v4132 = vadd.f32 %v3888, %v4059
        %v4133 = vadd.f32 %v3889, %v4062
        %v4134 = vadd.f32 %v3890, %v4064
        %v4135 = vadd.f32 %v3891, %v4067
        %v4136 = vadd.f32 %v3892, %v4069
        %v4137 = vadd.f32 %v3893, %v4072
        %v4138 = vadd.f32 %v3894, %v4074
        %v4139 = vlaneseq
        %v4140 = vshrl.u32 %v4139, 7
        %v4141 = vsub.s32 2, %v4140
        %v4142 = vrot.slane %v445, %v4141
        %v4143 = vmul.f32 %v4142, %v392
        %v4144 = vmul.f32 %v4142, %v393
        %v4145 = vmul.f32 %v4142, %v394
        %v4146 = vmul.f32 %v4142, %v395
        %v4147 = vmul.f32 %v4142, %v396
        %v4148 = vmul.f32 %v4142, %v397
        %v4149 = vmul.f32 %v4142, %v398
        %v4150 = vmul.f32 %v4142, %v399
        %v4151 = vmul.f32 %v4142, %v400
        %v4152 = vmul.f32 %v4142, %v401
        %v4153 = vmul.f32 %v4142, %v402
        %v4154 = vmul.f32 %v4142, %v403
        %v4155 = vmul.f32 %v4142, %v404
        %v4156 = vmul.f32 %v4142, %v405
        %v4157 = vmul.f32 %v4142, %v406
        %v4158 = vmul.f32 %v4142, %v407
        %v4159 = vmul.f32 %v4142, %v408
        %v4160 = vmul.f32 %v4142, %v409
        %v4161 = vmul.f32 %v4142, %v410
        %v4162 = vmul.f32 %v4142, %v411
        %v4163 = vmul.f32 %v4142, %v412
        %v4164 = vmul.f32 %v4142, %v413
        %v4165 = vmul.f32 %v4142, %v414
        %v4166 = vmul.f32 %v4142, %v415
        %v4167 = vmul.f32 %v4142, %v416
        %v4168 = vmul.f32 %v4142, %v417
        %v4169 = vmul.f32 %v4142, %v418
        %v4170 = vmul.f32 %v4142, %v419
        %v4171 = vmul.f32 %v4142, %v420
        %v4172 = vmul.f32 %v4142, %v421
        %v4173 = vmul.f32 %v4142, %v422
        %v4174 = vmul.f32 %v4142, %v423
        %v4175 = vmul.f32 %v4142, %v424
        %v4176 = vmul.f32 %v4142, %v425
        %v4177 = vmul.f32 %v4142, %v426
        %v4178 = vmul.f32 %v4142, %v427
        %v4179 = vmul.f32 %v4142, %v428
        %v4180 = vmul.f32 %v4142, %v429
        %v4181 = vmul.f32 %v4142, %v430
        %v4182 = vmul.f32 %v4142, %v431
        %v4183 = vmul.f32 %v4142, %v432
        %v4184 = vmul.f32 %v4142, %v433
        %v4185 = vmul.f32 %v4142, %v434
        %v4186 = vmul.f32 %v4142, %v435
        %v4187 = vmul.f32 %v4142, %v436
        %v4188 = vmul.f32 %v4142, %v437
        %v4189 = vmul.f32 %v4142, %v438
        %v4190 = vmul.f32 %v4142, %v439
        %v4239 = vrot.slane %v4143, 3
        %v4240 = vrot.slane %v4144, 3
        %v4241 = vsel %vm1105, %v4239, %v4240
        %v4242 = vrot.slane %v4145, 3
        %v4243 = vsel %vm1105, %v4240, %v4242
        %v4244 = vrot.slane %v4146, 3
        %v4245 = vrot.slane %v4147, 3
        %v4246 = vsel %vm1105, %v4244, %v4245
        %v4247 = vrot.slane %v4148, 3
        %v4248 = vsel %vm1105, %v4245, %v4247
        %v4249 = vrot.slane %v4149, 3
        %v4250 = vrot.slane %v4150, 3
        %v4251 = vsel %vm1105, %v4249, %v4250
        %v4252 = vrot.slane %v4151, 3
        %v4253 = vsel %vm1105, %v4250, %v4252
        %v4254 = vrot.slane %v4152, 3
        %v4255 = vrot.slane %v4153, 3
        %v4256 = vsel %vm1105, %v4254, %v4255
        %v4257 = vrot.slane %v4154, 3
        %v4258 = vsel %vm1105, %v4255, %v4257
        %v4259 = vrot.slane %v4155, 3
        %v4260 = vrot.slane %v4156, 3
        %v4261 = vsel %vm1105, %v4259, %v4260
        %v4262 = vrot.slane %v4157, 3
        %v4263 = vsel %vm1105, %v4260, %v4262
        %v4264 = vrot.slane %v4158, 3
        %v4265 = vrot.slane %v4159, 3
        %v4266 = vsel %vm1105, %v4264, %v4265
        %v4267 = vrot.slane %v4160, 3
        %v4268 = vsel %vm1105, %v4265, %v4267
        %v4269 = vrot.slane %v4161, 3
        %v4270 = vrot.slane %v4162, 3
        %v4271 = vsel %vm1105, %v4269, %v4270
        %v4272 = vrot.slane %v4163, 3
        %v4273 = vsel %vm1105, %v4270, %v4272
        %v4274 = vrot.slane %v4164, 3
        %v4275 = vrot.slane %v4165, 3
        %v4276 = vsel %vm1105, %v4274, %v4275
        %v4277 = vrot.slane %v4166, 3
        %v4278 = vsel %vm1105, %v4275, %v4277
        %v4279 = vrot.slane %v4167, 3
        %v4280 = vrot.slane %v4168, 3
        %v4281 = vsel %vm1105, %v4279, %v4280
        %v4282 = vrot.slane %v4169, 3
        %v4283 = vsel %vm1105, %v4280, %v4282
        %v4284 = vrot.slane %v4170, 3
        %v4285 = vrot.slane %v4171, 3
        %v4286 = vsel %vm1105, %v4284, %v4285
        %v4287 = vrot.slane %v4172, 3
        %v4288 = vsel %vm1105, %v4285, %v4287
        %v4289 = vrot.slane %v4173, 3
        %v4290 = vrot.slane %v4174, 3
        %v4291 = vsel %vm1105, %v4289, %v4290
        %v4292 = vrot.slane %v4175, 3
        %v4293 = vsel %vm1105, %v4290, %v4292
        %v4294 = vrot.slane %v4176, 3
        %v4295 = vrot.slane %v4177, 3
        %v4296 = vsel %vm1105, %v4294, %v4295
        %v4297 = vrot.slane %v4178, 3
        %v4298 = vsel %vm1105, %v4295, %v4297
        %v4299 = vrot.slane %v4179, 3
        %v4300 = vrot.slane %v4180, 3
        %v4301 = vsel %vm1105, %v4299, %v4300
        %v4302 = vrot.slane %v4181, 3
        %v4303 = vsel %vm1105, %v4300, %v4302
        %v4304 = vrot.slane %v4182, 3
        %v4305 = vrot.slane %v4183, 3
        %v4306 = vsel %vm1105, %v4304, %v4305
        %v4307 = vrot.slane %v4184, 3
        %v4308 = vsel %vm1105, %v4305, %v4307
        %v4309 = vrot.slane %v4185, 3
        %v4310 = vrot.slane %v4186, 3
        %v4311 = vsel %vm1105, %v4309, %v4310
        %v4312 = vrot.slane %v4187, 3
        %v4313 = vsel %vm1105, %v4310, %v4312
        %v4314 = vrot.slane %v4188, 3
        %v4315 = vrot.slane %v4189, 3
        %v4316 = vsel %vm1105, %v4314, %v4315
        %v4317 = vrot.slane %v4190, 3
        %v4318 = vsel %vm1105, %v4315, %v4317
        %v4351 = vadd.f32 %v4107, %v4241
        %v4352 = vadd.f32 %v4108, %v4243
        %v4353 = vadd.f32 %v4109, %v4246
        %v4354 = vadd.f32 %v4110, %v4248
        %v4355 = vadd.f32 %v4111, %v4251
        %v4356 = vadd.f32 %v4112, %v4253
        %v4357 = vadd.f32 %v4113, %v4256
        %v4358 = vadd.f32 %v4114, %v4258
        %v4359 = vadd.f32 %v4115, %v4261
        %v4360 = vadd.f32 %v4116, %v4263
        %v4361 = vadd.f32 %v4117, %v4266
        %v4362 = vadd.f32 %v4118, %v4268
        %v4363 = vadd.f32 %v4119, %v4271
        %v4364 = vadd.f32 %v4120, %v4273
        %v4365 = vadd.f32 %v4121, %v4276
        %v4366 = vadd.f32 %v4122, %v4278
        %v4367 = vadd.f32 %v4123, %v4281
        %v4368 = vadd.f32 %v4124, %v4283
        %v4369 = vadd.f32 %v4125, %v4286
        %v4370 = vadd.f32 %v4126, %v4288
        %v4371 = vadd.f32 %v4127, %v4291
        %v4372 = vadd.f32 %v4128, %v4293
        %v4373 = vadd.f32 %v4129, %v4296
        %v4374 = vadd.f32 %v4130, %v4298
        %v4375 = vadd.f32 %v4131, %v4301
        %v4376 = vadd.f32 %v4132, %v4303
        %v4377 = vadd.f32 %v4133, %v4306
        %v4378 = vadd.f32 %v4134, %v4308
        %v4379 = vadd.f32 %v4135, %v4311
        %v4380 = vadd.f32 %v4136, %v4313
        %v4381 = vadd.f32 %v4137, %v4316
        %v4382 = vadd.f32 %v4138, %v4318
        %v4383 = vlaneseq
        %v4384 = vshrl.u32 %v4383, 7
        %v4385 = vsub.s32 3, %v4384
        %v4386 = vrot.slane %v445, %v4385
        %v4387 = vmul.f32 %v4386, %v392
        %v4388 = vmul.f32 %v4386, %v393
        %v4389 = vmul.f32 %v4386, %v394
        %v4390 = vmul.f32 %v4386, %v395
        %v4391 = vmul.f32 %v4386, %v396
        %v4392 = vmul.f32 %v4386, %v397
        %v4393 = vmul.f32 %v4386, %v398
        %v4394 = vmul.f32 %v4386, %v399
        %v4395 = vmul.f32 %v4386, %v400
        %v4396 = vmul.f32 %v4386, %v401
        %v4397 = vmul.f32 %v4386, %v402
        %v4398 = vmul.f32 %v4386, %v403
        %v4399 = vmul.f32 %v4386, %v404
        %v4400 = vmul.f32 %v4386, %v405
        %v4401 = vmul.f32 %v4386, %v406
        %v4402 = vmul.f32 %v4386, %v407
        %v4403 = vmul.f32 %v4386, %v408
        %v4404 = vmul.f32 %v4386, %v409
        %v4405 = vmul.f32 %v4386, %v410
        %v4406 = vmul.f32 %v4386, %v411
        %v4407 = vmul.f32 %v4386, %v412
        %v4408 = vmul.f32 %v4386, %v413
        %v4409 = vmul.f32 %v4386, %v414
        %v4410 = vmul.f32 %v4386, %v415
        %v4411 = vmul.f32 %v4386, %v416
        %v4412 = vmul.f32 %v4386, %v417
        %v4413 = vmul.f32 %v4386, %v418
        %v4414 = vmul.f32 %v4386, %v419
        %v4415 = vmul.f32 %v4386, %v420
        %v4416 = vmul.f32 %v4386, %v421
        %v4417 = vmul.f32 %v4386, %v422
        %v4418 = vmul.f32 %v4386, %v423
        %v4419 = vmul.f32 %v4386, %v424
        %v4420 = vmul.f32 %v4386, %v425
        %v4421 = vmul.f32 %v4386, %v426
        %v4422 = vmul.f32 %v4386, %v427
        %v4423 = vmul.f32 %v4386, %v428
        %v4424 = vmul.f32 %v4386, %v429
        %v4425 = vmul.f32 %v4386, %v430
        %v4426 = vmul.f32 %v4386, %v431
        %v4427 = vmul.f32 %v4386, %v432
        %v4428 = vmul.f32 %v4386, %v433
        %v4429 = vmul.f32 %v4386, %v434
        %v4430 = vmul.f32 %v4386, %v435
        %v4431 = vmul.f32 %v4386, %v436
        %v4432 = vmul.f32 %v4386, %v437
        %v4433 = vmul.f32 %v4386, %v438
        %v4434 = vmul.f32 %v4386, %v439
        %v4483 = vrot.slane %v4387, 4
        %v4484 = vrot.slane %v4388, 4
        %v4485 = vsel %vm1350, %v4483, %v4484
        %v4486 = vrot.slane %v4389, 4
        %v4487 = vsel %vm1350, %v4484, %v4486
        %v4488 = vrot.slane %v4390, 4
        %v4489 = vrot.slane %v4391, 4
        %v4490 = vsel %vm1350, %v4488, %v4489
        %v4491 = vrot.slane %v4392, 4
        %v4492 = vsel %vm1350, %v4489, %v4491
        %v4493 = vrot.slane %v4393, 4
        %v4494 = vrot.slane %v4394, 4
        %v4495 = vsel %vm1350, %v4493, %v4494
        %v4496 = vrot.slane %v4395, 4
        %v4497 = vsel %vm1350, %v4494, %v4496
        %v4498 = vrot.slane %v4396, 4
        %v4499 = vrot.slane %v4397, 4
        %v4500 = vsel %vm1350, %v4498, %v4499
        %v4501 = vrot.slane %v4398, 4
        %v4502 = vsel %vm1350, %v4499, %v4501
        %v4503 = vrot.slane %v4399, 4
        %v4504 = vrot.slane %v4400, 4
        %v4505 = vsel %vm1350, %v4503, %v4504
        %v4506 = vrot.slane %v4401, 4
        %v4507 = vsel %vm1350, %v4504, %v4506
        %v4508 = vrot.slane %v4402, 4
        %v4509 = vrot.slane %v4403, 4
        %v4510 = vsel %vm1350, %v4508, %v4509
        %v4511 = vrot.slane %v4404, 4
        %v4512 = vsel %vm1350, %v4509, %v4511
        %v4513 = vrot.slane %v4405, 4
        %v4514 = vrot.slane %v4406, 4
        %v4515 = vsel %vm1350, %v4513, %v4514
        %v4516 = vrot.slane %v4407, 4
        %v4517 = vsel %vm1350, %v4514, %v4516
        %v4518 = vrot.slane %v4408, 4
        %v4519 = vrot.slane %v4409, 4
        %v4520 = vsel %vm1350, %v4518, %v4519
        %v4521 = vrot.slane %v4410, 4
        %v4522 = vsel %vm1350, %v4519, %v4521
        %v4523 = vrot.slane %v4411, 4
        %v4524 = vrot.slane %v4412, 4
        %v4525 = vsel %vm1350, %v4523, %v4524
        %v4526 = vrot.slane %v4413, 4
        %v4527 = vsel %vm1350, %v4524, %v4526
        %v4528 = vrot.slane %v4414, 4
        %v4529 = vrot.slane %v4415, 4
        %v4530 = vsel %vm1350, %v4528, %v4529
        %v4531 = vrot.slane %v4416, 4
        %v4532 = vsel %vm1350, %v4529, %v4531
        %v4533 = vrot.slane %v4417, 4
        %v4534 = vrot.slane %v4418, 4
        %v4535 = vsel %vm1350, %v4533, %v4534
        %v4536 = vrot.slane %v4419, 4
        %v4537 = vsel %vm1350, %v4534, %v4536
        %v4538 = vrot.slane %v4420, 4
        %v4539 = vrot.slane %v4421, 4
        %v4540 = vsel %vm1350, %v4538, %v4539
        %v4541 = vrot.slane %v4422, 4
        %v4542 = vsel %vm1350, %v4539, %v4541
        %v4543 = vrot.slane %v4423, 4
        %v4544 = vrot.slane %v4424, 4
        %v4545 = vsel %vm1350, %v4543, %v4544
        %v4546 = vrot.slane %v4425, 4
        %v4547 = vsel %vm1350, %v4544, %v4546
        %v4548 = vrot.slane %v4426, 4
        %v4549 = vrot.slane %v4427, 4
        %v4550 = vsel %vm1350, %v4548, %v4549
        %v4551 = vrot.slane %v4428, 4
        %v4552 = vsel %vm1350, %v4549, %v4551
        %v4553 = vrot.slane %v4429, 4
        %v4554 = vrot.slane %v4430, 4
        %v4555 = vsel %vm1350, %v4553, %v4554
        %v4556 = vrot.slane %v4431, 4
        %v4557 = vsel %vm1350, %v4554, %v4556
        %v4558 = vrot.slane %v4432, 4
        %v4559 = vrot.slane %v4433, 4
        %v4560 = vsel %vm1350, %v4558, %v4559
        %v4561 = vrot.slane %v4434, 4
        %v4562 = vsel %vm1350, %v4559, %v4561
        %v4595 = vadd.f32 %v4351, %v4485
        %v4596 = vadd.f32 %v4352, %v4487
        %v4597 = vadd.f32 %v4353, %v4490
        %v4598 = vadd.f32 %v4354, %v4492
        %v4599 = vadd.f32 %v4355, %v4495
        %v4600 = vadd.f32 %v4356, %v4497
        %v4601 = vadd.f32 %v4357, %v4500
        %v4602 = vadd.f32 %v4358, %v4502
        %v4603 = vadd.f32 %v4359, %v4505
        %v4604 = vadd.f32 %v4360, %v4507
        %v4605 = vadd.f32 %v4361, %v4510
        %v4606 = vadd.f32 %v4362, %v4512
        %v4607 = vadd.f32 %v4363, %v4515
        %v4608 = vadd.f32 %v4364, %v4517
        %v4609 = vadd.f32 %v4365, %v4520
        %v4610 = vadd.f32 %v4366, %v4522
        %v4611 = vadd.f32 %v4367, %v4525
        %v4612 = vadd.f32 %v4368, %v4527
        %v4613 = vadd.f32 %v4369, %v4530
        %v4614 = vadd.f32 %v4370, %v4532
        %v4615 = vadd.f32 %v4371, %v4535
        %v4616 = vadd.f32 %v4372, %v4537
        %v4617 = vadd.f32 %v4373, %v4540
        %v4618 = vadd.f32 %v4374, %v4542
        %v4619 = vadd.f32 %v4375, %v4545
        %v4620 = vadd.f32 %v4376, %v4547
        %v4621 = vadd.f32 %v4377, %v4550
        %v4622 = vadd.f32 %v4378, %v4552
        %v4623 = vadd.f32 %v4379, %v4555
        %v4624 = vadd.f32 %v4380, %v4557
        %v4625 = vadd.f32 %v4381, %v4560
        %v4626 = vadd.f32 %v4382, %v4562
        %v4627 = vlaneseq
        %v4628 = vshrl.u32 %v4627, 7
        %v4629 = vsub.s32 4, %v4628
        %v4630 = vrot.slane %v445, %v4629
        %v4631 = vmul.f32 %v4630, %v395
        %v4632 = vmul.f32 %v4630, %v396
        %v4633 = vmul.f32 %v4630, %v398
        %v4634 = vmul.f32 %v4630, %v399
        %v4635 = vmul.f32 %v4630, %v401
        %v4636 = vmul.f32 %v4630, %v402
        %v4637 = vmul.f32 %v4630, %v404
        %v4638 = vmul.f32 %v4630, %v405
        %v4639 = vmul.f32 %v4630, %v407
        %v4640 = vmul.f32 %v4630, %v408
        %v4641 = vmul.f32 %v4630, %v410
        %v4642 = vmul.f32 %v4630, %v411
        %v4643 = vmul.f32 %v4630, %v413
        %v4644 = vmul.f32 %v4630, %v414
        %v4645 = vmul.f32 %v4630, %v416
        %v4646 = vmul.f32 %v4630, %v417
        %v4647 = vmul.f32 %v4630, %v419
        %v4648 = vmul.f32 %v4630, %v420
        %v4649 = vmul.f32 %v4630, %v422
        %v4650 = vmul.f32 %v4630, %v423
        %v4651 = vmul.f32 %v4630, %v425
        %v4652 = vmul.f32 %v4630, %v426
        %v4653 = vmul.f32 %v4630, %v428
        %v4654 = vmul.f32 %v4630, %v429
        %v4655 = vmul.f32 %v4630, %v431
        %v4656 = vmul.f32 %v4630, %v432
        %v4657 = vmul.f32 %v4630, %v434
        %v4658 = vmul.f32 %v4630, %v435
        %v4659 = vmul.f32 %v4630, %v437
        %v4660 = vmul.f32 %v4630, %v438
        %v4661 = vmul.f32 %v4630, %v440
        %v4662 = vmul.f32 %v4630, %v441
        %v4663 = vadd.f32 %v4595, %v4631
        %v4664 = vadd.f32 %v4596, %v4632
        %v4665 = vadd.f32 %v4597, %v4633
        %v4666 = vadd.f32 %v4598, %v4634
        %v4667 = vadd.f32 %v4599, %v4635
        %v4668 = vadd.f32 %v4600, %v4636
        %v4669 = vadd.f32 %v4601, %v4637
        %v4670 = vadd.f32 %v4602, %v4638
        %v4671 = vadd.f32 %v4603, %v4639
        %v4672 = vadd.f32 %v4604, %v4640
        %v4673 = vadd.f32 %v4605, %v4641
        %v4674 = vadd.f32 %v4606, %v4642
        %v4675 = vadd.f32 %v4607, %v4643
        %v4676 = vadd.f32 %v4608, %v4644
        %v4677 = vadd.f32 %v4609, %v4645
        %v4678 = vadd.f32 %v4610, %v4646
        %v4679 = vadd.f32 %v4611, %v4647
        %v4680 = vadd.f32 %v4612, %v4648
        %v4681 = vadd.f32 %v4613, %v4649
        %v4682 = vadd.f32 %v4614, %v4650
        %v4683 = vadd.f32 %v4615, %v4651
        %v4684 = vadd.f32 %v4616, %v4652
        %v4685 = vadd.f32 %v4617, %v4653
        %v4686 = vadd.f32 %v4618, %v4654
        %v4687 = vadd.f32 %v4619, %v4655
        %v4688 = vadd.f32 %v4620, %v4656
        %v4689 = vadd.f32 %v4621, %v4657
        %v4690 = vadd.f32 %v4622, %v4658
        %v4691 = vadd.f32 %v4623, %v4659
        %v4692 = vadd.f32 %v4624, %v4660
        %v4693 = vadd.f32 %v4625, %v4661
        %v4694 = vadd.f32 %v4626, %v4662
        %v4695 = vlaneseq
        %v4696 = vshrl.u32 %v4695, 7
        %v4697 = vsub.s32 5, %v4696
        %v4698 = vrot.slane %v445, %v4697
        %v4699 = vmul.f32 %v4698, %v395
        %v4700 = vmul.f32 %v4698, %v396
        %v4701 = vmul.f32 %v4698, %v397
        %v4702 = vmul.f32 %v4698, %v398
        %v4703 = vmul.f32 %v4698, %v399
        %v4704 = vmul.f32 %v4698, %v400
        %v4705 = vmul.f32 %v4698, %v401
        %v4706 = vmul.f32 %v4698, %v402
        %v4707 = vmul.f32 %v4698, %v403
        %v4708 = vmul.f32 %v4698, %v404
        %v4709 = vmul.f32 %v4698, %v405
        %v4710 = vmul.f32 %v4698, %v406
        %v4711 = vmul.f32 %v4698, %v407
        %v4712 = vmul.f32 %v4698, %v408
        %v4713 = vmul.f32 %v4698, %v409
        %v4714 = vmul.f32 %v4698, %v410
        %v4715 = vmul.f32 %v4698, %v411
        %v4716 = vmul.f32 %v4698, %v412
        %v4717 = vmul.f32 %v4698, %v413
        %v4718 = vmul.f32 %v4698, %v414
        %v4719 = vmul.f32 %v4698, %v415
        %v4720 = vmul.f32 %v4698, %v416
        %v4721 = vmul.f32 %v4698, %v417
        %v4722 = vmul.f32 %v4698, %v418
        %v4723 = vmul.f32 %v4698, %v419
        %v4724 = vmul.f32 %v4698, %v420
        %v4725 = vmul.f32 %v4698, %v421
        %v4726 = vmul.f32 %v4698, %v422
        %v4727 = vmul.f32 %v4698, %v423
        %v4728 = vmul.f32 %v4698, %v424
        %v4729 = vmul.f32 %v4698, %v425
        %v4730 = vmul.f32 %v4698, %v426
        %v4731 = vmul.f32 %v4698, %v427
        %v4732 = vmul.f32 %v4698, %v428
        %v4733 = vmul.f32 %v4698, %v429
        %v4734 = vmul.f32 %v4698, %v430
        %v4735 = vmul.f32 %v4698, %v431
        %v4736 = vmul.f32 %v4698, %v432
        %v4737 = vmul.f32 %v4698, %v433
        %v4738 = vmul.f32 %v4698, %v434
        %v4739 = vmul.f32 %v4698, %v435
        %v4740 = vmul.f32 %v4698, %v436
        %v4741 = vmul.f32 %v4698, %v437
        %v4742 = vmul.f32 %v4698, %v438
        %v4743 = vmul.f32 %v4698, %v439
        %v4744 = vmul.f32 %v4698, %v440
        %v4745 = vmul.f32 %v4698, %v441
        %v4746 = vmul.f32 %v4698, %v442
        %v4795 = vrot.slane %v4699, 1
        %v4796 = vrot.slane %v4700, 1
        %v4797 = vsel %vm615, %v4795, %v4796
        %v4798 = vrot.slane %v4701, 1
        %v4799 = vsel %vm615, %v4796, %v4798
        %v4800 = vrot.slane %v4702, 1
        %v4801 = vrot.slane %v4703, 1
        %v4802 = vsel %vm615, %v4800, %v4801
        %v4803 = vrot.slane %v4704, 1
        %v4804 = vsel %vm615, %v4801, %v4803
        %v4805 = vrot.slane %v4705, 1
        %v4806 = vrot.slane %v4706, 1
        %v4807 = vsel %vm615, %v4805, %v4806
        %v4808 = vrot.slane %v4707, 1
        %v4809 = vsel %vm615, %v4806, %v4808
        %v4810 = vrot.slane %v4708, 1
        %v4811 = vrot.slane %v4709, 1
        %v4812 = vsel %vm615, %v4810, %v4811
        %v4813 = vrot.slane %v4710, 1
        %v4814 = vsel %vm615, %v4811, %v4813
        %v4815 = vrot.slane %v4711, 1
        %v4816 = vrot.slane %v4712, 1
        %v4817 = vsel %vm615, %v4815, %v4816
        %v4818 = vrot.slane %v4713, 1
        %v4819 = vsel %vm615, %v4816, %v4818
        %v4820 = vrot.slane %v4714, 1
        %v4821 = vrot.slane %v4715, 1
        %v4822 = vsel %vm615, %v4820, %v4821
        %v4823 = vrot.slane %v4716, 1
        %v4824 = vsel %vm615, %v4821, %v4823
        %v4825 = vrot.slane %v4717, 1
        %v4826 = vrot.slane %v4718, 1
        %v4827 = vsel %vm615, %v4825, %v4826
        %v4828 = vrot.slane %v4719, 1
        %v4829 = vsel %vm615, %v4826, %v4828
        %v4830 = vrot.slane %v4720, 1
        %v4831 = vrot.slane %v4721, 1
        %v4832 = vsel %vm615, %v4830, %v4831
        %v4833 = vrot.slane %v4722, 1
        %v4834 = vsel %vm615, %v4831, %v4833
        %v4835 = vrot.slane %v4723, 1
        %v4836 = vrot.slane %v4724, 1
        %v4837 = vsel %vm615, %v4835, %v4836
        %v4838 = vrot.slane %v4725, 1
        %v4839 = vsel %vm615, %v4836, %v4838
        %v4840 = vrot.slane %v4726, 1
        %v4841 = vrot.slane %v4727, 1
        %v4842 = vsel %vm615, %v4840, %v4841
        %v4843 = vrot.slane %v4728, 1
        %v4844 = vsel %vm615, %v4841, %v4843
        %v4845 = vrot.slane %v4729, 1
        %v4846 = vrot.slane %v4730, 1
        %v4847 = vsel %vm615, %v4845, %v4846
        %v4848 = vrot.slane %v4731, 1
        %v4849 = vsel %vm615, %v4846, %v4848
        %v4850 = vrot.slane %v4732, 1
        %v4851 = vrot.slane %v4733, 1
        %v4852 = vsel %vm615, %v4850, %v4851
        %v4853 = vrot.slane %v4734, 1
        %v4854 = vsel %vm615, %v4851, %v4853
        %v4855 = vrot.slane %v4735, 1
        %v4856 = vrot.slane %v4736, 1
        %v4857 = vsel %vm615, %v4855, %v4856
        %v4858 = vrot.slane %v4737, 1
        %v4859 = vsel %vm615, %v4856, %v4858
        %v4860 = vrot.slane %v4738, 1
        %v4861 = vrot.slane %v4739, 1
        %v4862 = vsel %vm615, %v4860, %v4861
        %v4863 = vrot.slane %v4740, 1
        %v4864 = vsel %vm615, %v4861, %v4863
        %v4865 = vrot.slane %v4741, 1
        %v4866 = vrot.slane %v4742, 1
        %v4867 = vsel %vm615, %v4865, %v4866
        %v4868 = vrot.slane %v4743, 1
        %v4869 = vsel %vm615, %v4866, %v4868
        %v4870 = vrot.slane %v4744, 1
        %v4871 = vrot.slane %v4745, 1
        %v4872 = vsel %vm615, %v4870, %v4871
        %v4873 = vrot.slane %v4746, 1
        %v4874 = vsel %vm615, %v4871, %v4873
        %v4907 = vadd.f32 %v4663, %v4797
        %v4908 = vadd.f32 %v4664, %v4799
        %v4909 = vadd.f32 %v4665, %v4802
        %v4910 = vadd.f32 %v4666, %v4804
        %v4911 = vadd.f32 %v4667, %v4807
        %v4912 = vadd.f32 %v4668, %v4809
        %v4913 = vadd.f32 %v4669, %v4812
        %v4914 = vadd.f32 %v4670, %v4814
        %v4915 = vadd.f32 %v4671, %v4817
        %v4916 = vadd.f32 %v4672, %v4819
        %v4917 = vadd.f32 %v4673, %v4822
        %v4918 = vadd.f32 %v4674, %v4824
        %v4919 = vadd.f32 %v4675, %v4827
        %v4920 = vadd.f32 %v4676, %v4829
        %v4921 = vadd.f32 %v4677, %v4832
        %v4922 = vadd.f32 %v4678, %v4834
        %v4923 = vadd.f32 %v4679, %v4837
        %v4924 = vadd.f32 %v4680, %v4839
        %v4925 = vadd.f32 %v4681, %v4842
        %v4926 = vadd.f32 %v4682, %v4844
        %v4927 = vadd.f32 %v4683, %v4847
        %v4928 = vadd.f32 %v4684, %v4849
        %v4929 = vadd.f32 %v4685, %v4852
        %v4930 = vadd.f32 %v4686, %v4854
        %v4931 = vadd.f32 %v4687, %v4857
        %v4932 = vadd.f32 %v4688, %v4859
        %v4933 = vadd.f32 %v4689, %v4862
        %v4934 = vadd.f32 %v4690, %v4864
        %v4935 = vadd.f32 %v4691, %v4867
        %v4936 = vadd.f32 %v4692, %v4869
        %v4937 = vadd.f32 %v4693, %v4872
        %v4938 = vadd.f32 %v4694, %v4874
        %v4939 = vlaneseq
        %v4940 = vshrl.u32 %v4939, 7
        %v4941 = vsub.s32 6, %v4940
        %v4942 = vrot.slane %v445, %v4941
        %v4943 = vmul.f32 %v4942, %v395
        %v4944 = vmul.f32 %v4942, %v396
        %v4945 = vmul.f32 %v4942, %v397
        %v4946 = vmul.f32 %v4942, %v398
        %v4947 = vmul.f32 %v4942, %v399
        %v4948 = vmul.f32 %v4942, %v400
        %v4949 = vmul.f32 %v4942, %v401
        %v4950 = vmul.f32 %v4942, %v402
        %v4951 = vmul.f32 %v4942, %v403
        %v4952 = vmul.f32 %v4942, %v404
        %v4953 = vmul.f32 %v4942, %v405
        %v4954 = vmul.f32 %v4942, %v406
        %v4955 = vmul.f32 %v4942, %v407
        %v4956 = vmul.f32 %v4942, %v408
        %v4957 = vmul.f32 %v4942, %v409
        %v4958 = vmul.f32 %v4942, %v410
        %v4959 = vmul.f32 %v4942, %v411
        %v4960 = vmul.f32 %v4942, %v412
        %v4961 = vmul.f32 %v4942, %v413
        %v4962 = vmul.f32 %v4942, %v414
        %v4963 = vmul.f32 %v4942, %v415
        %v4964 = vmul.f32 %v4942, %v416
        %v4965 = vmul.f32 %v4942, %v417
        %v4966 = vmul.f32 %v4942, %v418
        %v4967 = vmul.f32 %v4942, %v419
        %v4968 = vmul.f32 %v4942, %v420
        %v4969 = vmul.f32 %v4942, %v421
        %v4970 = vmul.f32 %v4942, %v422
        %v4971 = vmul.f32 %v4942, %v423
        %v4972 = vmul.f32 %v4942, %v424
        %v4973 = vmul.f32 %v4942, %v425
        %v4974 = vmul.f32 %v4942, %v426
        %v4975 = vmul.f32 %v4942, %v427
        %v4976 = vmul.f32 %v4942, %v428
        %v4977 = vmul.f32 %v4942, %v429
        %v4978 = vmul.f32 %v4942, %v430
        %v4979 = vmul.f32 %v4942, %v431
        %v4980 = vmul.f32 %v4942, %v432
        %v4981 = vmul.f32 %v4942, %v433
        %v4982 = vmul.f32 %v4942, %v434
        %v4983 = vmul.f32 %v4942, %v435
        %v4984 = vmul.f32 %v4942, %v436
        %v4985 = vmul.f32 %v4942, %v437
        %v4986 = vmul.f32 %v4942, %v438
        %v4987 = vmul.f32 %v4942, %v439
        %v4988 = vmul.f32 %v4942, %v440
        %v4989 = vmul.f32 %v4942, %v441
        %v4990 = vmul.f32 %v4942, %v442
        %v5039 = vrot.slane %v4943, 2
        %v5040 = vrot.slane %v4944, 2
        %v5041 = vsel %vm860, %v5039, %v5040
        %v5042 = vrot.slane %v4945, 2
        %v5043 = vsel %vm860, %v5040, %v5042
        %v5044 = vrot.slane %v4946, 2
        %v5045 = vrot.slane %v4947, 2
        %v5046 = vsel %vm860, %v5044, %v5045
        %v5047 = vrot.slane %v4948, 2
        %v5048 = vsel %vm860, %v5045, %v5047
        %v5049 = vrot.slane %v4949, 2
        %v5050 = vrot.slane %v4950, 2
        %v5051 = vsel %vm860, %v5049, %v5050
        %v5052 = vrot.slane %v4951, 2
        %v5053 = vsel %vm860, %v5050, %v5052
        %v5054 = vrot.slane %v4952, 2
        %v5055 = vrot.slane %v4953, 2
        %v5056 = vsel %vm860, %v5054, %v5055
        %v5057 = vrot.slane %v4954, 2
        %v5058 = vsel %vm860, %v5055, %v5057
        %v5059 = vrot.slane %v4955, 2
        %v5060 = vrot.slane %v4956, 2
        %v5061 = vsel %vm860, %v5059, %v5060
        %v5062 = vrot.slane %v4957, 2
        %v5063 = vsel %vm860, %v5060, %v5062
        %v5064 = vrot.slane %v4958, 2
        %v5065 = vrot.slane %v4959, 2
        %v5066 = vsel %vm860, %v5064, %v5065
        %v5067 = vrot.slane %v4960, 2
        %v5068 = vsel %vm860, %v5065, %v5067
        %v5069 = vrot.slane %v4961, 2
        %v5070 = vrot.slane %v4962, 2
        %v5071 = vsel %vm860, %v5069, %v5070
        %v5072 = vrot.slane %v4963, 2
        %v5073 = vsel %vm860, %v5070, %v5072
        %v5074 = vrot.slane %v4964, 2
        %v5075 = vrot.slane %v4965, 2
        %v5076 = vsel %vm860, %v5074, %v5075
        %v5077 = vrot.slane %v4966, 2
        %v5078 = vsel %vm860, %v5075, %v5077
        %v5079 = vrot.slane %v4967, 2
        %v5080 = vrot.slane %v4968, 2
        %v5081 = vsel %vm860, %v5079, %v5080
        %v5082 = vrot.slane %v4969, 2
        %v5083 = vsel %vm860, %v5080, %v5082
        %v5084 = vrot.slane %v4970, 2
        %v5085 = vrot.slane %v4971, 2
        %v5086 = vsel %vm860, %v5084, %v5085
        %v5087 = vrot.slane %v4972, 2
        %v5088 = vsel %vm860, %v5085, %v5087
        %v5089 = vrot.slane %v4973, 2
        %v5090 = vrot.slane %v4974, 2
        %v5091 = vsel %vm860, %v5089, %v5090
        %v5092 = vrot.slane %v4975, 2
        %v5093 = vsel %vm860, %v5090, %v5092
        %v5094 = vrot.slane %v4976, 2
        %v5095 = vrot.slane %v4977, 2
        %v5096 = vsel %vm860, %v5094, %v5095
        %v5097 = vrot.slane %v4978, 2
        %v5098 = vsel %vm860, %v5095, %v5097
        %v5099 = vrot.slane %v4979, 2
        %v5100 = vrot.slane %v4980, 2
        %v5101 = vsel %vm860, %v5099, %v5100
        %v5102 = vrot.slane %v4981, 2
        %v5103 = vsel %vm860, %v5100, %v5102
        %v5104 = vrot.slane %v4982, 2
        %v5105 = vrot.slane %v4983, 2
        %v5106 = vsel %vm860, %v5104, %v5105
        %v5107 = vrot.slane %v4984, 2
        %v5108 = vsel %vm860, %v5105, %v5107
        %v5109 = vrot.slane %v4985, 2
        %v5110 = vrot.slane %v4986, 2
        %v5111 = vsel %vm860, %v5109, %v5110
        %v5112 = vrot.slane %v4987, 2
        %v5113 = vsel %vm860, %v5110, %v5112
        %v5114 = vrot.slane %v4988, 2
        %v5115 = vrot.slane %v4989, 2
        %v5116 = vsel %vm860, %v5114, %v5115
        %v5117 = vrot.slane %v4990, 2
        %v5118 = vsel %vm860, %v5115, %v5117
        %v5151 = vadd.f32 %v4907, %v5041
        %v5152 = vadd.f32 %v4908, %v5043
        %v5153 = vadd.f32 %v4909, %v5046
        %v5154 = vadd.f32 %v4910, %v5048
        %v5155 = vadd.f32 %v4911, %v5051
        %v5156 = vadd.f32 %v4912, %v5053
        %v5157 = vadd.f32 %v4913, %v5056
        %v5158 = vadd.f32 %v4914, %v5058
        %v5159 = vadd.f32 %v4915, %v5061
        %v5160 = vadd.f32 %v4916, %v5063
        %v5161 = vadd.f32 %v4917, %v5066
        %v5162 = vadd.f32 %v4918, %v5068
        %v5163 = vadd.f32 %v4919, %v5071
        %v5164 = vadd.f32 %v4920, %v5073
        %v5165 = vadd.f32 %v4921, %v5076
        %v5166 = vadd.f32 %v4922, %v5078
        %v5167 = vadd.f32 %v4923, %v5081
        %v5168 = vadd.f32 %v4924, %v5083
        %v5169 = vadd.f32 %v4925, %v5086
        %v5170 = vadd.f32 %v4926, %v5088
        %v5171 = vadd.f32 %v4927, %v5091
        %v5172 = vadd.f32 %v4928, %v5093
        %v5173 = vadd.f32 %v4929, %v5096
        %v5174 = vadd.f32 %v4930, %v5098
        %v5175 = vadd.f32 %v4931, %v5101
        %v5176 = vadd.f32 %v4932, %v5103
        %v5177 = vadd.f32 %v4933, %v5106
        %v5178 = vadd.f32 %v4934, %v5108
        %v5179 = vadd.f32 %v4935, %v5111
        %v5180 = vadd.f32 %v4936, %v5113
        %v5181 = vadd.f32 %v4937, %v5116
        %v5182 = vadd.f32 %v4938, %v5118
        %v5183 = vlaneseq
        %v5184 = vshrl.u32 %v5183, 7
        %v5185 = vsub.s32 7, %v5184
        %v5186 = vrot.slane %v445, %v5185
        %v5187 = vmul.f32 %v5186, %v395
        %v5188 = vmul.f32 %v5186, %v396
        %v5189 = vmul.f32 %v5186, %v397
        %v5190 = vmul.f32 %v5186, %v398
        %v5191 = vmul.f32 %v5186, %v399
        %v5192 = vmul.f32 %v5186, %v400
        %v5193 = vmul.f32 %v5186, %v401
        %v5194 = vmul.f32 %v5186, %v402
        %v5195 = vmul.f32 %v5186, %v403
        %v5196 = vmul.f32 %v5186, %v404
        %v5197 = vmul.f32 %v5186, %v405
        %v5198 = vmul.f32 %v5186, %v406
        %v5199 = vmul.f32 %v5186, %v407
        %v5200 = vmul.f32 %v5186, %v408
        %v5201 = vmul.f32 %v5186, %v409
        %v5202 = vmul.f32 %v5186, %v410
        %v5203 = vmul.f32 %v5186, %v411
        %v5204 = vmul.f32 %v5186, %v412
        %v5205 = vmul.f32 %v5186, %v413
        %v5206 = vmul.f32 %v5186, %v414
        %v5207 = vmul.f32 %v5186, %v415
        %v5208 = vmul.f32 %v5186, %v416
        %v5209 = vmul.f32 %v5186, %v417
        %v5210 = vmul.f32 %v5186, %v418
        %v5211 = vmul.f32 %v5186, %v419
        %v5212 = vmul.f32 %v5186, %v420
        %v5213 = vmul.f32 %v5186, %v421
        %v5214 = vmul.f32 %v5186, %v422
        %v5215 = vmul.f32 %v5186, %v423
        %v5216 = vmul.f32 %v5186, %v424
        %v5217 = vmul.f32 %v5186, %v425
        %v5218 = vmul.f32 %v5186, %v426
        %v5219 = vmul.f32 %v5186, %v427
        %v5220 = vmul.f32 %v5186, %v428
        %v5221 = vmul.f32 %v5186, %v429
        %v5222 = vmul.f32 %v5186, %v430
        %v5223 = vmul.f32 %v5186, %v431
        %v5224 = vmul.f32 %v5186, %v432
        %v5225 = vmul.f32 %v5186, %v433
        %v5226 = vmul.f32 %v5186, %v434
        %v5227 = vmul.f32 %v5186, %v435
        %v5228 = vmul.f32 %v5186, %v436
        %v5229 = vmul.f32 %v5186, %v437
        %v5230 = vmul.f32 %v5186, %v438
        %v5231 = vmul.f32 %v5186, %v439
        %v5232 = vmul.f32 %v5186, %v440
        %v5233 = vmul.f32 %v5186, %v441
        %v5234 = vmul.f32 %v5186, %v442
        %v5283 = vrot.slane %v5187, 3
        %v5284 = vrot.slane %v5188, 3
        %v5285 = vsel %vm1105, %v5283, %v5284
        %v5286 = vrot.slane %v5189, 3
        %v5287 = vsel %vm1105, %v5284, %v5286
        %v5288 = vrot.slane %v5190, 3
        %v5289 = vrot.slane %v5191, 3
        %v5290 = vsel %vm1105, %v5288, %v5289
        %v5291 = vrot.slane %v5192, 3
        %v5292 = vsel %vm1105, %v5289, %v5291
        %v5293 = vrot.slane %v5193, 3
        %v5294 = vrot.slane %v5194, 3
        %v5295 = vsel %vm1105, %v5293, %v5294
        %v5296 = vrot.slane %v5195, 3
        %v5297 = vsel %vm1105, %v5294, %v5296
        %v5298 = vrot.slane %v5196, 3
        %v5299 = vrot.slane %v5197, 3
        %v5300 = vsel %vm1105, %v5298, %v5299
        %v5301 = vrot.slane %v5198, 3
        %v5302 = vsel %vm1105, %v5299, %v5301
        %v5303 = vrot.slane %v5199, 3
        %v5304 = vrot.slane %v5200, 3
        %v5305 = vsel %vm1105, %v5303, %v5304
        %v5306 = vrot.slane %v5201, 3
        %v5307 = vsel %vm1105, %v5304, %v5306
        %v5308 = vrot.slane %v5202, 3
        %v5309 = vrot.slane %v5203, 3
        %v5310 = vsel %vm1105, %v5308, %v5309
        %v5311 = vrot.slane %v5204, 3
        %v5312 = vsel %vm1105, %v5309, %v5311
        %v5313 = vrot.slane %v5205, 3
        %v5314 = vrot.slane %v5206, 3
        %v5315 = vsel %vm1105, %v5313, %v5314
        %v5316 = vrot.slane %v5207, 3
        %v5317 = vsel %vm1105, %v5314, %v5316
        %v5318 = vrot.slane %v5208, 3
        %v5319 = vrot.slane %v5209, 3
        %v5320 = vsel %vm1105, %v5318, %v5319
        %v5321 = vrot.slane %v5210, 3
        %v5322 = vsel %vm1105, %v5319, %v5321
        %v5323 = vrot.slane %v5211, 3
        %v5324 = vrot.slane %v5212, 3
        %v5325 = vsel %vm1105, %v5323, %v5324
        %v5326 = vrot.slane %v5213, 3
        %v5327 = vsel %vm1105, %v5324, %v5326
        %v5328 = vrot.slane %v5214, 3
        %v5329 = vrot.slane %v5215, 3
        %v5330 = vsel %vm1105, %v5328, %v5329
        %v5331 = vrot.slane %v5216, 3
        %v5332 = vsel %vm1105, %v5329, %v5331
        %v5333 = vrot.slane %v5217, 3
        %v5334 = vrot.slane %v5218, 3
        %v5335 = vsel %vm1105, %v5333, %v5334
        %v5336 = vrot.slane %v5219, 3
        %v5337 = vsel %vm1105, %v5334, %v5336
        %v5338 = vrot.slane %v5220, 3
        %v5339 = vrot.slane %v5221, 3
        %v5340 = vsel %vm1105, %v5338, %v5339
        %v5341 = vrot.slane %v5222, 3
        %v5342 = vsel %vm1105, %v5339, %v5341
        %v5343 = vrot.slane %v5223, 3
        %v5344 = vrot.slane %v5224, 3
        %v5345 = vsel %vm1105, %v5343, %v5344
        %v5346 = vrot.slane %v5225, 3
        %v5347 = vsel %vm1105, %v5344, %v5346
        %v5348 = vrot.slane %v5226, 3
        %v5349 = vrot.slane %v5227, 3
        %v5350 = vsel %vm1105, %v5348, %v5349
        %v5351 = vrot.slane %v5228, 3
        %v5352 = vsel %vm1105, %v5349, %v5351
        %v5353 = vrot.slane %v5229, 3
        %v5354 = vrot.slane %v5230, 3
        %v5355 = vsel %vm1105, %v5353, %v5354
        %v5356 = vrot.slane %v5231, 3
        %v5357 = vsel %vm1105, %v5354, %v5356
        %v5358 = vrot.slane %v5232, 3
        %v5359 = vrot.slane %v5233, 3
        %v5360 = vsel %vm1105, %v5358, %v5359
        %v5361 = vrot.slane %v5234, 3
        %v5362 = vsel %vm1105, %v5359, %v5361
        %v5395 = vadd.f32 %v5151, %v5285
        %v5396 = vadd.f32 %v5152, %v5287
        %v5397 = vadd.f32 %v5153, %v5290
        %v5398 = vadd.f32 %v5154, %v5292
        %v5399 = vadd.f32 %v5155, %v5295
        %v5400 = vadd.f32 %v5156, %v5297
        %v5401 = vadd.f32 %v5157, %v5300
        %v5402 = vadd.f32 %v5158, %v5302
        %v5403 = vadd.f32 %v5159, %v5305
        %v5404 = vadd.f32 %v5160, %v5307
        %v5405 = vadd.f32 %v5161, %v5310
        %v5406 = vadd.f32 %v5162, %v5312
        %v5407 = vadd.f32 %v5163, %v5315
        %v5408 = vadd.f32 %v5164, %v5317
        %v5409 = vadd.f32 %v5165, %v5320
        %v5410 = vadd.f32 %v5166, %v5322
        %v5411 = vadd.f32 %v5167, %v5325
        %v5412 = vadd.f32 %v5168, %v5327
        %v5413 = vadd.f32 %v5169, %v5330
        %v5414 = vadd.f32 %v5170, %v5332
        %v5415 = vadd.f32 %v5171, %v5335
        %v5416 = vadd.f32 %v5172, %v5337
        %v5417 = vadd.f32 %v5173, %v5340
        %v5418 = vadd.f32 %v5174, %v5342
        %v5419 = vadd.f32 %v5175, %v5345
        %v5420 = vadd.f32 %v5176, %v5347
        %v5421 = vadd.f32 %v5177, %v5350
        %v5422 = vadd.f32 %v5178, %v5352
        %v5423 = vadd.f32 %v5179, %v5355
        %v5424 = vadd.f32 %v5180, %v5357
        %v5425 = vadd.f32 %v5181, %v5360
        %v5426 = vadd.f32 %v5182, %v5362
        %v5427 = vlaneseq
        %v5428 = vshrl.u32 %v5427, 7
        %v5429 = vsub.s32 0, %v5428
        %v5430 = vrot.slane %v446, %v5429
        %v5431 = vmul.f32 %v5430, %v395
        %v5432 = vmul.f32 %v5430, %v396
        %v5433 = vmul.f32 %v5430, %v397
        %v5434 = vmul.f32 %v5430, %v398
        %v5435 = vmul.f32 %v5430, %v399
        %v5436 = vmul.f32 %v5430, %v400
        %v5437 = vmul.f32 %v5430, %v401
        %v5438 = vmul.f32 %v5430, %v402
        %v5439 = vmul.f32 %v5430, %v403
        %v5440 = vmul.f32 %v5430, %v404
        %v5441 = vmul.f32 %v5430, %v405
        %v5442 = vmul.f32 %v5430, %v406
        %v5443 = vmul.f32 %v5430, %v407
        %v5444 = vmul.f32 %v5430, %v408
        %v5445 = vmul.f32 %v5430, %v409
        %v5446 = vmul.f32 %v5430, %v410
        %v5447 = vmul.f32 %v5430, %v411
        %v5448 = vmul.f32 %v5430, %v412
        %v5449 = vmul.f32 %v5430, %v413
        %v5450 = vmul.f32 %v5430, %v414
        %v5451 = vmul.f32 %v5430, %v415
        %v5452 = vmul.f32 %v5430, %v416
        %v5453 = vmul.f32 %v5430, %v417
        %v5454 = vmul.f32 %v5430, %v418
        %v5455 = vmul.f32 %v5430, %v419
        %v5456 = vmul.f32 %v5430, %v420
        %v5457 = vmul.f32 %v5430, %v421
        %v5458 = vmul.f32 %v5430, %v422
        %v5459 = vmul.f32 %v5430, %v423
        %v5460 = vmul.f32 %v5430, %v424
        %v5461 = vmul.f32 %v5430, %v425
        %v5462 = vmul.f32 %v5430, %v426
        %v5463 = vmul.f32 %v5430, %v427
        %v5464 = vmul.f32 %v5430, %v428
        %v5465 = vmul.f32 %v5430, %v429
        %v5466 = vmul.f32 %v5430, %v430
        %v5467 = vmul.f32 %v5430, %v431
        %v5468 = vmul.f32 %v5430, %v432
        %v5469 = vmul.f32 %v5430, %v433
        %v5470 = vmul.f32 %v5430, %v434
        %v5471 = vmul.f32 %v5430, %v435
        %v5472 = vmul.f32 %v5430, %v436
        %v5473 = vmul.f32 %v5430, %v437
        %v5474 = vmul.f32 %v5430, %v438
        %v5475 = vmul.f32 %v5430, %v439
        %v5476 = vmul.f32 %v5430, %v440
        %v5477 = vmul.f32 %v5430, %v441
        %v5478 = vmul.f32 %v5430, %v442
        %v5527 = vrot.slane %v5431, 4
        %v5528 = vrot.slane %v5432, 4
        %v5529 = vsel %vm1350, %v5527, %v5528
        %v5530 = vrot.slane %v5433, 4
        %v5531 = vsel %vm1350, %v5528, %v5530
        %v5532 = vrot.slane %v5434, 4
        %v5533 = vrot.slane %v5435, 4
        %v5534 = vsel %vm1350, %v5532, %v5533
        %v5535 = vrot.slane %v5436, 4
        %v5536 = vsel %vm1350, %v5533, %v5535
        %v5537 = vrot.slane %v5437, 4
        %v5538 = vrot.slane %v5438, 4
        %v5539 = vsel %vm1350, %v5537, %v5538
        %v5540 = vrot.slane %v5439, 4
        %v5541 = vsel %vm1350, %v5538, %v5540
        %v5542 = vrot.slane %v5440, 4
        %v5543 = vrot.slane %v5441, 4
        %v5544 = vsel %vm1350, %v5542, %v5543
        %v5545 = vrot.slane %v5442, 4
        %v5546 = vsel %vm1350, %v5543, %v5545
        %v5547 = vrot.slane %v5443, 4
        %v5548 = vrot.slane %v5444, 4
        %v5549 = vsel %vm1350, %v5547, %v5548
        %v5550 = vrot.slane %v5445, 4
        %v5551 = vsel %vm1350, %v5548, %v5550
        %v5552 = vrot.slane %v5446, 4
        %v5553 = vrot.slane %v5447, 4
        %v5554 = vsel %vm1350, %v5552, %v5553
        %v5555 = vrot.slane %v5448, 4
        %v5556 = vsel %vm1350, %v5553, %v5555
        %v5557 = vrot.slane %v5449, 4
        %v5558 = vrot.slane %v5450, 4
        %v5559 = vsel %vm1350, %v5557, %v5558
        %v5560 = vrot.slane %v5451, 4
        %v5561 = vsel %vm1350, %v5558, %v5560
        %v5562 = vrot.slane %v5452, 4
        %v5563 = vrot.slane %v5453, 4
        %v5564 = vsel %vm1350, %v5562, %v5563
        %v5565 = vrot.slane %v5454, 4
        %v5566 = vsel %vm1350, %v5563, %v5565
        %v5567 = vrot.slane %v5455, 4
        %v5568 = vrot.slane %v5456, 4
        %v5569 = vsel %vm1350, %v5567, %v5568
        %v5570 = vrot.slane %v5457, 4
        %v5571 = vsel %vm1350, %v5568, %v5570
        %v5572 = vrot.slane %v5458, 4
        %v5573 = vrot.slane %v5459, 4
        %v5574 = vsel %vm1350, %v5572, %v5573
        %v5575 = vrot.slane %v5460, 4
        %v5576 = vsel %vm1350, %v5573, %v5575
        %v5577 = vrot.slane %v5461, 4
        %v5578 = vrot.slane %v5462, 4
        %v5579 = vsel %vm1350, %v5577, %v5578
        %v5580 = vrot.slane %v5463, 4
        %v5581 = vsel %vm1350, %v5578, %v5580
        %v5582 = vrot.slane %v5464, 4
        %v5583 = vrot.slane %v5465, 4
        %v5584 = vsel %vm1350, %v5582, %v5583
        %v5585 = vrot.slane %v5466, 4
        %v5586 = vsel %vm1350, %v5583, %v5585
        %v5587 = vrot.slane %v5467, 4
        %v5588 = vrot.slane %v5468, 4
        %v5589 = vsel %vm1350, %v5587, %v5588
        %v5590 = vrot.slane %v5469, 4
        %v5591 = vsel %vm1350, %v5588, %v5590
        %v5592 = vrot.slane %v5470, 4
        %v5593 = vrot.slane %v5471, 4
        %v5594 = vsel %vm1350, %v5592, %v5593
        %v5595 = vrot.slane %v5472, 4
        %v5596 = vsel %vm1350, %v5593, %v5595
        %v5597 = vrot.slane %v5473, 4
        %v5598 = vrot.slane %v5474, 4
        %v5599 = vsel %vm1350, %v5597, %v5598
        %v5600 = vrot.slane %v5475, 4
        %v5601 = vsel %vm1350, %v5598, %v5600
        %v5602 = vrot.slane %v5476, 4
        %v5603 = vrot.slane %v5477, 4
        %v5604 = vsel %vm1350, %v5602, %v5603
        %v5605 = vrot.slane %v5478, 4
        %v5606 = vsel %vm1350, %v5603, %v5605
        %v5639 = vadd.f32 %v5395, %v5529
        %v5640 = vadd.f32 %v5396, %v5531
        %v5641 = vadd.f32 %v5397, %v5534
        %v5642 = vadd.f32 %v5398, %v5536
        %v5643 = vadd.f32 %v5399, %v5539
        %v5644 = vadd.f32 %v5400, %v5541
        %v5645 = vadd.f32 %v5401, %v5544
        %v5646 = vadd.f32 %v5402, %v5546
        %v5647 = vadd.f32 %v5403, %v5549
        %v5648 = vadd.f32 %v5404, %v5551
        %v5649 = vadd.f32 %v5405, %v5554
        %v5650 = vadd.f32 %v5406, %v5556
        %v5651 = vadd.f32 %v5407, %v5559
        %v5652 = vadd.f32 %v5408, %v5561
        %v5653 = vadd.f32 %v5409, %v5564
        %v5654 = vadd.f32 %v5410, %v5566
        %v5655 = vadd.f32 %v5411, %v5569
        %v5656 = vadd.f32 %v5412, %v5571
        %v5657 = vadd.f32 %v5413, %v5574
        %v5658 = vadd.f32 %v5414, %v5576
        %v5659 = vadd.f32 %v5415, %v5579
        %v5660 = vadd.f32 %v5416, %v5581
        %v5661 = vadd.f32 %v5417, %v5584
        %v5662 = vadd.f32 %v5418, %v5586
        %v5663 = vadd.f32 %v5419, %v5589
        %v5664 = vadd.f32 %v5420, %v5591
        %v5665 = vadd.f32 %v5421, %v5594
        %v5666 = vadd.f32 %v5422, %v5596
        %v5667 = vadd.f32 %v5423, %v5599
        %v5668 = vadd.f32 %v5424, %v5601
        %v5669 = vadd.f32 %v5425, %v5604
        %v5670 = vadd.f32 %v5426, %v5606
        %v5671 = vld [vmem:[%s1] sm:$0x1]
        %v5673 = vlaneseq
        %v5674 = vshrl.u32 %v5673, 7
        %v5675 = vsub.s32 0, %v5674
        %v5676 = vrot.slane %v5671, %v5675
        %v5678 = vadd.f32 %v5639, %v5676
        %v5679 = vadd.f32 %v5640, %v5676
        %v5680 = vadd.f32 %v5641, %v5676
        %v5681 = vadd.f32 %v5642, %v5676
        %v5682 = vadd.f32 %v5643, %v5676
        %v5683 = vadd.f32 %v5644, %v5676
        %v5684 = vadd.f32 %v5645, %v5676
        %v5685 = vadd.f32 %v5646, %v5676
        %v5686 = vadd.f32 %v5647, %v5676
        %v5687 = vadd.f32 %v5648, %v5676
        %v5688 = vadd.f32 %v5649, %v5676
        %v5689 = vadd.f32 %v5650, %v5676
        %v5690 = vadd.f32 %v5651, %v5676
        %v5691 = vadd.f32 %v5652, %v5676
        %v5692 = vadd.f32 %v5653, %v5676
        %v5693 = vadd.f32 %v5654, %v5676
        %v5694 = vadd.f32 %v5655, %v5676
        %v5695 = vadd.f32 %v5656, %v5676
        %v5696 = vadd.f32 %v5657, %v5676
        %v5697 = vadd.f32 %v5658, %v5676
        %v5698 = vadd.f32 %v5659, %v5676
        %v5699 = vadd.f32 %v5660, %v5676
        %v5700 = vadd.f32 %v5661, %v5676
        %v5701 = vadd.f32 %v5662, %v5676
        %v5702 = vadd.f32 %v5663, %v5676
        %v5703 = vadd.f32 %v5664, %v5676
        %v5704 = vadd.f32 %v5665, %v5676
        %v5705 = vadd.f32 %v5666, %v5676
        %v5706 = vadd.f32 %v5667, %v5676
        %v5707 = vadd.f32 %v5668, %v5676
        %v5708 = vadd.f32 %v5669, %v5676
        %v5709 = vadd.f32 %v5670, %v5676
        %v5710 = vmul.f32 %v5678, %v5678
        %v5711 = vmul.f32 %v5679, %v5679
        %v5712 = vmul.f32 %v5680, %v5680
        %v5713 = vmul.f32 %v5681, %v5681
        %v5714 = vmul.f32 %v5682, %v5682
        %v5715 = vmul.f32 %v5683, %v5683
        %v5716 = vmul.f32 %v5684, %v5684
        %v5717 = vmul.f32 %v5685, %v5685
        %v5718 = vmul.f32 %v5686, %v5686
        %v5719 = vmul.f32 %v5687, %v5687
        %v5720 = vmul.f32 %v5688, %v5688
        %v5721 = vmul.f32 %v5689, %v5689
        %v5722 = vmul.f32 %v5690, %v5690
        %v5723 = vmul.f32 %v5691, %v5691
        %v5724 = vmul.f32 %v5692, %v5692
        %v5725 = vmul.f32 %v5693, %v5693
        %v5726 = vmul.f32 %v5694, %v5694
        %v5727 = vmul.f32 %v5695, %v5695
        %v5728 = vmul.f32 %v5696, %v5696
        %v5729 = vmul.f32 %v5697, %v5697
        %v5730 = vmul.f32 %v5698, %v5698
        %v5731 = vmul.f32 %v5699, %v5699
        %v5732 = vmul.f32 %v5700, %v5700
        %v5733 = vmul.f32 %v5701, %v5701
        %v5734 = vmul.f32 %v5702, %v5702
        %v5735 = vmul.f32 %v5703, %v5703
        %v5736 = vmul.f32 %v5704, %v5704
        %v5737 = vmul.f32 %v5705, %v5705
        %v5738 = vmul.f32 %v5706, %v5706
        %v5739 = vmul.f32 %v5707, %v5707
        %v5740 = vmul.f32 %v5708, %v5708
        %v5741 = vmul.f32 %v5709, %v5709
        %v5742 = vmul.f32 %v5678, %v5710
        %v5743 = vmul.f32 %v5679, %v5711
        %v5744 = vmul.f32 %v5680, %v5712
        %v5745 = vmul.f32 %v5681, %v5713
        %v5746 = vmul.f32 %v5682, %v5714
        %v5747 = vmul.f32 %v5683, %v5715
        %v5748 = vmul.f32 %v5684, %v5716
        %v5749 = vmul.f32 %v5685, %v5717
        %v5750 = vmul.f32 %v5686, %v5718
        %v5751 = vmul.f32 %v5687, %v5719
        %v5752 = vmul.f32 %v5688, %v5720
        %v5753 = vmul.f32 %v5689, %v5721
        %v5754 = vmul.f32 %v5690, %v5722
        %v5755 = vmul.f32 %v5691, %v5723
        %v5756 = vmul.f32 %v5692, %v5724
        %v5757 = vmul.f32 %v5693, %v5725
        %v5758 = vmul.f32 %v5694, %v5726
        %v5759 = vmul.f32 %v5695, %v5727
        %v5760 = vmul.f32 %v5696, %v5728
        %v5761 = vmul.f32 %v5697, %v5729
        %v5762 = vmul.f32 %v5698, %v5730
        %v5763 = vmul.f32 %v5699, %v5731
        %v5764 = vmul.f32 %v5700, %v5732
        %v5765 = vmul.f32 %v5701, %v5733
        %v5766 = vmul.f32 %v5702, %v5734
        %v5767 = vmul.f32 %v5703, %v5735
        %v5768 = vmul.f32 %v5704, %v5736
        %v5769 = vmul.f32 %v5705, %v5737
        %v5770 = vmul.f32 %v5706, %v5738
        %v5771 = vmul.f32 %v5707, %v5739
        %v5772 = vmul.f32 %v5708, %v5740
        %v5773 = vmul.f32 %v5709, %v5741
        %v5774 = vmul.f32 %v5742, 0.044715
        %v5775 = vmul.f32 %v5743, 0.044715
        %v5776 = vmul.f32 %v5744, 0.044715
        %v5777 = vmul.f32 %v5745, 0.044715
        %v5778 = vmul.f32 %v5746, 0.044715
        %v5779 = vmul.f32 %v5747, 0.044715
        %v5780 = vmul.f32 %v5748, 0.044715
        %v5781 = vmul.f32 %v5749, 0.044715
        %v5782 = vmul.f32 %v5750, 0.044715
        %v5783 = vmul.f32 %v5751, 0.044715
        %v5784 = vmul.f32 %v5752, 0.044715
        %v5785 = vmul.f32 %v5753, 0.044715
        %v5786 = vmul.f32 %v5754, 0.044715
        %v5787 = vmul.f32 %v5755, 0.044715
        %v5788 = vmul.f32 %v5756, 0.044715
        %v5789 = vmul.f32 %v5757, 0.044715
        %v5790 = vmul.f32 %v5758, 0.044715
        %v5791 = vmul.f32 %v5759, 0.044715
        %v5792 = vmul.f32 %v5760, 0.044715
        %v5793 = vmul.f32 %v5761, 0.044715
        %v5794 = vmul.f32 %v5762, 0.044715
        %v5795 = vmul.f32 %v5763, 0.044715
        %v5796 = vmul.f32 %v5764, 0.044715
        %v5797 = vmul.f32 %v5765, 0.044715
        %v5798 = vmul.f32 %v5766, 0.044715
        %v5799 = vmul.f32 %v5767, 0.044715
        %v5800 = vmul.f32 %v5768, 0.044715
        %v5801 = vmul.f32 %v5769, 0.044715
        %v5802 = vmul.f32 %v5770, 0.044715
        %v5803 = vmul.f32 %v5771, 0.044715
        %v5804 = vmul.f32 %v5772, 0.044715
        %v5805 = vmul.f32 %v5773, 0.044715
        %v5806 = vadd.f32 %v5678, %v5774
        %v5807 = vadd.f32 %v5679, %v5775
        %v5808 = vadd.f32 %v5680, %v5776
        %v5809 = vadd.f32 %v5681, %v5777
        %v5810 = vadd.f32 %v5682, %v5778
        %v5811 = vadd.f32 %v5683, %v5779
        %v5812 = vadd.f32 %v5684, %v5780
        %v5813 = vadd.f32 %v5685, %v5781
        %v5814 = vadd.f32 %v5686, %v5782
        %v5815 = vadd.f32 %v5687, %v5783
        %v5816 = vadd.f32 %v5688, %v5784
        %v5817 = vadd.f32 %v5689, %v5785
        %v5818 = vadd.f32 %v5690, %v5786
        %v5819 = vadd.f32 %v5691, %v5787
        %v5820 = vadd.f32 %v5692, %v5788
        %v5821 = vadd.f32 %v5693, %v5789
        %v5822 = vadd.f32 %v5694, %v5790
        %v5823 = vadd.f32 %v5695, %v5791
        %v5824 = vadd.f32 %v5696, %v5792
        %v5825 = vadd.f32 %v5697, %v5793
        %v5826 = vadd.f32 %v5698, %v5794
        %v5827 = vadd.f32 %v5699, %v5795
        %v5828 = vadd.f32 %v5700, %v5796
        %v5829 = vadd.f32 %v5701, %v5797
        %v5830 = vadd.f32 %v5702, %v5798
        %v5831 = vadd.f32 %v5703, %v5799
        %v5832 = vadd.f32 %v5704, %v5800
        %v5833 = vadd.f32 %v5705, %v5801
        %v5834 = vadd.f32 %v5706, %v5802
        %v5835 = vadd.f32 %v5707, %v5803
        %v5836 = vadd.f32 %v5708, %v5804
        %v5837 = vadd.f32 %v5709, %v5805
        %v5838 = vmul.f32 %v5806, 0.7978846
        %v5839 = vmul.f32 %v5807, 0.7978846
        %v5840 = vmul.f32 %v5808, 0.7978846
        %v5841 = vmul.f32 %v5809, 0.7978846
        %v5842 = vmul.f32 %v5810, 0.7978846
        %v5843 = vmul.f32 %v5811, 0.7978846
        %v5844 = vmul.f32 %v5812, 0.7978846
        %v5845 = vmul.f32 %v5813, 0.7978846
        %v5846 = vmul.f32 %v5814, 0.7978846
        %v5847 = vmul.f32 %v5815, 0.7978846
        %v5848 = vmul.f32 %v5816, 0.7978846
        %v5849 = vmul.f32 %v5817, 0.7978846
        %v5850 = vmul.f32 %v5818, 0.7978846
        %v5851 = vmul.f32 %v5819, 0.7978846
        %v5852 = vmul.f32 %v5820, 0.7978846
        %v5853 = vmul.f32 %v5821, 0.7978846
        %v5854 = vmul.f32 %v5822, 0.7978846
        %v5855 = vmul.f32 %v5823, 0.7978846
        %v5856 = vmul.f32 %v5824, 0.7978846
        %v5857 = vmul.f32 %v5825, 0.7978846
        %v5858 = vmul.f32 %v5826, 0.7978846
        %v5859 = vmul.f32 %v5827, 0.7978846
        %v5860 = vmul.f32 %v5828, 0.7978846
        %v5861 = vmul.f32 %v5829, 0.7978846
        %v5862 = vmul.f32 %v5830, 0.7978846
        %v5863 = vmul.f32 %v5831, 0.7978846
        %v5864 = vmul.f32 %v5832, 0.7978846
        %v5865 = vmul.f32 %v5833, 0.7978846
        %v5866 = vmul.f32 %v5834, 0.7978846
        %v5867 = vmul.f32 %v5835, 0.7978846
        %v5868 = vmul.f32 %v5836, 0.7978846
        %v5869 = vmul.f32 %v5837, 0.7978846
        %v5870 = vtanh.pop %v5838
        %v5871 = vtanh.pop %v5839
        %v5872 = vtanh.pop %v5840
        %v5873 = vtanh.pop %v5841
        %v5874 = vtanh.pop %v5842
        %v5875 = vtanh.pop %v5843
        %v5876 = vtanh.pop %v5844
        %v5877 = vtanh.pop %v5845
        %v5878 = vtanh.pop %v5846
        %v5879 = vtanh.pop %v5847
        %v5880 = vtanh.pop %v5848
        %v5881 = vtanh.pop %v5849
        %v5882 = vtanh.pop %v5850
        %v5883 = vtanh.pop %v5851
        %v5884 = vtanh.pop %v5852
        %v5885 = vtanh.pop %v5853
        %v5886 = vtanh.pop %v5854
        %v5887 = vtanh.pop %v5855
        %v5888 = vtanh.pop %v5856
        %v5889 = vtanh.pop %v5857
        %v5890 = vtanh.pop %v5858
        %v5891 = vtanh.pop %v5859
        %v5892 = vtanh.pop %v5860
        %v5893 = vtanh.pop %v5861
        %v5894 = vtanh.pop %v5862
        %v5895 = vtanh.pop %v5863
        %v5896 = vtanh.pop %v5864
        %v5897 = vtanh.pop %v5865
        %v5898 = vtanh.pop %v5866
        %v5899 = vtanh.pop %v5867
        %v5900 = vtanh.pop %v5868
        %v5901 = vtanh.pop %v5869
        %v5902 = vadd.f32 %v5870, 1.0
        %v5903 = vadd.f32 %v5871, 1.0
        %v5904 = vadd.f32 %v5872, 1.0
        %v5905 = vadd.f32 %v5873, 1.0
        %v5906 = vadd.f32 %v5874, 1.0
        %v5907 = vadd.f32 %v5875, 1.0
        %v5908 = vadd.f32 %v5876, 1.0
        %v5909 = vadd.f32 %v5877, 1.0
        %v5910 = vadd.f32 %v5878, 1.0
        %v5911 = vadd.f32 %v5879, 1.0
        %v5912 = vadd.f32 %v5880, 1.0
        %v5913 = vadd.f32 %v5881, 1.0
        %v5914 = vadd.f32 %v5882, 1.0
        %v5915 = vadd.f32 %v5883, 1.0
        %v5916 = vadd.f32 %v5884, 1.0
        %v5917 = vadd.f32 %v5885, 1.0
        %v5918 = vadd.f32 %v5886, 1.0
        %v5919 = vadd.f32 %v5887, 1.0
        %v5920 = vadd.f32 %v5888, 1.0
        %v5921 = vadd.f32 %v5889, 1.0
        %v5922 = vadd.f32 %v5890, 1.0
        %v5923 = vadd.f32 %v5891, 1.0
        %v5924 = vadd.f32 %v5892, 1.0
        %v5925 = vadd.f32 %v5893, 1.0
        %v5926 = vadd.f32 %v5894, 1.0
        %v5927 = vadd.f32 %v5895, 1.0
        %v5928 = vadd.f32 %v5896, 1.0
        %v5929 = vadd.f32 %v5897, 1.0
        %v5930 = vadd.f32 %v5898, 1.0
        %v5931 = vadd.f32 %v5899, 1.0
        %v5932 = vadd.f32 %v5900, 1.0
        %v5933 = vadd.f32 %v5901, 1.0
        %v5934 = vmul.f32 %v5902, 0.5
        %v5935 = vmul.f32 %v5903, 0.5
        %v5936 = vmul.f32 %v5904, 0.5
        %v5937 = vmul.f32 %v5905, 0.5
        %v5938 = vmul.f32 %v5906, 0.5
        %v5939 = vmul.f32 %v5907, 0.5
        %v5940 = vmul.f32 %v5908, 0.5
        %v5941 = vmul.f32 %v5909, 0.5
        %v5942 = vmul.f32 %v5910, 0.5
        %v5943 = vmul.f32 %v5911, 0.5
        %v5944 = vmul.f32 %v5912, 0.5
        %v5945 = vmul.f32 %v5913, 0.5
        %v5946 = vmul.f32 %v5914, 0.5
        %v5947 = vmul.f32 %v5915, 0.5
        %v5948 = vmul.f32 %v5916, 0.5
        %v5949 = vmul.f32 %v5917, 0.5
        %v5950 = vmul.f32 %v5918, 0.5
        %v5951 = vmul.f32 %v5919, 0.5
        %v5952 = vmul.f32 %v5920, 0.5
        %v5953 = vmul.f32 %v5921, 0.5
        %v5954 = vmul.f32 %v5922, 0.5
        %v5955 = vmul.f32 %v5923, 0.5
        %v5956 = vmul.f32 %v5924, 0.5
        %v5957 = vmul.f32 %v5925, 0.5
        %v5958 = vmul.f32 %v5926, 0.5
        %v5959 = vmul.f32 %v5927, 0.5
        %v5960 = vmul.f32 %v5928, 0.5
        %v5961 = vmul.f32 %v5929, 0.5
        %v5962 = vmul.f32 %v5930, 0.5
        %v5963 = vmul.f32 %v5931, 0.5
        %v5964 = vmul.f32 %v5932, 0.5
        %v5965 = vmul.f32 %v5933, 0.5
        %v5966 = vmul.f32 %v5678, %v5934
        %v5967 = vmul.f32 %v5679, %v5935
        %v5968 = vmul.f32 %v5680, %v5936
        %v5969 = vmul.f32 %v5681, %v5937
        %v5970 = vmul.f32 %v5682, %v5938
        %v5971 = vmul.f32 %v5683, %v5939
        %v5972 = vmul.f32 %v5684, %v5940
        %v5973 = vmul.f32 %v5685, %v5941
        %v5974 = vmul.f32 %v5686, %v5942
        %v5975 = vmul.f32 %v5687, %v5943
        %v5976 = vmul.f32 %v5688, %v5944
        %v5977 = vmul.f32 %v5689, %v5945
        %v5978 = vmul.f32 %v5690, %v5946
        %v5979 = vmul.f32 %v5691, %v5947
        %v5980 = vmul.f32 %v5692, %v5948
        %v5981 = vmul.f32 %v5693, %v5949
        %v5982 = vmul.f32 %v5694, %v5950
        %v5983 = vmul.f32 %v5695, %v5951
        %v5984 = vmul.f32 %v5696, %v5952
        %v5985 = vmul.f32 %v5697, %v5953
        %v5986 = vmul.f32 %v5698, %v5954
        %v5987 = vmul.f32 %v5699, %v5955
        %v5988 = vmul.f32 %v5700, %v5956
        %v5989 = vmul.f32 %v5701, %v5957
        %v5990 = vmul.f32 %v5702, %v5958
        %v5991 = vmul.f32 %v5703, %v5959
        %v5992 = vmul.f32 %v5704, %v5960
        %v5993 = vmul.f32 %v5705, %v5961
        %v5994 = vmul.f32 %v5706, %v5962
        %v5995 = vmul.f32 %v5707, %v5963
        %v5996 = vmul.f32 %v5708, %v5964
        %v5997 = vmul.f32 %v5709, %v5965
        %v5998 = vld [vmem:[%s2] sm:$0x1]
        %v6000 = vlaneseq
        %v6001 = vshrl.u32 %v6000, 7
        %v6002 = vsub.s32 0, %v6001
        %v6003 = vrot.slane %v5998, %v6002
        %v6005 = vmul.f32 %v6003, %v5966
        %v6006 = vmul.f32 %v6003, %v5967
        %v6007 = vmul.f32 %v6003, %v5968
        %v6008 = vmul.f32 %v6003, %v5969
        %v6009 = vmul.f32 %v6003, %v5970
        %v6010 = vmul.f32 %v6003, %v5971
        %v6011 = vmul.f32 %v6003, %v5972
        %v6012 = vmul.f32 %v6003, %v5973
        %v6013 = vmul.f32 %v6003, %v5974
        %v6014 = vmul.f32 %v6003, %v5975
        %v6015 = vmul.f32 %v6003, %v5976
        %v6016 = vmul.f32 %v6003, %v5977
        %v6017 = vmul.f32 %v6003, %v5978
        %v6018 = vmul.f32 %v6003, %v5979
        %v6019 = vmul.f32 %v6003, %v5980
        %v6020 = vmul.f32 %v6003, %v5981
        %v6021 = vmul.f32 %v6003, %v5982
        %v6022 = vmul.f32 %v6003, %v5983
        %v6023 = vmul.f32 %v6003, %v5984
        %v6024 = vmul.f32 %v6003, %v5985
        %v6025 = vmul.f32 %v6003, %v5986
        %v6026 = vmul.f32 %v6003, %v5987
        %v6027 = vmul.f32 %v6003, %v5988
        %v6028 = vmul.f32 %v6003, %v5989
        %v6029 = vmul.f32 %v6003, %v5990
        %v6030 = vmul.f32 %v6003, %v5991
        %v6031 = vmul.f32 %v6003, %v5992
        %v6032 = vmul.f32 %v6003, %v5993
        %v6033 = vmul.f32 %v6003, %v5994
        %v6034 = vmul.f32 %v6003, %v5995
        %v6035 = vmul.f32 %v6003, %v5996
        %v6036 = vmul.f32 %v6003, %v5997
        %v6037 = vld [vmem:[%s3] sm:$0x1]
        %v6039 = vlaneseq
        %v6040 = vshrl.u32 %v6039, 7
        %v6041 = vsub.s32 0, %v6040
        %v6042 = vrot.slane %v6037, %v6041
        %v6044 = vadd.f32 %v6005, %v6042
        %v6045 = vadd.f32 %v6006, %v6042
        %v6046 = vadd.f32 %v6007, %v6042
        %v6047 = vadd.f32 %v6008, %v6042
        %v6048 = vadd.f32 %v6009, %v6042
        %v6049 = vadd.f32 %v6010, %v6042
        %v6050 = vadd.f32 %v6011, %v6042
        %v6051 = vadd.f32 %v6012, %v6042
        %v6052 = vadd.f32 %v6013, %v6042
        %v6053 = vadd.f32 %v6014, %v6042
        %v6054 = vadd.f32 %v6015, %v6042
        %v6055 = vadd.f32 %v6016, %v6042
        %v6056 = vadd.f32 %v6017, %v6042
        %v6057 = vadd.f32 %v6018, %v6042
        %v6058 = vadd.f32 %v6019, %v6042
        %v6059 = vadd.f32 %v6020, %v6042
        %v6060 = vadd.f32 %v6021, %v6042
        %v6061 = vadd.f32 %v6022, %v6042
        %v6062 = vadd.f32 %v6023, %v6042
        %v6063 = vadd.f32 %v6024, %v6042
        %v6064 = vadd.f32 %v6025, %v6042
        %v6065 = vadd.f32 %v6026, %v6042
        %v6066 = vadd.f32 %v6027, %v6042
        %v6067 = vadd.f32 %v6028, %v6042
        %v6068 = vadd.f32 %v6029, %v6042
        %v6069 = vadd.f32 %v6030, %v6042
        %v6070 = vadd.f32 %v6031, %v6042
        %v6071 = vadd.f32 %v6032, %v6042
        %v6072 = vadd.f32 %v6033, %v6042
        %v6073 = vadd.f32 %v6034, %v6042
        %v6074 = vadd.f32 %v6035, %v6042
        %v6075 = vadd.f32 %v6036, %v6042
        %v6076 = vadd.f32 %v6044, %v258
        %v6077 = vadd.f32 %v6045, %v259
        %v6078 = vadd.f32 %v6046, %v260
        %v6079 = vadd.f32 %v6047, %v261
        %v6080 = vadd.f32 %v6048, %v262
        %v6081 = vadd.f32 %v6049, %v263
        %v6082 = vadd.f32 %v6050, %v264
        %v6083 = vadd.f32 %v6051, %v265
        %v6084 = vadd.f32 %v6052, %v266
        %v6085 = vadd.f32 %v6053, %v267
        %v6086 = vadd.f32 %v6054, %v268
        %v6087 = vadd.f32 %v6055, %v269
        %v6088 = vadd.f32 %v6056, %v270
        %v6089 = vadd.f32 %v6057, %v271
        %v6090 = vadd.f32 %v6058, %v272
        %v6091 = vadd.f32 %v6059, %v273
        %v6092 = vadd.f32 %v6060, %v274
        %v6093 = vadd.f32 %v6061, %v275
        %v6094 = vadd.f32 %v6062, %v276
        %v6095 = vadd.f32 %v6063, %v277
        %v6096 = vadd.f32 %v6064, %v278
        %v6097 = vadd.f32 %v6065, %v279
        %v6098 = vadd.f32 %v6066, %v280
        %v6099 = vadd.f32 %v6067, %v281
        %v6100 = vadd.f32 %v6068, %v282
        %v6101 = vadd.f32 %v6069, %v283
        %v6102 = vadd.f32 %v6070, %v284
        %v6103 = vadd.f32 %v6071, %v285
        %v6104 = vadd.f32 %v6072, %v286
        %v6105 = vadd.f32 %v6073, %v287
        %v6106 = vadd.f32 %v6074, %v288
        %v6107 = vadd.f32 %v6075, %v289
        %6108 = vst [vmem:[%s257] sm:$0xff] %v6076
        %6109 = vst [vmem:[%s257 + $0x8] sm:$0xff] %v6077
        %6110 = vst [vmem:[%s257 + $0x10] sm:$0xff] %v6078
        %6111 = vst [vmem:[%s257 + $0x18] sm:$0xff] %v6079
        %6112 = vst [vmem:[%s257 + $0x20] sm:$0xff] %v6080
        %6113 = vst [vmem:[%s257 + $0x28] sm:$0xff] %v6081
        %6114 = vst [vmem:[%s257 + $0x30] sm:$0xff] %v6082
        %6115 = vst [vmem:[%s257 + $0x38] sm:$0xff] %v6083
        %6116 = vst [vmem:[%s257 + $0x40] sm:$0xff] %v6084
        %6117 = vst [vmem:[%s257 + $0x48] sm:$0xff] %v6085
        %6118 = vst [vmem:[%s257 + $0x50] sm:$0xff] %v6086
        %6119 = vst [vmem:[%s257 + $0x58] sm:$0xff] %v6087
        %6120 = vst [vmem:[%s257 + $0x60] sm:$0xff] %v6088
        %6121 = vst [vmem:[%s257 + $0x68] sm:$0xff] %v6089
        %6122 = vst [vmem:[%s257 + $0x70] sm:$0xff] %v6090
        %6123 = vst [vmem:[%s257 + $0x78] sm:$0xff] %v6091
        %6124 = vst [vmem:[%s257 + $0x80] sm:$0xff] %v6092
        %6125 = vst [vmem:[%s257 + $0x88] sm:$0xff] %v6093
        %6126 = vst [vmem:[%s257 + $0x90] sm:$0xff] %v6094
        %6127 = vst [vmem:[%s257 + $0x98] sm:$0xff] %v6095
        %6128 = vst [vmem:[%s257 + $0xa0] sm:$0xff] %v6096
        %6129 = vst [vmem:[%s257 + $0xa8] sm:$0xff] %v6097
        %6130 = vst [vmem:[%s257 + $0xb0] sm:$0xff] %v6098
        %6131 = vst [vmem:[%s257 + $0xb8] sm:$0xff] %v6099
        %6132 = vst [vmem:[%s257 + $0xc0] sm:$0xff] %v6100
        %6133 = vst [vmem:[%s257 + $0xc8] sm:$0xff] %v6101
        %6134 = vst [vmem:[%s257 + $0xd0] sm:$0xff] %v6102
        %6135 = vst [vmem:[%s257 + $0xd8] sm:$0xff] %v6103
        %6136 = vst [vmem:[%s257 + $0xe0] sm:$0xff] %v6104
        %6137 = vst [vmem:[%s257 + $0xe8] sm:$0xff] %v6105
        %6138 = vst [vmem:[%s257 + $0xf0] sm:$0xff] %v6106
        %6139 = vst [vmem:[%s257 + $0xf8] sm:$0xff] %v6107
        %s6140 = sand.u32 %s141, 1
        %s6141 = scalar_lea.sflag [#allocation5], %s6140
        %s6142 = sand.u32 %s141, 1
        %s6143 = smul.addr %s6142, 256
        %s6144 = scalar_lea.vmem [#allocation8], %s6143
        // Predicated region
        $region49: #{residual_forward.1} parent=39 // pred_check
          %p6145 = pneg %p151
        $region50: #{residual_forward.1} parent=39 // pred_check_branch
          %6147 = sbr.rel (%p6145) target = $region52
        $region51: #{residual_forward.1} parent=39 // pred_region
          %s6149 = ssub.s32 4096, 4096
          %6150 = vsyncadd %s6141, %s6149
          %s6151 = smul.addr %s23, 32
          %s6152 = smul.addr %s6151, 128
          %s6153 = scalar_lea.hbm %s5, %s6152
          %s6154 = sshll.u32 %s6144, 4
          %s6155 = int_to_ptr.vmem [resolvable:$true] %s6154
          %6160 = dma.vmem_to_hbm [thread:$0]  %s6155, 4096, %s6153, %s6141, 128, 128, 8
        $region52: #{residual_forward.1} parent=39 // pred_fallthru
          _
      $region40: #{residual_forward.1} parent=5 // pred_fallthru
        _
      %p6161 = scmp.le.s32.totalorder 2, %s18
      // Predicated region
      $region53: #{residual_forward.1} parent=5 // pred_check
        %p6162 = pneg %p6161
      $region54: #{residual_forward.1} parent=5 // pred_check_branch
        %6164 = sbr.rel (%p6162) target = $region56
      $region55: #{residual_forward.1} parent=5 // pred_region
        %s6165 = ssub.s32 %s18, 2
        // Predicated region
        $region57: #{residual_forward.1} parent=55 // pred_check
          %p6166 = pneg %p157
        $region58: #{residual_forward.1} parent=55 // pred_check_branch
          %6168 = sbr.rel (%p6166) target = $region60
        $region59: #{residual_forward.1} parent=55 // pred_region
          %s6169 = sand.u32 %s142, 1
          %s6170 = scalar_lea.sflag [#allocation5], %s6169
          %s6171 = sand.u32 %s142, 1
          %s6172 = smul.addr %s6171, 256
          %s6173 = scalar_lea.vmem [#allocation8], %s6172
          %6174 = dma.done %s6170, 4096
        $region60: #{residual_forward.1} parent=55 // pred_fallthru
          _
      $region56: #{residual_forward.1} parent=5 // pred_fallthru
        _
    $region6: #{residual_forward.1} parent=1 // loop_footer
      %s22 = sadd.s32 1, %s18
    $region7: #{residual_forward.1} parent=1 // loop_footer_branch
      %17 = sbr.rel target = $region3
    $region8: #{residual_forward.1} parent=1 // loop_exit
      _
    %6175 = vsyncpa [#allocation4], 1
    %s6176 = scalar_lea.sflag [#allocation4], 1
    %6177 = vsyncpa %s6176, 1
    %6178 = vsyncpa [#allocation7], 1
    %s6179 = scalar_lea.sflag [#allocation7], 1
    %6180 = vsyncpa %s6179, 1
    %6181 = vsyncpa [#allocation5], 1
    %s6182 = scalar_lea.sflag [#allocation5], 1
    %6183 = vsyncpa %s6182, 1

</llo_original>
